<compile_context>
chip_gen: v5e
topology: v5e:2x2
jax: 0.10.0
libtpu: 0.0.40
codegen_flags: <defaults>
</compile_context>

<pallas_src>
import jax
import jax.numpy as jnp
import numpy as np
from jax import lax
from jax.experimental import pallas as pl
from jax.experimental.pallas import tpu as pltpu

# ---------------- hyperparameters (consistent with the module) ----------------
BATCH = 2
SEQ = 128
INPUT_DIM = 128
NUM_HEADS = 8                      # nn.Module default
HEAD_DIM = INPUT_DIM // NUM_HEADS  # 16
SCALE = HEAD_DIM ** -0.5


# ---------------- Pallas kernel: one batch element per grid step ----------------
def mha_kernel(x_ref, wqkv_ref, bqkv_ref, wout_ref, bout_ref,
               out_ref, attn_ref,
               qkv_ref, attn_buf, sems):
    b = pl.program_id(0)
    D, dh = INPUT_DIM, HEAD_DIM

    # fused QKV projection: one (S, D) @ (D, 3D) MXU dot (K = 128), f32.
    # A single lane-dense VMEM store bounds qkv's live range; heads slice it back.
    qkv_ref[...] = (jnp.dot(x_ref[0], wqkv_ref[...],
                            preferred_element_type=jnp.float32)
                    + bqkv_ref[...])                                   # (S, 3D)

    ctx_tiles = []
    for h in range(NUM_HEADS):                                         # unrolled
        # SCALE folded into q (2 vregs) instead of scaling the 16-vreg (S,S) scores.
        q = qkv_ref[:, h * dh:(h + 1) * dh] * SCALE                    # (S, dh)
        k = qkv_ref[:, D + h * dh:D + (h + 1) * dh]                    # (S, dh)
        v = qkv_ref[:, 2 * D + h * dh:2 * D + (h + 1) * dh]            # (S, dh)

        # QK^T kept in f32 to protect the attn output's tolerance.
        s = lax.dot_general(q, k, (((1,), (1,)), ((), ())),
                            preferred_element_type=jnp.float32)        # (S, S)
        m = jnp.max(s, axis=-1, keepdims=True)
        e = jnp.exp(s - m)
        p = e * pl.reciprocal(jnp.sum(e, axis=-1, keepdims=True), approx=True)

        # Stage the (S,S) attention tile (lane-dense store) and stream it to HBM
        # right away so the dominant writeback overlaps the remaining compute.
        attn_buf[h] = p
        pltpu.make_async_copy(attn_buf.at[h], attn_ref.at[b, h],
                              sems.at[h]).start()

        # dropout(p) is identity in eval mode
        ctx_tiles.append(jnp.dot(p.astype(jnp.bfloat16),
                                 v.astype(jnp.bfloat16),
                                 preferred_element_type=jnp.float32))  # (S, dh)

    # Per-head contexts stay in registers; one K = D = 128 output projection.
    ctx = jnp.concatenate(ctx_tiles, axis=-1)                          # (S, D)
    out_ref[0] = (jnp.dot(ctx.astype(jnp.bfloat16),
                          wout_ref[...].astype(jnp.bfloat16),
                          preferred_element_type=jnp.float32)
                  + bout_ref[...])

    # Drain the attn DMAs before this grid step ends (staging buffer is reused).
    for h in range(NUM_HEADS):
        pltpu.make_async_copy(attn_buf.at[h], attn_ref.at[b, h],
                              sems.at[h]).wait()


# ---------------- wrapper (no per-call parameter preprocessing) ----------------
def multi_head_attention(x, w_qkv, b_qkv, w_out, b_out):
    B, S, D = x.shape
    out, attn = pl.pallas_call(
        mha_kernel,
        out_shape=(jax.ShapeDtypeStruct((B, S, D), jnp.float32),
                   jax.ShapeDtypeStruct((B, NUM_HEADS, S, S), jnp.float32)),
        grid=(B,),
        in_specs=[
            pl.BlockSpec((1, S, D), lambda b: (b, 0, 0)),
            pl.BlockSpec((D, 3 * D), lambda b: (0, 0)),
            pl.BlockSpec((1, 3 * D), lambda b: (0, 0)),
            pl.BlockSpec((D, D), lambda b: (0, 0)),
            pl.BlockSpec((1, D), lambda b: (0, 0)),
        ],
        out_specs=(
            pl.BlockSpec((1, S, D), lambda b: (b, 0, 0)),
            pl.BlockSpec(memory_space=pl.ANY),     # attn: manual streamed DMA
        ),
        scratch_shapes=[
            pltpu.VMEM((S, 3 * D), jnp.float32),            # qkv projection
            pltpu.VMEM((NUM_HEADS, S, S), jnp.float32),     # staged attn tiles
            pltpu.SemaphoreType.DMA((NUM_HEADS,)),          # one sem per head
        ],
        compiler_params=pltpu.CompilerParams(
            dimension_semantics=("parallel",)),
    )(x, w_qkv, b_qkv, w_out, b_out)
    return out, attn


# ---------------- pure-JAX reference (mirrors the PyTorch forward) ----------------
def reference_forward(x, w_qkv, b_qkv, w_out, b_out):
    B, S, D = x.shape
    nh, dh = NUM_HEADS, HEAD_DIM
    qkv = x @ w_qkv + b_qkv                                           # (B, S, 3D)
    qkv = qkv.reshape(B, S, 3, nh, dh).transpose(2, 0, 3, 1, 4)
    q, k, v = qkv[0], qkv[1], qkv[2]                                  # (B, nh, S, dh)
    attn = jax.nn.softmax(jnp.einsum('bhqd,bhkd->bhqk', q, k) * SCALE, axis=-1)
    out = jnp.einsum('bhqk,bhkd->bhqd', attn, v)
    out = out.transpose(0, 2, 1, 3).reshape(B, S, D)
    out = out @ w_out + b_out
    return out, attn


if __name__ == "__main__":
    key = jax.random.PRNGKey(0)
    kx, k1, k2, k3, k4 = jax.random.split(key, 5)
    D = INPUT_DIM

    x = jax.random.normal(kx, (BATCH, SEQ, D), jnp.float32)
    w_qkv = jax.random.normal(k1, (D, 3 * D), jnp.float32) / np.sqrt(D)
    b_qkv = 0.02 * jax.random.normal(k2, (1, 3 * D), jnp.float32)
    w_out = jax.random.normal(k3, (D, D), jnp.float32) / np.sqrt(D)
    b_out = 0.02 * jax.random.normal(k4, (1, D), jnp.float32)

    out, attn = multi_head_attention(x, w_qkv, b_qkv, w_out, b_out)
    out, attn = jax.block_until_ready((out, attn))

    ref_out, ref_attn = reference_forward(x, w_qkv, b_qkv, w_out, b_out)
    # attn path is full f32 in-kernel (plus EUP approx reciprocal) -> tight check.
    np.testing.assert_allclose(np.asarray(attn), np.asarray(ref_attn),
                               rtol=2e-2, atol=2e-4)
    # out path uses bf16 MXU operands (f32 accumulate) -> atol widened to 1e-2.
    np.testing.assert_allclose(np.asarray(out), np.asarray(ref_out),
                               rtol=2e-2, atol=1e-2)

    print("KERNEL_OK")
</pallas_src>

<mosaic_0001>
module attributes {stable_mosaic.version = 11 : i64} {
  func.func @mha_kernel(%arg0: i32, %arg1: memref<1x128x128xf32, #tpu.memory_space<vmem>>, %arg2: memref<128x384xf32, #tpu.memory_space<vmem>>, %arg3: memref<1x384xf32, #tpu.memory_space<vmem>>, %arg4: memref<128x128xf32, #tpu.memory_space<vmem>>, %arg5: memref<1x128xf32, #tpu.memory_space<vmem>>, %arg6: memref<1x128x128xf32, #tpu.memory_space<vmem>>, %arg7: memref<2x8x128x128xf32, #tpu.memory_space<any>>, %arg8: memref<128x384xf32, #tpu.memory_space<vmem>>, %arg9: memref<8x128x128xf32, #tpu.memory_space<vmem>>, %arg10: memref<8x!tpu.dma_semaphore, #tpu.memory_space<semaphore_mem>>) attributes {dimension_semantics = [#tpu.dimension_semantics<parallel>], iteration_bounds = array<i64: 2>, scalar_prefetch = 0 : i64, scratch_operands = 3 : i64, tpu.core_type = #tpu.core_type<tc>, window_params = [{transform_indices = @transform_0, window_bounds = array<i64: 1, 128, 128>}, {pipeline_mode = #tpu.pipeline_mode<synchronous>, transform_indices = @transform_1, window_bounds = array<i64: 128, 384>}, {pipeline_mode = #tpu.pipeline_mode<synchronous>, transform_indices = @transform_2, window_bounds = array<i64: 1, 384>}, {pipeline_mode = #tpu.pipeline_mode<synchronous>, transform_indices = @transform_3, window_bounds = array<i64: 128, 128>}, {pipeline_mode = #tpu.pipeline_mode<synchronous>, transform_indices = @transform_4, window_bounds = array<i64: 1, 128>}, {transform_indices = @transform_5, window_bounds = array<i64: 1, 128, 128>}, {}]} {
    %c0 = arith.constant 0 : index
    %c0_0 = arith.constant 0 : index
    %c0_1 = arith.constant 0 : index
    %0 = vector.load %arg1[%c0, %c0_0, %c0_1] : memref<1x128x128xf32, #tpu.memory_space<vmem>>, vector<1x128x128xf32>
    %1 = vector.shape_cast %0 : vector<1x128x128xf32> to vector<128x128xf32>
    %c0_2 = arith.constant 0 : index
    %c0_3 = arith.constant 0 : index
    %2 = vector.load %arg2[%c0_2, %c0_3] : memref<128x384xf32, #tpu.memory_space<vmem>>, vector<128x384xf32>
    %cst = arith.constant dense<0.000000e+00> : vector<128x384xf32>
    %3 = tpu.matmul %1, %2, %cst {dimension_numbers = #tpu.dot_dimension_numbers<[1], [0], [0], [1], [0, 0, 1, 1], [], []>} : vector<128x128xf32>, vector<128x384xf32>, vector<128x384xf32> -> vector<128x384xf32>
    %c0_4 = arith.constant 0 : index
    %c0_5 = arith.constant 0 : index
    %4 = vector.load %arg3[%c0_4, %c0_5] : memref<1x384xf32, #tpu.memory_space<vmem>>, vector<1x384xf32>
    %5 = vector.broadcast %4 : vector<1x384xf32> to vector<128x384xf32>
    %6 = arith.addf %3, %5 : vector<128x384xf32>
    %c0_6 = arith.constant 0 : index
    %c0_7 = arith.constant 0 : index
    %7 = vector.load %arg8[%c0_6, %c0_7] : memref<128x384xf32, #tpu.memory_space<vmem>>, vector<128x384xf32>
    tpu.vector_store %arg8[%c0_6, %c0_7], %6 {strides = array<i32>} : memref<128x384xf32, #tpu.memory_space<vmem>>, vector<128x384xf32>,
    %c0_8 = arith.constant 0 : index
    %c0_9 = arith.constant 0 : index
    %8 = vector.load %arg8[%c0_8, %c0_9] : memref<128x384xf32, #tpu.memory_space<vmem>>, vector<128x16xf32>
    %cst_10 = arith.constant 2.500000e-01 : f32
    %9 = vector.broadcast %cst_10 : f32 to vector<128x16xf32>
    %10 = arith.mulf %8, %9 : vector<128x16xf32>
    %c0_11 = arith.constant 0 : index
    %c128 = arith.constant 128 : index
    %11 = vector.load %arg8[%c0_11, %c128] : memref<128x384xf32, #tpu.memory_space<vmem>>, vector<128x16xf32>
    %c0_12 = arith.constant 0 : index
    %c256 = arith.constant 256 : index
    %12 = vector.load %arg8[%c0_12, %c256] : memref<128x384xf32, #tpu.memory_space<vmem>>, vector<128x16xf32>
    %cst_13 = arith.constant dense<0.000000e+00> : vector<128x128xf32>
    %13 = tpu.matmul %10, %11, %cst_13 {dimension_numbers = #tpu.dot_dimension_numbers<[1], [1], [0], [0], [0, 0, 1, 0], [], []>} : vector<128x16xf32>, vector<128x16xf32>, vector<128x128xf32> -> vector<128x128xf32>
    %cst_14 = arith.constant dense<0xFF800000> : vector<128xf32>
    %14 = vector.multi_reduction <maximumf>, %13, %cst_14 [1] : vector<128x128xf32> to vector<128xf32>
    %15 = vector.shape_cast %14 : vector<128xf32> to vector<128x1xf32>
    %16 = vector.broadcast %15 : vector<128x1xf32> to vector<128x128xf32>
    %17 = arith.subf %13, %16 : vector<128x128xf32>
    %18 = math.exp %17 : vector<128x128xf32>
    %cst_15 = arith.constant dense<0.000000e+00> : vector<128xf32>
    %19 = vector.multi_reduction <add>, %18, %cst_15 [1] : vector<128x128xf32> to vector<128xf32>
    %20 = vector.shape_cast %19 : vector<128xf32> to vector<128x1xf32>
    %21 = tpu.reciprocal %20 {approx = true} : vector<128x1xf32> -> vector<128x1xf32>
    %22 = vector.broadcast %21 : vector<128x1xf32> to vector<128x128xf32>
    %23 = arith.mulf %18, %22 : vector<128x128xf32>
    %c0_16 = arith.constant 0 : index
    %c0_17 = arith.constant 0 : index
    %c0_18 = arith.constant 0 : index
    %24 = vector.load %arg9[%c0_16, %c0_17, %c0_18] : memref<8x128x128xf32, #tpu.memory_space<vmem>>, vector<1x128x128xf32>
    %25 = vector.shape_cast %24 : vector<1x128x128xf32> to vector<128x128xf32>
    %26 = vector.shape_cast %23 : vector<128x128xf32> to vector<1x128x128xf32>
    tpu.vector_store %arg9[%c0_16, %c0_17, %c0_18], %26 {strides = array<i32>} : memref<8x128x128xf32, #tpu.memory_space<vmem>>, vector<1x128x128xf32>,
    %c0_i32 = arith.constant 0 : i32
    %c0_i32_19 = arith.constant 0 : i32
    %c0_i32_20 = arith.constant 0 : i32
    %c0_i32_21 = arith.constant 0 : i32
    %c0_i32_22 = arith.constant 0 : i32
    %27 = tpu.memref_slice %arg9[%c0_i32, %c0_i32_21, %c0_i32_22] : memref<8x128x128xf32, #tpu.memory_space<vmem>> -> memref<1x128x128xf32, #tpu.memory_space<vmem>>
    %28 = tpu.memref_squeeze %27 : memref<1x128x128xf32, #tpu.memory_space<vmem>> -> memref<128x128xf32, #tpu.memory_space<vmem>>
    %c0_i32_23 = arith.constant 0 : i32
    %c0_i32_24 = arith.constant 0 : i32
    %29 = tpu.memref_slice %arg7[%arg0, %c0_i32_19, %c0_i32_23, %c0_i32_24] : memref<2x8x128x128xf32, #tpu.memory_space<any>> -> memref<1x1x128x128xf32, #tpu.memory_space<any>>
    %30 = tpu.memref_squeeze %29 : memref<1x1x128x128xf32, #tpu.memory_space<any>> -> memref<128x128xf32, #tpu.memory_space<any>>
    %31 = tpu.memref_slice %arg10[%c0_i32_20] : memref<8x!tpu.dma_semaphore, #tpu.memory_space<semaphore_mem>> -> memref<1x!tpu.dma_semaphore, #tpu.memory_space<semaphore_mem>>
    %32 = tpu.memref_squeeze %31 : memref<1x!tpu.dma_semaphore, #tpu.memory_space<semaphore_mem>> -> memref<!tpu.dma_semaphore, #tpu.memory_space<semaphore_mem>>
    tpu.enqueue_dma source(%28 : memref<128x128xf32, #tpu.memory_space<vmem>>) target(%30 : memref<128x128xf32, #tpu.memory_space<any>>) target_semaphore(%32 : memref<!tpu.dma_semaphore, #tpu.memory_space<semaphore_mem>>)
    %33 = arith.truncf %23 : vector<128x128xf32> to vector<128x128xbf16>
    %34 = arith.truncf %12 : vector<128x16xf32> to vector<128x16xbf16>
    %cst_25 = arith.constant dense<0.000000e+00> : vector<128x16xf32>
    %35 = tpu.matmul %33, %34, %cst_25 {dimension_numbers = #tpu.dot_dimension_numbers<[1], [0], [0], [1], [0, 0, 1, 1], [], []>} : vector<128x128xbf16>, vector<128x16xbf16>, vector<128x16xf32> -> vector<128x16xf32>
    %c0_26 = arith.constant 0 : index
    %c16 = arith.constant 16 : index
    %36 = vector.load %arg8[%c0_26, %c16] : memref<128x384xf32, #tpu.memory_space<vmem>>, vector<128x16xf32>
    %cst_27 = arith.constant 2.500000e-01 : f32
    %37 = vector.broadcast %cst_27 : f32 to vector<128x16xf32>
    %38 = arith.mulf %36, %37 : vector<128x16xf32>
    %c0_28 = arith.constant 0 : index
    %c144 = arith.constant 144 : index
    %39 = vector.load %arg8[%c0_28, %c144] : memref<128x384xf32, #tpu.memory_space<vmem>>, vector<128x16xf32>
    %c0_29 = arith.constant 0 : index
    %c272 = arith.constant 272 : index
    %40 = vector.load %arg8[%c0_29, %c272] : memref<128x384xf32, #tpu.memory_space<vmem>>, vector<128x16xf32>
    %cst_30 = arith.constant dense<0.000000e+00> : vector<128x128xf32>
    %41 = tpu.matmul %38, %39, %cst_30 {dimension_numbers = #tpu.dot_dimension_numbers<[1], [1], [0], [0], [0, 0, 1, 0], [], []>} : vector<128x16xf32>, vector<128x16xf32>, vector<128x128xf32> -> vector<128x128xf32>
    %cst_31 = arith.constant dense<0xFF800000> : vector<128xf32>
    %42 = vector.multi_reduction <maximumf>, %41, %cst_31 [1] : vector<128x128xf32> to vector<128xf32>
    %43 = vector.shape_cast %42 : vector<128xf32> to vector<128x1xf32>
    %44 = vector.broadcast %43 : vector<128x1xf32> to vector<128x128xf32>
    %45 = arith.subf %41, %44 : vector<128x128xf32>
    %46 = math.exp %45 : vector<128x128xf32>
    %cst_32 = arith.constant dense<0.000000e+00> : vector<128xf32>
    %47 = vector.multi_reduction <add>, %46, %cst_32 [1] : vector<128x128xf32> to vector<128xf32>
    %48 = vector.shape_cast %47 : vector<128xf32> to vector<128x1xf32>
    %49 = tpu.reciprocal %48 {approx = true} : vector<128x1xf32> -> vector<128x1xf32>
    %50 = vector.broadcast %49 : vector<128x1xf32> to vector<128x128xf32>
    %51 = arith.mulf %46, %50 : vector<128x128xf32>
    %c1 = arith.constant 1 : index
    %c0_33 = arith.constant 0 : index
    %c0_34 = arith.constant 0 : index
    %52 = vector.load %arg9[%c1, %c0_33, %c0_34] : memref<8x128x128xf32, #tpu.memory_space<vmem>>, vector<1x128x128xf32>
    %53 = vector.shape_cast %52 : vector<1x128x128xf32> to vector<128x128xf32>
    %54 = vector.shape_cast %51 : vector<128x128xf32> to vector<1x128x128xf32>
    tpu.vector_store %arg9[%c1, %c0_33, %c0_34], %54 {strides = array<i32>} : memref<8x128x128xf32, #tpu.memory_space<vmem>>, vector<1x128x128xf32>,
    %c1_i32 = arith.constant 1 : i32
    %c1_i32_35 = arith.constant 1 : i32
    %c1_i32_36 = arith.constant 1 : i32
    %c0_i32_37 = arith.constant 0 : i32
    %c0_i32_38 = arith.constant 0 : i32
    %55 = tpu.memref_slice %arg9[%c1_i32, %c0_i32_37, %c0_i32_38] : memref<8x128x128xf32, #tpu.memory_space<vmem>> -> memref<1x128x128xf32, #tpu.memory_space<vmem>>
    %56 = tpu.memref_squeeze %55 : memref<1x128x128xf32, #tpu.memory_space<vmem>> -> memref<128x128xf32, #tpu.memory_space<vmem>>
    %c0_i32_39 = arith.constant 0 : i32
    %c0_i32_40 = arith.constant 0 : i32
    %57 = tpu.memref_slice %arg7[%arg0, %c1_i32_35, %c0_i32_39, %c0_i32_40] : memref<2x8x128x128xf32, #tpu.memory_space<any>> -> memref<1x1x128x128xf32, #tpu.memory_space<any>>
    %58 = tpu.memref_squeeze %57 : memref<1x1x128x128xf32, #tpu.memory_space<any>> -> memref<128x128xf32, #tpu.memory_space<any>>
    %59 = tpu.memref_slice %arg10[%c1_i32_36] : memref<8x!tpu.dma_semaphore, #tpu.memory_space<semaphore_mem>> -> memref<1x!tpu.dma_semaphore, #tpu.memory_space<semaphore_mem>>
    %60 = tpu.memref_squeeze %59 : memref<1x!tpu.dma_semaphore, #tpu.memory_space<semaphore_mem>> -> memref<!tpu.dma_semaphore, #tpu.memory_space<semaphore_mem>>
    tpu.enqueue_dma source(%56 : memref<128x128xf32, #tpu.memory_space<vmem>>) target(%58 : memref<128x128xf32, #tpu.memory_space<any>>) target_semaphore(%60 : memref<!tpu.dma_semaphore, #tpu.memory_space<semaphore_mem>>)
    %61 = arith.truncf %51 : vector<128x128xf32> to vector<128x128xbf16>
    %62 = arith.truncf %40 : vector<128x16xf32> to vector<128x16xbf16>
    %cst_41 = arith.constant dense<0.000000e+00> : vector<128x16xf32>
    %63 = tpu.matmul %61, %62, %cst_41 {dimension_numbers = #tpu.dot_dimension_numbers<[1], [0], [0], [1], [0, 0, 1, 1], [], []>} : vector<128x128xbf16>, vector<128x16xbf16>, vector<128x16xf32> -> vector<128x16xf32>
    %c0_42 = arith.constant 0 : index
    %c32 = arith.constant 32 : index
    %64 = vector.load %arg8[%c0_42, %c32] : memref<128x384xf32, #tpu.memory_space<vmem>>, vector<128x16xf32>
    %cst_43 = arith.constant 2.500000e-01 : f32
    %65 = vector.broadcast %cst_43 : f32 to vector<128x16xf32>
    %66 = arith.mulf %64, %65 : vector<128x16xf32>
    %c0_44 = arith.constant 0 : index
    %c160 = arith.constant 160 : index
    %67 = vector.load %arg8[%c0_44, %c160] : memref<128x384xf32, #tpu.memory_space<vmem>>, vector<128x16xf32>
    %c0_45 = arith.constant 0 : index
    %c288 = arith.constant 288 : index
    %68 = vector.load %arg8[%c0_45, %c288] : memref<128x384xf32, #tpu.memory_space<vmem>>, vector<128x16xf32>
    %cst_46 = arith.constant dense<0.000000e+00> : vector<128x128xf32>
    %69 = tpu.matmul %66, %67, %cst_46 {dimension_numbers = #tpu.dot_dimension_numbers<[1], [1], [0], [0], [0, 0, 1, 0], [], []>} : vector<128x16xf32>, vector<128x16xf32>, vector<128x128xf32> -> vector<128x128xf32>
    %cst_47 = arith.constant dense<0xFF800000> : vector<128xf32>
    %70 = vector.multi_reduction <maximumf>, %69, %cst_47 [1] : vector<128x128xf32> to vector<128xf32>
    %71 = vector.shape_cast %70 : vector<128xf32> to vector<128x1xf32>
    %72 = vector.broadcast %71 : vector<128x1xf32> to vector<128x128xf32>
    %73 = arith.subf %69, %72 : vector<128x128xf32>
    %74 = math.exp %73 : vector<128x128xf32>
    %cst_48 = arith.constant dense<0.000000e+00> : vector<128xf32>
    %75 = vector.multi_reduction <add>, %74, %cst_48 [1] : vector<128x128xf32> to vector<128xf32>
    %76 = vector.shape_cast %75 : vector<128xf32> to vector<128x1xf32>
    %77 = tpu.reciprocal %76 {approx = true} : vector<128x1xf32> -> vector<128x1xf32>
    %78 = vector.broadcast %77 : vector<128x1xf32> to vector<128x128xf32>
    %79 = arith.mulf %74, %78 : vector<128x128xf32>
    %c2 = arith.constant 2 : index
    %c0_49 = arith.constant 0 : index
    %c0_50 = arith.constant 0 : index
    %80 = vector.load %arg9[%c2, %c0_49, %c0_50] : memref<8x128x128xf32, #tpu.memory_space<vmem>>, vector<1x128x128xf32>
    %81 = vector.shape_cast %80 : vector<1x128x128xf32> to vector<128x128xf32>
    %82 = vector.shape_cast %79 : vector<128x128xf32> to vector<1x128x128xf32>
    tpu.vector_store %arg9[%c2, %c0_49, %c0_50], %82 {strides = array<i32>} : memref<8x128x128xf32, #tpu.memory_space<vmem>>, vector<1x128x128xf32>,
    %c2_i32 = arith.constant 2 : i32
    %c2_i32_51 = arith.constant 2 : i32
    %c2_i32_52 = arith.constant 2 : i32
    %c0_i32_53 = arith.constant 0 : i32
    %c0_i32_54 = arith.constant 0 : i32
    %83 = tpu.memref_slice %arg9[%c2_i32, %c0_i32_53, %c0_i32_54] : memref<8x128x128xf32, #tpu.memory_space<vmem>> -> memref<1x128x128xf32, #tpu.memory_space<vmem>>
    %84 = tpu.memref_squeeze %83 : memref<1x128x128xf32, #tpu.memory_space<vmem>> -> memref<128x128xf32, #tpu.memory_space<vmem>>
    %c0_i32_55 = arith.constant 0 : i32
    %c0_i32_56 = arith.constant 0 : i32
    %85 = tpu.memref_slice %arg7[%arg0, %c2_i32_51, %c0_i32_55, %c0_i32_56] : memref<2x8x128x128xf32, #tpu.memory_space<any>> -> memref<1x1x128x128xf32, #tpu.memory_space<any>>
    %86 = tpu.memref_squeeze %85 : memref<1x1x128x128xf32, #tpu.memory_space<any>> -> memref<128x128xf32, #tpu.memory_space<any>>
    %87 = tpu.memref_slice %arg10[%c2_i32_52] : memref<8x!tpu.dma_semaphore, #tpu.memory_space<semaphore_mem>> -> memref<1x!tpu.dma_semaphore, #tpu.memory_space<semaphore_mem>>
    %88 = tpu.memref_squeeze %87 : memref<1x!tpu.dma_semaphore, #tpu.memory_space<semaphore_mem>> -> memref<!tpu.dma_semaphore, #tpu.memory_space<semaphore_mem>>
    tpu.enqueue_dma source(%84 : memref<128x128xf32, #tpu.memory_space<vmem>>) target(%86 : memref<128x128xf32, #tpu.memory_space<any>>) target_semaphore(%88 : memref<!tpu.dma_semaphore, #tpu.memory_space<semaphore_mem>>)
    %89 = arith.truncf %79 : vector<128x128xf32> to vector<128x128xbf16>
    %90 = arith.truncf %68 : vector<128x16xf32> to vector<128x16xbf16>
    %cst_57 = arith.constant dense<0.000000e+00> : vector<128x16xf32>
    %91 = tpu.matmul %89, %90, %cst_57 {dimension_numbers = #tpu.dot_dimension_numbers<[1], [0], [0], [1], [0, 0, 1, 1], [], []>} : vector<128x128xbf16>, vector<128x16xbf16>, vector<128x16xf32> -> vector<128x16xf32>
    %c0_58 = arith.constant 0 : index
    %c48 = arith.constant 48 : index
    %92 = vector.load %arg8[%c0_58, %c48] : memref<128x384xf32, #tpu.memory_space<vmem>>, vector<128x16xf32>
    %cst_59 = arith.constant 2.500000e-01 : f32
    %93 = vector.broadcast %cst_59 : f32 to vector<128x16xf32>
    %94 = arith.mulf %92, %93 : vector<128x16xf32>
    %c0_60 = arith.constant 0 : index
    %c176 = arith.constant 176 : index
    %95 = vector.load %arg8[%c0_60, %c176] : memref<128x384xf32, #tpu.memory_space<vmem>>, vector<128x16xf32>
    %c0_61 = arith.constant 0 : index
    %c304 = arith.constant 304 : index
    %96 = vector.load %arg8[%c0_61, %c304] : memref<128x384xf32, #tpu.memory_space<vmem>>, vector<128x16xf32>
    %cst_62 = arith.constant dense<0.000000e+00> : vector<128x128xf32>
    %97 = tpu.matmul %94, %95, %cst_62 {dimension_numbers = #tpu.dot_dimension_numbers<[1], [1], [0], [0], [0, 0, 1, 0], [], []>} : vector<128x16xf32>, vector<128x16xf32>, vector<128x128xf32> -> vector<128x128xf32>
    %cst_63 = arith.constant dense<0xFF800000> : vector<128xf32>
    %98 = vector.multi_reduction <maximumf>, %97, %cst_63 [1] : vector<128x128xf32> to vector<128xf32>
    %99 = vector.shape_cast %98 : vector<128xf32> to vector<128x1xf32>
    %100 = vector.broadcast %99 : vector<128x1xf32> to vector<128x128xf32>
    %101 = arith.subf %97, %100 : vector<128x128xf32>
    %102 = math.exp %101 : vector<128x128xf32>
    %cst_64 = arith.constant dense<0.000000e+00> : vector<128xf32>
    %103 = vector.multi_reduction <add>, %102, %cst_64 [1] : vector<128x128xf32> to vector<128xf32>
    %104 = vector.shape_cast %103 : vector<128xf32> to vector<128x1xf32>
    %105 = tpu.reciprocal %104 {approx = true} : vector<128x1xf32> -> vector<128x1xf32>
    %106 = vector.broadcast %105 : vector<128x1xf32> to vector<128x128xf32>
    %107 = arith.mulf %102, %106 : vector<128x128xf32>
    %c3 = arith.constant 3 : index
    %c0_65 = arith.constant 0 : index
    %c0_66 = arith.constant 0 : index
    %108 = vector.load %arg9[%c3, %c0_65, %c0_66] : memref<8x128x128xf32, #tpu.memory_space<vmem>>, vector<1x128x128xf32>
    %109 = vector.shape_cast %108 : vector<1x128x128xf32> to vector<128x128xf32>
    %110 = vector.shape_cast %107 : vector<128x128xf32> to vector<1x128x128xf32>
    tpu.vector_store %arg9[%c3, %c0_65, %c0_66], %110 {strides = array<i32>} : memref<8x128x128xf32, #tpu.memory_space<vmem>>, vector<1x128x128xf32>,
    %c3_i32 = arith.constant 3 : i32
    %c3_i32_67 = arith.constant 3 : i32
    %c3_i32_68 = arith.constant 3 : i32
    %c0_i32_69 = arith.constant 0 : i32
    %c0_i32_70 = arith.constant 0 : i32
    %111 = tpu.memref_slice %arg9[%c3_i32, %c0_i32_69, %c0_i32_70] : memref<8x128x128xf32, #tpu.memory_space<vmem>> -> memref<1x128x128xf32, #tpu.memory_space<vmem>>
    %112 = tpu.memref_squeeze %111 : memref<1x128x128xf32, #tpu.memory_space<vmem>> -> memref<128x128xf32, #tpu.memory_space<vmem>>
    %c0_i32_71 = arith.constant 0 : i32
    %c0_i32_72 = arith.constant 0 : i32
    %113 = tpu.memref_slice %arg7[%arg0, %c3_i32_67, %c0_i32_71, %c0_i32_72] : memref<2x8x128x128xf32, #tpu.memory_space<any>> -> memref<1x1x128x128xf32, #tpu.memory_space<any>>
    %114 = tpu.memref_squeeze %113 : memref<1x1x128x128xf32, #tpu.memory_space<any>> -> memref<128x128xf32, #tpu.memory_space<any>>
    %115 = tpu.memref_slice %arg10[%c3_i32_68] : memref<8x!tpu.dma_semaphore, #tpu.memory_space<semaphore_mem>> -> memref<1x!tpu.dma_semaphore, #tpu.memory_space<semaphore_mem>>
    %116 = tpu.memref_squeeze %115 : memref<1x!tpu.dma_semaphore, #tpu.memory_space<semaphore_mem>> -> memref<!tpu.dma_semaphore, #tpu.memory_space<semaphore_mem>>
    tpu.enqueue_dma source(%112 : memref<128x128xf32, #tpu.memory_space<vmem>>) target(%114 : memref<128x128xf32, #tpu.memory_space<any>>) target_semaphore(%116 : memref<!tpu.dma_semaphore, #tpu.memory_space<semaphore_mem>>)
    %117 = arith.truncf %107 : vector<128x128xf32> to vector<128x128xbf16>
    %118 = arith.truncf %96 : vector<128x16xf32> to vector<128x16xbf16>
    %cst_73 = arith.constant dense<0.000000e+00> : vector<128x16xf32>
    %119 = tpu.matmul %117, %118, %cst_73 {dimension_numbers = #tpu.dot_dimension_numbers<[1], [0], [0], [1], [0, 0, 1, 1], [], []>} : vector<128x128xbf16>, vector<128x16xbf16>, vector<128x16xf32> -> vector<128x16xf32>
    %c0_74 = arith.constant 0 : index
    %c64 = arith.constant 64 : index
    %120 = vector.load %arg8[%c0_74, %c64] : memref<128x384xf32, #tpu.memory_space<vmem>>, vector<128x16xf32>
    %cst_75 = arith.constant 2.500000e-01 : f32
    %121 = vector.broadcast %cst_75 : f32 to vector<128x16xf32>
    %122 = arith.mulf %120, %121 : vector<128x16xf32>
    %c0_76 = arith.constant 0 : index
    %c192 = arith.constant 192 : index
    %123 = vector.load %arg8[%c0_76, %c192] : memref<128x384xf32, #tpu.memory_space<vmem>>, vector<128x16xf32>
    %c0_77 = arith.constant 0 : index
    %c320 = arith.constant 320 : index
    %124 = vector.load %arg8[%c0_77, %c320] : memref<128x384xf32, #tpu.memory_space<vmem>>, vector<128x16xf32>
    %cst_78 = arith.constant dense<0.000000e+00> : vector<128x128xf32>
    %125 = tpu.matmul %122, %123, %cst_78 {dimension_numbers = #tpu.dot_dimension_numbers<[1], [1], [0], [0], [0, 0, 1, 0], [], []>} : vector<128x16xf32>, vector<128x16xf32>, vector<128x128xf32> -> vector<128x128xf32>
    %cst_79 = arith.constant dense<0xFF800000> : vector<128xf32>
    %126 = vector.multi_reduction <maximumf>, %125, %cst_79 [1] : vector<128x128xf32> to vector<128xf32>
    %127 = vector.shape_cast %126 : vector<128xf32> to vector<128x1xf32>
    %128 = vector.broadcast %127 : vector<128x1xf32> to vector<128x128xf32>
    %129 = arith.subf %125, %128 : vector<128x128xf32>
    %130 = math.exp %129 : vector<128x128xf32>
    %cst_80 = arith.constant dense<0.000000e+00> : vector<128xf32>
    %131 = vector.multi_reduction <add>, %130, %cst_80 [1] : vector<128x128xf32> to vector<128xf32>
    %132 = vector.shape_cast %131 : vector<128xf32> to vector<128x1xf32>
    %133 = tpu.reciprocal %132 {approx = true} : vector<128x1xf32> -> vector<128x1xf32>
    %134 = vector.broadcast %133 : vector<128x1xf32> to vector<128x128xf32>
    %135 = arith.mulf %130, %134 : vector<128x128xf32>
    %c4 = arith.constant 4 : index
    %c0_81 = arith.constant 0 : index
    %c0_82 = arith.constant 0 : index
    %136 = vector.load %arg9[%c4, %c0_81, %c0_82] : memref<8x128x128xf32, #tpu.memory_space<vmem>>, vector<1x128x128xf32>
    %137 = vector.shape_cast %136 : vector<1x128x128xf32> to vector<128x128xf32>
    %138 = vector.shape_cast %135 : vector<128x128xf32> to vector<1x128x128xf32>
    tpu.vector_store %arg9[%c4, %c0_81, %c0_82], %138 {strides = array<i32>} : memref<8x128x128xf32, #tpu.memory_space<vmem>>, vector<1x128x128xf32>,
    %c4_i32 = arith.constant 4 : i32
    %c4_i32_83 = arith.constant 4 : i32
    %c4_i32_84 = arith.constant 4 : i32
    %c0_i32_85 = arith.constant 0 : i32
    %c0_i32_86 = arith.constant 0 : i32
    %139 = tpu.memref_slice %arg9[%c4_i32, %c0_i32_85, %c0_i32_86] : memref<8x128x128xf32, #tpu.memory_space<vmem>> -> memref<1x128x128xf32, #tpu.memory_space<vmem>>
    %140 = tpu.memref_squeeze %139 : memref<1x128x128xf32, #tpu.memory_space<vmem>> -> memref<128x128xf32, #tpu.memory_space<vmem>>
    %c0_i32_87 = arith.constant 0 : i32
    %c0_i32_88 = arith.constant 0 : i32
    %141 = tpu.memref_slice %arg7[%arg0, %c4_i32_83, %c0_i32_87, %c0_i32_88] : memref<2x8x128x128xf32, #tpu.memory_space<any>> -> memref<1x1x128x128xf32, #tpu.memory_space<any>>
    %142 = tpu.memref_squeeze %141 : memref<1x1x128x128xf32, #tpu.memory_space<any>> -> memref<128x128xf32, #tpu.memory_space<any>>
    %143 = tpu.memref_slice %arg10[%c4_i32_84] : memref<8x!tpu.dma_semaphore, #tpu.memory_space<semaphore_mem>> -> memref<1x!tpu.dma_semaphore, #tpu.memory_space<semaphore_mem>>
    %144 = tpu.memref_squeeze %143 : memref<1x!tpu.dma_semaphore, #tpu.memory_space<semaphore_mem>> -> memref<!tpu.dma_semaphore, #tpu.memory_space<semaphore_mem>>
    tpu.enqueue_dma source(%140 : memref<128x128xf32, #tpu.memory_space<vmem>>) target(%142 : memref<128x128xf32, #tpu.memory_space<any>>) target_semaphore(%144 : memref<!tpu.dma_semaphore, #tpu.memory_space<semaphore_mem>>)
    %145 = arith.truncf %135 : vector<128x128xf32> to vector<128x128xbf16>
    %146 = arith.truncf %124 : vector<128x16xf32> to vector<128x16xbf16>
    %cst_89 = arith.constant dense<0.000000e+00> : vector<128x16xf32>
    %147 = tpu.matmul %145, %146, %cst_89 {dimension_numbers = #tpu.dot_dimension_numbers<[1], [0], [0], [1], [0, 0, 1, 1], [], []>} : vector<128x128xbf16>, vector<128x16xbf16>, vector<128x16xf32> -> vector<128x16xf32>
    %c0_90 = arith.constant 0 : index
    %c80 = arith.constant 80 : index
    %148 = vector.load %arg8[%c0_90, %c80] : memref<128x384xf32, #tpu.memory_space<vmem>>, vector<128x16xf32>
    %cst_91 = arith.constant 2.500000e-01 : f32
    %149 = vector.broadcast %cst_91 : f32 to vector<128x16xf32>
    %150 = arith.mulf %148, %149 : vector<128x16xf32>
    %c0_92 = arith.constant 0 : index
    %c208 = arith.constant 208 : index
    %151 = vector.load %arg8[%c0_92, %c208] : memref<128x384xf32, #tpu.memory_space<vmem>>, vector<128x16xf32>
    %c0_93 = arith.constant 0 : index
    %c336 = arith.constant 336 : index
    %152 = vector.load %arg8[%c0_93, %c336] : memref<128x384xf32, #tpu.memory_space<vmem>>, vector<128x16xf32>
    %cst_94 = arith.constant dense<0.000000e+00> : vector<128x128xf32>
    %153 = tpu.matmul %150, %151, %cst_94 {dimension_numbers = #tpu.dot_dimension_numbers<[1], [1], [0], [0], [0, 0, 1, 0], [], []>} : vector<128x16xf32>, vector<128x16xf32>, vector<128x128xf32> -> vector<128x128xf32>
    %cst_95 = arith.constant dense<0xFF800000> : vector<128xf32>
    %154 = vector.multi_reduction <maximumf>, %153, %cst_95 [1] : vector<128x128xf32> to vector<128xf32>
    %155 = vector.shape_cast %154 : vector<128xf32> to vector<128x1xf32>
    %156 = vector.broadcast %155 : vector<128x1xf32> to vector<128x128xf32>
    %157 = arith.subf %153, %156 : vector<128x128xf32>
    %158 = math.exp %157 : vector<128x128xf32>
    %cst_96 = arith.constant dense<0.000000e+00> : vector<128xf32>
    %159 = vector.multi_reduction <add>, %158, %cst_96 [1] : vector<128x128xf32> to vector<128xf32>
    %160 = vector.shape_cast %159 : vector<128xf32> to vector<128x1xf32>
    %161 = tpu.reciprocal %160 {approx = true} : vector<128x1xf32> -> vector<128x1xf32>
    %162 = vector.broadcast %161 : vector<128x1xf32> to vector<128x128xf32>
    %163 = arith.mulf %158, %162 : vector<128x128xf32>
    %c5 = arith.constant 5 : index
    %c0_97 = arith.constant 0 : index
    %c0_98 = arith.constant 0 : index
    %164 = vector.load %arg9[%c5, %c0_97, %c0_98] : memref<8x128x128xf32, #tpu.memory_space<vmem>>, vector<1x128x128xf32>
    %165 = vector.shape_cast %164 : vector<1x128x128xf32> to vector<128x128xf32>
    %166 = vector.shape_cast %163 : vector<128x128xf32> to vector<1x128x128xf32>
    tpu.vector_store %arg9[%c5, %c0_97, %c0_98], %166 {strides = array<i32>} : memref<8x128x128xf32, #tpu.memory_space<vmem>>, vector<1x128x128xf32>,
    %c5_i32 = arith.constant 5 : i32
    %c5_i32_99 = arith.constant 5 : i32
    %c5_i32_100 = arith.constant 5 : i32
    %c0_i32_101 = arith.constant 0 : i32
    %c0_i32_102 = arith.constant 0 : i32
    %167 = tpu.memref_slice %arg9[%c5_i32, %c0_i32_101, %c0_i32_102] : memref<8x128x128xf32, #tpu.memory_space<vmem>> -> memref<1x128x128xf32, #tpu.memory_space<vmem>>
    %168 = tpu.memref_squeeze %167 : memref<1x128x128xf32, #tpu.memory_space<vmem>> -> memref<128x128xf32, #tpu.memory_space<vmem>>
    %c0_i32_103 = arith.constant 0 : i32
    %c0_i32_104 = arith.constant 0 : i32
    %169 = tpu.memref_slice %arg7[%arg0, %c5_i32_99, %c0_i32_103, %c0_i32_104] : memref<2x8x128x128xf32, #tpu.memory_space<any>> -> memref<1x1x128x128xf32, #tpu.memory_space<any>>
    %170 = tpu.memref_squeeze %169 : memref<1x1x128x128xf32, #tpu.memory_space<any>> -> memref<128x128xf32, #tpu.memory_space<any>>
    %171 = tpu.memref_slice %arg10[%c5_i32_100] : memref<8x!tpu.dma_semaphore, #tpu.memory_space<semaphore_mem>> -> memref<1x!tpu.dma_semaphore, #tpu.memory_space<semaphore_mem>>
    %172 = tpu.memref_squeeze %171 : memref<1x!tpu.dma_semaphore, #tpu.memory_space<semaphore_mem>> -> memref<!tpu.dma_semaphore, #tpu.memory_space<semaphore_mem>>
    tpu.enqueue_dma source(%168 : memref<128x128xf32, #tpu.memory_space<vmem>>) target(%170 : memref<128x128xf32, #tpu.memory_space<any>>) target_semaphore(%172 : memref<!tpu.dma_semaphore, #tpu.memory_space<semaphore_mem>>)
    %173 = arith.truncf %163 : vector<128x128xf32> to vector<128x128xbf16>
    %174 = arith.truncf %152 : vector<128x16xf32> to vector<128x16xbf16>
    %cst_105 = arith.constant dense<0.000000e+00> : vector<128x16xf32>
    %175 = tpu.matmul %173, %174, %cst_105 {dimension_numbers = #tpu.dot_dimension_numbers<[1], [0], [0], [1], [0, 0, 1, 1], [], []>} : vector<128x128xbf16>, vector<128x16xbf16>, vector<128x16xf32> -> vector<128x16xf32>
    %c0_106 = arith.constant 0 : index
    %c96 = arith.constant 96 : index
    %176 = vector.load %arg8[%c0_106, %c96] : memref<128x384xf32, #tpu.memory_space<vmem>>, vector<128x16xf32>
    %cst_107 = arith.constant 2.500000e-01 : f32
    %177 = vector.broadcast %cst_107 : f32 to vector<128x16xf32>
    %178 = arith.mulf %176, %177 : vector<128x16xf32>
    %c0_108 = arith.constant 0 : index
    %c224 = arith.constant 224 : index
    %179 = vector.load %arg8[%c0_108, %c224] : memref<128x384xf32, #tpu.memory_space<vmem>>, vector<128x16xf32>
    %c0_109 = arith.constant 0 : index
    %c352 = arith.constant 352 : index
    %180 = vector.load %arg8[%c0_109, %c352] : memref<128x384xf32, #tpu.memory_space<vmem>>, vector<128x16xf32>
    %cst_110 = arith.constant dense<0.000000e+00> : vector<128x128xf32>
    %181 = tpu.matmul %178, %179, %cst_110 {dimension_numbers = #tpu.dot_dimension_numbers<[1], [1], [0], [0], [0, 0, 1, 0], [], []>} : vector<128x16xf32>, vector<128x16xf32>, vector<128x128xf32> -> vector<128x128xf32>
    %cst_111 = arith.constant dense<0xFF800000> : vector<128xf32>
    %182 = vector.multi_reduction <maximumf>, %181, %cst_111 [1] : vector<128x128xf32> to vector<128xf32>
    %183 = vector.shape_cast %182 : vector<128xf32> to vector<128x1xf32>
    %184 = vector.broadcast %183 : vector<128x1xf32> to vector<128x128xf32>
    %185 = arith.subf %181, %184 : vector<128x128xf32>
    %186 = math.exp %185 : vector<128x128xf32>
    %cst_112 = arith.constant dense<0.000000e+00> : vector<128xf32>
    %187 = vector.multi_reduction <add>, %186, %cst_112 [1] : vector<128x128xf32> to vector<128xf32>
    %188 = vector.shape_cast %187 : vector<128xf32> to vector<128x1xf32>
    %189 = tpu.reciprocal %188 {approx = true} : vector<128x1xf32> -> vector<128x1xf32>
    %190 = vector.broadcast %189 : vector<128x1xf32> to vector<128x128xf32>
    %191 = arith.mulf %186, %190 : vector<128x128xf32>
    %c6 = arith.constant 6 : index
    %c0_113 = arith.constant 0 : index
    %c0_114 = arith.constant 0 : index
    %192 = vector.load %arg9[%c6, %c0_113, %c0_114] : memref<8x128x128xf32, #tpu.memory_space<vmem>>, vector<1x128x128xf32>
    %193 = vector.shape_cast %192 : vector<1x128x128xf32> to vector<128x128xf32>
    %194 = vector.shape_cast %191 : vector<128x128xf32> to vector<1x128x128xf32>
    tpu.vector_store %arg9[%c6, %c0_113, %c0_114], %194 {strides = array<i32>} : memref<8x128x128xf32, #tpu.memory_space<vmem>>, vector<1x128x128xf32>,
    %c6_i32 = arith.constant 6 : i32
    %c6_i32_115 = arith.constant 6 : i32
    %c6_i32_116 = arith.constant 6 : i32
    %c0_i32_117 = arith.constant 0 : i32
    %c0_i32_118 = arith.constant 0 : i32
    %195 = tpu.memref_slice %arg9[%c6_i32, %c0_i32_117, %c0_i32_118] : memref<8x128x128xf32, #tpu.memory_space<vmem>> -> memref<1x128x128xf32, #tpu.memory_space<vmem>>
    %196 = tpu.memref_squeeze %195 : memref<1x128x128xf32, #tpu.memory_space<vmem>> -> memref<128x128xf32, #tpu.memory_space<vmem>>
    %c0_i32_119 = arith.constant 0 : i32
    %c0_i32_120 = arith.constant 0 : i32
    %197 = tpu.memref_slice %arg7[%arg0, %c6_i32_115, %c0_i32_119, %c0_i32_120] : memref<2x8x128x128xf32, #tpu.memory_space<any>> -> memref<1x1x128x128xf32, #tpu.memory_space<any>>
    %198 = tpu.memref_squeeze %197 : memref<1x1x128x128xf32, #tpu.memory_space<any>> -> memref<128x128xf32, #tpu.memory_space<any>>
    %199 = tpu.memref_slice %arg10[%c6_i32_116] : memref<8x!tpu.dma_semaphore, #tpu.memory_space<semaphore_mem>> -> memref<1x!tpu.dma_semaphore, #tpu.memory_space<semaphore_mem>>
    %200 = tpu.memref_squeeze %199 : memref<1x!tpu.dma_semaphore, #tpu.memory_space<semaphore_mem>> -> memref<!tpu.dma_semaphore, #tpu.memory_space<semaphore_mem>>
    tpu.enqueue_dma source(%196 : memref<128x128xf32, #tpu.memory_space<vmem>>) target(%198 : memref<128x128xf32, #tpu.memory_space<any>>) target_semaphore(%200 : memref<!tpu.dma_semaphore, #tpu.memory_space<semaphore_mem>>)
    %201 = arith.truncf %191 : vector<128x128xf32> to vector<128x128xbf16>
    %202 = arith.truncf %180 : vector<128x16xf32> to vector<128x16xbf16>
    %cst_121 = arith.constant dense<0.000000e+00> : vector<128x16xf32>
    %203 = tpu.matmul %201, %202, %cst_121 {dimension_numbers = #tpu.dot_dimension_numbers<[1], [0], [0], [1], [0, 0, 1, 1], [], []>} : vector<128x128xbf16>, vector<128x16xbf16>, vector<128x16xf32> -> vector<128x16xf32>
    %c0_122 = arith.constant 0 : index
    %c112 = arith.constant 112 : index
    %204 = vector.load %arg8[%c0_122, %c112] : memref<128x384xf32, #tpu.memory_space<vmem>>, vector<128x16xf32>
    %cst_123 = arith.constant 2.500000e-01 : f32
    %205 = vector.broadcast %cst_123 : f32 to vector<128x16xf32>
    %206 = arith.mulf %204, %205 : vector<128x16xf32>
    %c0_124 = arith.constant 0 : index
    %c240 = arith.constant 240 : index
    %207 = vector.load %arg8[%c0_124, %c240] : memref<128x384xf32, #tpu.memory_space<vmem>>, vector<128x16xf32>
    %c0_125 = arith.constant 0 : index
    %c368 = arith.constant 368 : index
    %208 = vector.load %arg8[%c0_125, %c368] : memref<128x384xf32, #tpu.memory_space<vmem>>, vector<128x16xf32>
    %cst_126 = arith.constant dense<0.000000e+00> : vector<128x128xf32>
    %209 = tpu.matmul %206, %207, %cst_126 {dimension_numbers = #tpu.dot_dimension_numbers<[1], [1], [0], [0], [0, 0, 1, 0], [], []>} : vector<128x16xf32>, vector<128x16xf32>, vector<128x128xf32> -> vector<128x128xf32>
    %cst_127 = arith.constant dense<0xFF800000> : vector<128xf32>
    %210 = vector.multi_reduction <maximumf>, %209, %cst_127 [1] : vector<128x128xf32> to vector<128xf32>
    %211 = vector.shape_cast %210 : vector<128xf32> to vector<128x1xf32>
    %212 = vector.broadcast %211 : vector<128x1xf32> to vector<128x128xf32>
    %213 = arith.subf %209, %212 : vector<128x128xf32>
    %214 = math.exp %213 : vector<128x128xf32>
    %cst_128 = arith.constant dense<0.000000e+00> : vector<128xf32>
    %215 = vector.multi_reduction <add>, %214, %cst_128 [1] : vector<128x128xf32> to vector<128xf32>
    %216 = vector.shape_cast %215 : vector<128xf32> to vector<128x1xf32>
    %217 = tpu.reciprocal %216 {approx = true} : vector<128x1xf32> -> vector<128x1xf32>
    %218 = vector.broadcast %217 : vector<128x1xf32> to vector<128x128xf32>
    %219 = arith.mulf %214, %218 : vector<128x128xf32>
    %c7 = arith.constant 7 : index
    %c0_129 = arith.constant 0 : index
    %c0_130 = arith.constant 0 : index
    %220 = vector.load %arg9[%c7, %c0_129, %c0_130] : memref<8x128x128xf32, #tpu.memory_space<vmem>>, vector<1x128x128xf32>
    %221 = vector.shape_cast %220 : vector<1x128x128xf32> to vector<128x128xf32>
    %222 = vector.shape_cast %219 : vector<128x128xf32> to vector<1x128x128xf32>
    tpu.vector_store %arg9[%c7, %c0_129, %c0_130], %222 {strides = array<i32>} : memref<8x128x128xf32, #tpu.memory_space<vmem>>, vector<1x128x128xf32>,
    %c7_i32 = arith.constant 7 : i32
    %c7_i32_131 = arith.constant 7 : i32
    %c7_i32_132 = arith.constant 7 : i32
    %c0_i32_133 = arith.constant 0 : i32
    %c0_i32_134 = arith.constant 0 : i32
    %223 = tpu.memref_slice %arg9[%c7_i32, %c0_i32_133, %c0_i32_134] : memref<8x128x128xf32, #tpu.memory_space<vmem>> -> memref<1x128x128xf32, #tpu.memory_space<vmem>>
    %224 = tpu.memref_squeeze %223 : memref<1x128x128xf32, #tpu.memory_space<vmem>> -> memref<128x128xf32, #tpu.memory_space<vmem>>
    %c0_i32_135 = arith.constant 0 : i32
    %c0_i32_136 = arith.constant 0 : i32
    %225 = tpu.memref_slice %arg7[%arg0, %c7_i32_131, %c0_i32_135, %c0_i32_136] : memref<2x8x128x128xf32, #tpu.memory_space<any>> -> memref<1x1x128x128xf32, #tpu.memory_space<any>>
    %226 = tpu.memref_squeeze %225 : memref<1x1x128x128xf32, #tpu.memory_space<any>> -> memref<128x128xf32, #tpu.memory_space<any>>
    %227 = tpu.memref_slice %arg10[%c7_i32_132] : memref<8x!tpu.dma_semaphore, #tpu.memory_space<semaphore_mem>> -> memref<1x!tpu.dma_semaphore, #tpu.memory_space<semaphore_mem>>
    %228 = tpu.memref_squeeze %227 : memref<1x!tpu.dma_semaphore, #tpu.memory_space<semaphore_mem>> -> memref<!tpu.dma_semaphore, #tpu.memory_space<semaphore_mem>>
    tpu.enqueue_dma source(%224 : memref<128x128xf32, #tpu.memory_space<vmem>>) target(%226 : memref<128x128xf32, #tpu.memory_space<any>>) target_semaphore(%228 : memref<!tpu.dma_semaphore, #tpu.memory_space<semaphore_mem>>)
    %229 = arith.truncf %219 : vector<128x128xf32> to vector<128x128xbf16>
    %230 = arith.truncf %208 : vector<128x16xf32> to vector<128x16xbf16>
    %cst_137 = arith.constant dense<0.000000e+00> : vector<128x16xf32>
    %231 = tpu.matmul %229, %230, %cst_137 {dimension_numbers = #tpu.dot_dimension_numbers<[1], [0], [0], [1], [0, 0, 1, 1], [], []>} : vector<128x128xbf16>, vector<128x16xbf16>, vector<128x16xf32> -> vector<128x16xf32>
    %232 = tpu.concatenate %35, %63, %91, %119, %147, %175, %203, %231 in 1 : vector<128x16xf32>, vector<128x16xf32>, vector<128x16xf32>, vector<128x16xf32>, vector<128x16xf32>, vector<128x16xf32>, vector<128x16xf32>, vector<128x16xf32> -> vector<128x128xf32>
    %233 = arith.truncf %232 : vector<128x128xf32> to vector<128x128xbf16>
    %c0_138 = arith.constant 0 : index
    %c0_139 = arith.constant 0 : index
    %234 = vector.load %arg4[%c0_138, %c0_139] : memref<128x128xf32, #tpu.memory_space<vmem>>, vector<128x128xf32>
    %235 = arith.truncf %234 : vector<128x128xf32> to vector<128x128xbf16>
    %cst_140 = arith.constant dense<0.000000e+00> : vector<128x128xf32>
    %236 = tpu.matmul %233, %235, %cst_140 {dimension_numbers = #tpu.dot_dimension_numbers<[1], [0], [0], [1], [0, 0, 1, 1], [], []>} : vector<128x128xbf16>, vector<128x128xbf16>, vector<128x128xf32> -> vector<128x128xf32>
    %c0_141 = arith.constant 0 : index
    %c0_142 = arith.constant 0 : index
    %237 = vector.load %arg5[%c0_141, %c0_142] : memref<1x128xf32, #tpu.memory_space<vmem>>, vector<1x128xf32>
    %238 = vector.broadcast %237 : vector<1x128xf32> to vector<128x128xf32>
    %239 = arith.addf %236, %238 : vector<128x128xf32>
    %c0_143 = arith.constant 0 : index
    %c0_144 = arith.constant 0 : index
    %c0_145 = arith.constant 0 : index
    %240 = vector.load %arg6[%c0_143, %c0_144, %c0_145] : memref<1x128x128xf32, #tpu.memory_space<vmem>>, vector<1x128x128xf32>
    %241 = vector.shape_cast %240 : vector<1x128x128xf32> to vector<128x128xf32>
    %242 = vector.shape_cast %239 : vector<128x128xf32> to vector<1x128x128xf32>
    tpu.vector_store %arg6[%c0_143, %c0_144, %c0_145], %242 {strides = array<i32>} : memref<1x128x128xf32, #tpu.memory_space<vmem>>, vector<1x128x128xf32>,
    %c0_i32_146 = arith.constant 0 : i32
    %c0_i32_147 = arith.constant 0 : i32
    %c0_i32_148 = arith.constant 0 : i32
    %c0_i32_149 = arith.constant 0 : i32
    %c0_i32_150 = arith.constant 0 : i32
    %243 = tpu.memref_slice %arg9[%c0_i32_146, %c0_i32_149, %c0_i32_150] : memref<8x128x128xf32, #tpu.memory_space<vmem>> -> memref<1x128x128xf32, #tpu.memory_space<vmem>>
    %244 = tpu.memref_squeeze %243 : memref<1x128x128xf32, #tpu.memory_space<vmem>> -> memref<128x128xf32, #tpu.memory_space<vmem>>
    %c0_i32_151 = arith.constant 0 : i32
    %c0_i32_152 = arith.constant 0 : i32
    %245 = tpu.memref_slice %arg7[%arg0, %c0_i32_147, %c0_i32_151, %c0_i32_152] : memref<2x8x128x128xf32, #tpu.memory_space<any>> -> memref<1x1x128x128xf32, #tpu.memory_space<any>>
    %246 = tpu.memref_squeeze %245 : memref<1x1x128x128xf32, #tpu.memory_space<any>> -> memref<128x128xf32, #tpu.memory_space<any>>
    %247 = tpu.memref_slice %arg10[%c0_i32_148] : memref<8x!tpu.dma_semaphore, #tpu.memory_space<semaphore_mem>> -> memref<1x!tpu.dma_semaphore, #tpu.memory_space<semaphore_mem>>
    %248 = tpu.memref_squeeze %247 : memref<1x!tpu.dma_semaphore, #tpu.memory_space<semaphore_mem>> -> memref<!tpu.dma_semaphore, #tpu.memory_space<semaphore_mem>>
    tpu.wait_dma2 semaphore(%248 : memref<!tpu.dma_semaphore, #tpu.memory_space<semaphore_mem>>) src(%244 : memref<128x128xf32, #tpu.memory_space<vmem>>) dst(%246 : memref<128x128xf32, #tpu.memory_space<any>>)
    %c1_i32_153 = arith.constant 1 : i32
    %c1_i32_154 = arith.constant 1 : i32
    %c1_i32_155 = arith.constant 1 : i32
    %c0_i32_156 = arith.constant 0 : i32
    %c0_i32_157 = arith.constant 0 : i32
    %249 = tpu.memref_slice %arg9[%c1_i32_153, %c0_i32_156, %c0_i32_157] : memref<8x128x128xf32, #tpu.memory_space<vmem>> -> memref<1x128x128xf32, #tpu.memory_space<vmem>>
    %250 = tpu.memref_squeeze %249 : memref<1x128x128xf32, #tpu.memory_space<vmem>> -> memref<128x128xf32, #tpu.memory_space<vmem>>
    %c0_i32_158 = arith.constant 0 : i32
    %c0_i32_159 = arith.constant 0 : i32
    %251 = tpu.memref_slice %arg7[%arg0, %c1_i32_154, %c0_i32_158, %c0_i32_159] : memref<2x8x128x128xf32, #tpu.memory_space<any>> -> memref<1x1x128x128xf32, #tpu.memory_space<any>>
    %252 = tpu.memref_squeeze %251 : memref<1x1x128x128xf32, #tpu.memory_space<any>> -> memref<128x128xf32, #tpu.memory_space<any>>
    %253 = tpu.memref_slice %arg10[%c1_i32_155] : memref<8x!tpu.dma_semaphore, #tpu.memory_space<semaphore_mem>> -> memref<1x!tpu.dma_semaphore, #tpu.memory_space<semaphore_mem>>
    %254 = tpu.memref_squeeze %253 : memref<1x!tpu.dma_semaphore, #tpu.memory_space<semaphore_mem>> -> memref<!tpu.dma_semaphore, #tpu.memory_space<semaphore_mem>>
    tpu.wait_dma2 semaphore(%254 : memref<!tpu.dma_semaphore, #tpu.memory_space<semaphore_mem>>) src(%250 : memref<128x128xf32, #tpu.memory_space<vmem>>) dst(%252 : memref<128x128xf32, #tpu.memory_space<any>>)
    %c2_i32_160 = arith.constant 2 : i32
    %c2_i32_161 = arith.constant 2 : i32
    %c2_i32_162 = arith.constant 2 : i32
    %c0_i32_163 = arith.constant 0 : i32
    %c0_i32_164 = arith.constant 0 : i32
    %255 = tpu.memref_slice %arg9[%c2_i32_160, %c0_i32_163, %c0_i32_164] : memref<8x128x128xf32, #tpu.memory_space<vmem>> -> memref<1x128x128xf32, #tpu.memory_space<vmem>>
    %256 = tpu.memref_squeeze %255 : memref<1x128x128xf32, #tpu.memory_space<vmem>> -> memref<128x128xf32, #tpu.memory_space<vmem>>
    %c0_i32_165 = arith.constant 0 : i32
    %c0_i32_166 = arith.constant 0 : i32
    %257 = tpu.memref_slice %arg7[%arg0, %c2_i32_161, %c0_i32_165, %c0_i32_166] : memref<2x8x128x128xf32, #tpu.memory_space<any>> -> memref<1x1x128x128xf32, #tpu.memory_space<any>>
    %258 = tpu.memref_squeeze %257 : memref<1x1x128x128xf32, #tpu.memory_space<any>> -> memref<128x128xf32, #tpu.memory_space<any>>
    %259 = tpu.memref_slice %arg10[%c2_i32_162] : memref<8x!tpu.dma_semaphore, #tpu.memory_space<semaphore_mem>> -> memref<1x!tpu.dma_semaphore, #tpu.memory_space<semaphore_mem>>
    %260 = tpu.memref_squeeze %259 : memref<1x!tpu.dma_semaphore, #tpu.memory_space<semaphore_mem>> -> memref<!tpu.dma_semaphore, #tpu.memory_space<semaphore_mem>>
    tpu.wait_dma2 semaphore(%260 : memref<!tpu.dma_semaphore, #tpu.memory_space<semaphore_mem>>) src(%256 : memref<128x128xf32, #tpu.memory_space<vmem>>) dst(%258 : memref<128x128xf32, #tpu.memory_space<any>>)
    %c3_i32_167 = arith.constant 3 : i32
    %c3_i32_168 = arith.constant 3 : i32
    %c3_i32_169 = arith.constant 3 : i32
    %c0_i32_170 = arith.constant 0 : i32
    %c0_i32_171 = arith.constant 0 : i32
    %261 = tpu.memref_slice %arg9[%c3_i32_167, %c0_i32_170, %c0_i32_171] : memref<8x128x128xf32, #tpu.memory_space<vmem>> -> memref<1x128x128xf32, #tpu.memory_space<vmem>>
    %262 = tpu.memref_squeeze %261 : memref<1x128x128xf32, #tpu.memory_space<vmem>> -> memref<128x128xf32, #tpu.memory_space<vmem>>
    %c0_i32_172 = arith.constant 0 : i32
    %c0_i32_173 = arith.constant 0 : i32
    %263 = tpu.memref_slice %arg7[%arg0, %c3_i32_168, %c0_i32_172, %c0_i32_173] : memref<2x8x128x128xf32, #tpu.memory_space<any>> -> memref<1x1x128x128xf32, #tpu.memory_space<any>>
    %264 = tpu.memref_squeeze %263 : memref<1x1x128x128xf32, #tpu.memory_space<any>> -> memref<128x128xf32, #tpu.memory_space<any>>
    %265 = tpu.memref_slice %arg10[%c3_i32_169] : memref<8x!tpu.dma_semaphore, #tpu.memory_space<semaphore_mem>> -> memref<1x!tpu.dma_semaphore, #tpu.memory_space<semaphore_mem>>
    %266 = tpu.memref_squeeze %265 : memref<1x!tpu.dma_semaphore, #tpu.memory_space<semaphore_mem>> -> memref<!tpu.dma_semaphore, #tpu.memory_space<semaphore_mem>>
    tpu.wait_dma2 semaphore(%266 : memref<!tpu.dma_semaphore, #tpu.memory_space<semaphore_mem>>) src(%262 : memref<128x128xf32, #tpu.memory_space<vmem>>) dst(%264 : memref<128x128xf32, #tpu.memory_space<any>>)
    %c4_i32_174 = arith.constant 4 : i32
    %c4_i32_175 = arith.constant 4 : i32
    %c4_i32_176 = arith.constant 4 : i32
    %c0_i32_177 = arith.constant 0 : i32
    %c0_i32_178 = arith.constant 0 : i32
    %267 = tpu.memref_slice %arg9[%c4_i32_174, %c0_i32_177, %c0_i32_178] : memref<8x128x128xf32, #tpu.memory_space<vmem>> -> memref<1x128x128xf32, #tpu.memory_space<vmem>>
    %268 = tpu.memref_squeeze %267 : memref<1x128x128xf32, #tpu.memory_space<vmem>> -> memref<128x128xf32, #tpu.memory_space<vmem>>
    %c0_i32_179 = arith.constant 0 : i32
    %c0_i32_180 = arith.constant 0 : i32
    %269 = tpu.memref_slice %arg7[%arg0, %c4_i32_175, %c0_i32_179, %c0_i32_180] : memref<2x8x128x128xf32, #tpu.memory_space<any>> -> memref<1x1x128x128xf32, #tpu.memory_space<any>>
    %270 = tpu.memref_squeeze %269 : memref<1x1x128x128xf32, #tpu.memory_space<any>> -> memref<128x128xf32, #tpu.memory_space<any>>
    %271 = tpu.memref_slice %arg10[%c4_i32_176] : memref<8x!tpu.dma_semaphore, #tpu.memory_space<semaphore_mem>> -> memref<1x!tpu.dma_semaphore, #tpu.memory_space<semaphore_mem>>
    %272 = tpu.memref_squeeze %271 : memref<1x!tpu.dma_semaphore, #tpu.memory_space<semaphore_mem>> -> memref<!tpu.dma_semaphore, #tpu.memory_space<semaphore_mem>>
    tpu.wait_dma2 semaphore(%272 : memref<!tpu.dma_semaphore, #tpu.memory_space<semaphore_mem>>) src(%268 : memref<128x128xf32, #tpu.memory_space<vmem>>) dst(%270 : memref<128x128xf32, #tpu.memory_space<any>>)
    %c5_i32_181 = arith.constant 5 : i32
    %c5_i32_182 = arith.constant 5 : i32
    %c5_i32_183 = arith.constant 5 : i32
    %c0_i32_184 = arith.constant 0 : i32
    %c0_i32_185 = arith.constant 0 : i32
    %273 = tpu.memref_slice %arg9[%c5_i32_181, %c0_i32_184, %c0_i32_185] : memref<8x128x128xf32, #tpu.memory_space<vmem>> -> memref<1x128x128xf32, #tpu.memory_space<vmem>>
    %274 = tpu.memref_squeeze %273 : memref<1x128x128xf32, #tpu.memory_space<vmem>> -> memref<128x128xf32, #tpu.memory_space<vmem>>
    %c0_i32_186 = arith.constant 0 : i32
    %c0_i32_187 = arith.constant 0 : i32
    %275 = tpu.memref_slice %arg7[%arg0, %c5_i32_182, %c0_i32_186, %c0_i32_187] : memref<2x8x128x128xf32, #tpu.memory_space<any>> -> memref<1x1x128x128xf32, #tpu.memory_space<any>>
    %276 = tpu.memref_squeeze %275 : memref<1x1x128x128xf32, #tpu.memory_space<any>> -> memref<128x128xf32, #tpu.memory_space<any>>
    %277 = tpu.memref_slice %arg10[%c5_i32_183] : memref<8x!tpu.dma_semaphore, #tpu.memory_space<semaphore_mem>> -> memref<1x!tpu.dma_semaphore, #tpu.memory_space<semaphore_mem>>
    %278 = tpu.memref_squeeze %277 : memref<1x!tpu.dma_semaphore, #tpu.memory_space<semaphore_mem>> -> memref<!tpu.dma_semaphore, #tpu.memory_space<semaphore_mem>>
    tpu.wait_dma2 semaphore(%278 : memref<!tpu.dma_semaphore, #tpu.memory_space<semaphore_mem>>) src(%274 : memref<128x128xf32, #tpu.memory_space<vmem>>) dst(%276 : memref<128x128xf32, #tpu.memory_space<any>>)
    %c6_i32_188 = arith.constant 6 : i32
    %c6_i32_189 = arith.constant 6 : i32
    %c6_i32_190 = arith.constant 6 : i32
    %c0_i32_191 = arith.constant 0 : i32
    %c0_i32_192 = arith.constant 0 : i32
    %279 = tpu.memref_slice %arg9[%c6_i32_188, %c0_i32_191, %c0_i32_192] : memref<8x128x128xf32, #tpu.memory_space<vmem>> -> memref<1x128x128xf32, #tpu.memory_space<vmem>>
    %280 = tpu.memref_squeeze %279 : memref<1x128x128xf32, #tpu.memory_space<vmem>> -> memref<128x128xf32, #tpu.memory_space<vmem>>
    %c0_i32_193 = arith.constant 0 : i32
    %c0_i32_194 = arith.constant 0 : i32
    %281 = tpu.memref_slice %arg7[%arg0, %c6_i32_189, %c0_i32_193, %c0_i32_194] : memref<2x8x128x128xf32, #tpu.memory_space<any>> -> memref<1x1x128x128xf32, #tpu.memory_space<any>>
    %282 = tpu.memref_squeeze %281 : memref<1x1x128x128xf32, #tpu.memory_space<any>> -> memref<128x128xf32, #tpu.memory_space<any>>
    %283 = tpu.memref_slice %arg10[%c6_i32_190] : memref<8x!tpu.dma_semaphore, #tpu.memory_space<semaphore_mem>> -> memref<1x!tpu.dma_semaphore, #tpu.memory_space<semaphore_mem>>
    %284 = tpu.memref_squeeze %283 : memref<1x!tpu.dma_semaphore, #tpu.memory_space<semaphore_mem>> -> memref<!tpu.dma_semaphore, #tpu.memory_space<semaphore_mem>>
    tpu.wait_dma2 semaphore(%284 : memref<!tpu.dma_semaphore, #tpu.memory_space<semaphore_mem>>) src(%280 : memref<128x128xf32, #tpu.memory_space<vmem>>) dst(%282 : memref<128x128xf32, #tpu.memory_space<any>>)
    %c7_i32_195 = arith.constant 7 : i32
    %c7_i32_196 = arith.constant 7 : i32
    %c7_i32_197 = arith.constant 7 : i32
    %c0_i32_198 = arith.constant 0 : i32
    %c0_i32_199 = arith.constant 0 : i32
    %285 = tpu.memref_slice %arg9[%c7_i32_195, %c0_i32_198, %c0_i32_199] : memref<8x128x128xf32, #tpu.memory_space<vmem>> -> memref<1x128x128xf32, #tpu.memory_space<vmem>>
    %286 = tpu.memref_squeeze %285 : memref<1x128x128xf32, #tpu.memory_space<vmem>> -> memref<128x128xf32, #tpu.memory_space<vmem>>
    %c0_i32_200 = arith.constant 0 : i32
    %c0_i32_201 = arith.constant 0 : i32
    %287 = tpu.memref_slice %arg7[%arg0, %c7_i32_196, %c0_i32_200, %c0_i32_201] : memref<2x8x128x128xf32, #tpu.memory_space<any>> -> memref<1x1x128x128xf32, #tpu.memory_space<any>>
    %288 = tpu.memref_squeeze %287 : memref<1x1x128x128xf32, #tpu.memory_space<any>> -> memref<128x128xf32, #tpu.memory_space<any>>
    %289 = tpu.memref_slice %arg10[%c7_i32_197] : memref<8x!tpu.dma_semaphore, #tpu.memory_space<semaphore_mem>> -> memref<1x!tpu.dma_semaphore, #tpu.memory_space<semaphore_mem>>
    %290 = tpu.memref_squeeze %289 : memref<1x!tpu.dma_semaphore, #tpu.memory_space<semaphore_mem>> -> memref<!tpu.dma_semaphore, #tpu.memory_space<semaphore_mem>>
    tpu.wait_dma2 semaphore(%290 : memref<!tpu.dma_semaphore, #tpu.memory_space<semaphore_mem>>) src(%286 : memref<128x128xf32, #tpu.memory_space<vmem>>) dst(%288 : memref<128x128xf32, #tpu.memory_space<any>>)
    return
  }
  func.func @transform_0(%arg0: i32) -> (i32, i32, i32) {
    %c0_i32 = arith.constant 0 : i32
    %c0_i32_0 = arith.constant 0 : i32
    %c0_i32_1 = arith.constant 0 : i32
    return %arg0, %c0_i32, %c0_i32_0 : i32, i32, i32
  }
  func.func @transform_1(%arg0: i32) -> (i32, i32) {
    %c0_i32 = arith.constant 0 : i32
    %c0_i32_0 = arith.constant 0 : i32
    %c0_i32_1 = arith.constant 0 : i32
    return %c0_i32, %c0_i32_0 : i32, i32
  }
  func.func @transform_2(%arg0: i32) -> (i32, i32) {
    %c0_i32 = arith.constant 0 : i32
    %c0_i32_0 = arith.constant 0 : i32
    %c0_i32_1 = arith.constant 0 : i32
    return %c0_i32, %c0_i32_0 : i32, i32
  }
  func.func @transform_3(%arg0: i32) -> (i32, i32) {
    %c0_i32 = arith.constant 0 : i32
    %c0_i32_0 = arith.constant 0 : i32
    %c0_i32_1 = arith.constant 0 : i32
    return %c0_i32, %c0_i32_0 : i32, i32
  }
  func.func @transform_4(%arg0: i32) -> (i32, i32) {
    %c0_i32 = arith.constant 0 : i32
    %c0_i32_0 = arith.constant 0 : i32
    %c0_i32_1 = arith.constant 0 : i32
    return %c0_i32, %c0_i32_0 : i32, i32
  }
  func.func @transform_5(%arg0: i32) -> (i32, i32, i32) {
    %c0_i32 = arith.constant 0 : i32
    %c0_i32_0 = arith.constant 0 : i32
    %c0_i32_1 = arith.constant 0 : i32
    return %arg0, %c0_i32, %c0_i32_0 : i32, i32, i32
  }
}

</mosaic_0001>

<llo_original>
// kernel: tpu_custom_call.1
$region0: #{tpu_custom_call.1}
  #allocation0 [shape = 'u32[]', space=smem, size = 0x4, offset = 0x4, fixed_abs, tag = 'smem constant byte address 0x4 - core index']
  #allocation1 [shape = 'u32[72,128]{1,0:T(1,128)}', space=vmem, size = 0x9000, scoped, tag = 'internal scratch']
  #allocation2 [shape = 'f32[128,384]{1,0:T(8,128)}', space=vmem, size = 0x30000, scoped, tag = 'scratch operand']
  #allocation3 [shape = 'f32[8,128,128]{2,1,0:T(8,128)}', space=vmem, size = 0x80000, scoped, tag = 'scratch operand']
  #allocation4 [shape = 's32[8]{0}', space=sflag, size = 0x20, scoped, tag = 'scratch operand']
  #allocation14 [shape = 's32[]', space=sflag, size = 0x4, offset = 0, fixed_abs, tag = 'sflag constant byte address 0x0 - dummy sync flag']
  #allocation15 [shape = 's32[]', space=sflag, size = 0x4, offset = 0, fixed_abs, tag = 'sflag constant byte address 0x0 - dummy sync flag']
  #allocation16 [shape = 'u32[]', space=smem, size = 0x4, offset = 0x44, fixed_abs, tag = 'smem constant byte address 0x44 - assertion arg 0']
  #allocation17 [shape = 'u32[]', space=smem, size = 0x4, offset = 0x48, fixed_abs, tag = 'smem constant byte address 0x48 - assertion arg 1']
  #allocation18 [shape = 's32[]', space=sflag, size = 0x4, offset = 0, fixed_abs, tag = 'sflag constant byte address 0x0 - dummy sync flag']
  #allocation19 [shape = 's32[]', space=sflag, size = 0x4, offset = 0, fixed_abs, tag = 'sflag constant byte address 0x0 - dummy sync flag']
  #allocation20 [shape = 's32[]', space=sflag, size = 0x4, offset = 0, fixed_abs, tag = 'sflag constant byte address 0x0 - dummy sync flag']
  #allocation21 [shape = 's32[]', space=sflag, size = 0x4, offset = 0, fixed_abs, tag = 'sflag constant byte address 0x0 - dummy sync flag']
  #allocation22 [shape = 's32[]', space=sflag, size = 0x4, offset = 0, fixed_abs, tag = 'sflag constant byte address 0x0 - dummy sync flag']
  #allocation23 [shape = 's32[]', space=sflag, size = 0x4, offset = 0, fixed_abs, tag = 'sflag constant byte address 0x0 - dummy sync flag']
  #allocation24 [shape = 's32[]', space=sflag, size = 0x4, offset = 0, fixed_abs, tag = 'sflag constant byte address 0x0 - dummy sync flag']
  #allocation25 [shape = 's32[]', space=sflag, size = 0x4, offset = 0, fixed_abs, tag = 'sflag constant byte address 0x0 - dummy sync flag']
  #allocation26 [shape = 's32[]', space=sflag, size = 0x4, offset = 0, fixed_abs, tag = 'sflag constant byte address 0x0 - dummy sync flag']
  #allocation27 [shape = 's32[]', space=sflag, size = 0x4, offset = 0, fixed_abs, tag = 'sflag constant byte address 0x0 - dummy sync flag']
  #allocation28 [shape = 's32[]', space=sflag, size = 0x4, offset = 0, fixed_abs, tag = 'sflag constant byte address 0x0 - dummy sync flag']
  #allocation29 [shape = 's32[]', space=sflag, size = 0x4, offset = 0, fixed_abs, tag = 'sflag constant byte address 0x0 - dummy sync flag']
  #allocation30 [shape = 's32[]', space=sflag, size = 0x4, offset = 0, fixed_abs, tag = 'sflag constant byte address 0x0 - dummy sync flag']
  #allocation31 [shape = 's32[]', space=sflag, size = 0x4, offset = 0, fixed_abs, tag = 'sflag constant byte address 0x0 - dummy sync flag']
  %s0 = inlined_call_operand.hbm [shape: f32[2,128,128], index: 0, kind: input, shape index: {}]
  %s1 = inlined_call_operand.hbm [shape: f32[128,384], index: 1, kind: input, shape index: {}]
  %s2 = inlined_call_operand.hbm [shape: f32[1,384], index: 2, kind: input, shape index: {}]
  %s3 = inlined_call_operand.hbm [shape: f32[128,128], index: 3, kind: input, shape index: {}]
  %s4 = inlined_call_operand.vmem [shape: f32[1,128], index: 4, kind: input, shape index: {}]
  %s5 = inlined_call_operand.hbm [shape: f32[2,128,128], index: 5, kind: output, shape index: {0}]
  %s6 = inlined_call_operand.hbm [shape: f32[2,8,128,128], index: 6, kind: output, shape index: {1}]
  %7 = xla_tuple %s5, %s6
  %s8 = sld [smem:[#allocation0]]
  $region101: #{tpu_custom_call.1} parent=0
    _
  %s10 = ssub.s32 1, %s8
  %s11 = scalar_select 0, %s10, %s8
  $region1: #{tpu_custom_call.1} parent=0
    #allocation5 [shape = 'u8[131072]{0}', space=vmem, size = 0x20000, scoped, tag = 'input window, operand 0']
    #allocation6 [shape = 's32[2]{0}', space=sflag, size = 0x8, scoped, tag = 'scoped memory for tpu_custom_call.1']
    #allocation7 [shape = 's32[2]{0}', space=sflag, size = 0x8, scoped, tag = 'scoped memory for tpu_custom_call.1']
    #allocation8 [shape = 'u8[196608]{0}', space=vmem, size = 0x30000, scoped, tag = 'input window, operand 1, single buffered']
    #allocation9 [shape = 's32[1]{0}', space=sflag, size = 0x4, scoped, tag = 'scoped memory for tpu_custom_call.1']
    #allocation10 [shape = 'u8[1536]{0}', space=vmem, size = 0x800, scoped, tag = 'input window, operand 2, single buffered']
    #allocation11 [shape = 'u8[65536]{0}', space=vmem, size = 0x10000, scoped, tag = 'input window, operand 3, single buffered']
    #allocation12 [shape = 's32[1]{0}', space=sflag, size = 0x4, scoped, tag = 'scoped memory for tpu_custom_call.1']
    #allocation13 [shape = 'u8[131072]{0}', space=vmem, size = 0x20000, scoped, tag = 'output window, operand 0']
    %12 = vsyncpa [#allocation6], 0
    %s13 = scalar_lea.sflag [#allocation6], 1
    %14 = vsyncpa %s13, 0
    %15 = vsyncpa [#allocation9], 0
    %16 = vsyncpa [#allocation12], 0
    %17 = vsyncpa [#allocation7], 0
    %s18 = scalar_lea.sflag [#allocation7], 1
    %19 = vsyncpa %s18, 0
    loop: start=0, step=1, limit=4
    $region2: #{tpu_custom_call.1} parent=1 // loop_pre_header
      _
    $region3: #{tpu_custom_call.1} parent=1 // loop_header
      %s21 = sphi 0, %s25
      %p22 = scmp.ge.s32.totalorder %s21, 4
      %s31 = sphi 0, %s33
      %s34 = sphi 0, %s31
      %s35 = sphi 0, %s34
      %s51 = sphi 0, %s35
      %s55 = sphi 0, %s55
      %s57 = sphi 0, %s55
      %s58 = sphi 0, %s57
      %s72 = sphi 0, %s58
      %s76 = sphi 0, %s76
      %s78 = sphi 0, %s76
      %s79 = sphi 0, %s78
      %s93 = sphi 0, %s79
      %s97 = sphi 0, %s97
      %s99 = sphi 0, %s97
      %s100 = sphi 0, %s99
      %s114 = sphi 0, %s100
      %s118 = sphi 0, %s118
      %s120 = sphi 0, %s118
      %s121 = sphi 0, %s120
      %s135 = sphi 0, %s121
      %s141 = sphi 0, %s143
      %s144 = sphi 0, %s141
      %s145 = sphi 0, %s144
      %s161 = sphi 0, %s145
    $region4: #{tpu_custom_call.1} parent=1 // loop_header_branch
      %24 = sbr.rel (%p22) target = $region8
    $region5: #{tpu_custom_call.1} parent=1 // loop_body
      %s26 = ssub.s32 %s21, 1
      %s27 = ssub.s32 %s21, 2
      %s28 = sadd.s32 %s21, 1
      %s29 = ssub.s32 %s21, %s28
      %p30 = scmp.eq.s32.totalorder %s29, 0
      %s32 = sadd.s32 %s31, 1
      %s33 = scalar_select %p30, %s31, %s32
      %p36 = pneg %p30
      %p37 = scmp.eq.s32.totalorder %s21, 1
      %p38 = por %p36, %p37
      %p39 = scmp.ne.s32.totalorder %s31, %s34
      %p40 = scmp.eq.s32.totalorder %s21, 0
      %p41 = por %p39, %p40
      %p42 = scmp.ne.s32.totalorder %s31, %s34
      %p43 = scmp.eq.s32.totalorder %s26, 1
      %p44 = por %p42, %p43
      %p45 = scmp.ne.s32.totalorder %s34, %s35
      %p46 = scmp.eq.s32.totalorder %s26, 0
      %p47 = por %p45, %p46
      %p48 = scmp.ne.s32.totalorder %s34, %s35
      %p49 = scmp.eq.s32.totalorder %s27, 1
      %p50 = por %p48, %p49
      %p52 = scmp.ne.s32.totalorder %s35, %s51
      %p53 = scmp.eq.s32.totalorder %s27, 0
      %p54 = por %p52, %p53
      %s56 = sadd.s32 %s55, 1
      %p59 = scmp.eq.s32.totalorder %s21, 1
      %p60 = scmp.ne.s32.totalorder %s55, %s57
      %p61 = scmp.eq.s32.totalorder %s21, 0
      %p62 = por %p60, %p61
      %p63 = scmp.ne.s32.totalorder %s55, %s57
      %p64 = scmp.eq.s32.totalorder %s26, 1
      %p65 = por %p63, %p64
      %p66 = scmp.ne.s32.totalorder %s57, %s58
      %p67 = scmp.eq.s32.totalorder %s26, 0
      %p68 = por %p66, %p67
      %p69 = scmp.ne.s32.totalorder %s57, %s58
      %p70 = scmp.eq.s32.totalorder %s27, 1
      %p71 = por %p69, %p70
      %p73 = scmp.ne.s32.totalorder %s58, %s72
      %p74 = scmp.eq.s32.totalorder %s27, 0
      %p75 = por %p73, %p74
      %s77 = sadd.s32 %s76, 1
      %p80 = scmp.eq.s32.totalorder %s21, 1
      %p81 = scmp.ne.s32.totalorder %s76, %s78
      %p82 = scmp.eq.s32.totalorder %s21, 0
      %p83 = por %p81, %p82
      %p84 = scmp.ne.s32.totalorder %s76, %s78
      %p85 = scmp.eq.s32.totalorder %s26, 1
      %p86 = por %p84, %p85
      %p87 = scmp.ne.s32.totalorder %s78, %s79
      %p88 = scmp.eq.s32.totalorder %s26, 0
      %p89 = por %p87, %p88
      %p90 = scmp.ne.s32.totalorder %s78, %s79
      %p91 = scmp.eq.s32.totalorder %s27, 1
      %p92 = por %p90, %p91
      %p94 = scmp.ne.s32.totalorder %s79, %s93
      %p95 = scmp.eq.s32.totalorder %s27, 0
      %p96 = por %p94, %p95
      %s98 = sadd.s32 %s97, 1
      %p101 = scmp.eq.s32.totalorder %s21, 1
      %p102 = scmp.ne.s32.totalorder %s97, %s99
      %p103 = scmp.eq.s32.totalorder %s21, 0
      %p104 = por %p102, %p103
      %p105 = scmp.ne.s32.totalorder %s97, %s99
      %p106 = scmp.eq.s32.totalorder %s26, 1
      %p107 = por %p105, %p106
      %p108 = scmp.ne.s32.totalorder %s99, %s100
      %p109 = scmp.eq.s32.totalorder %s26, 0
      %p110 = por %p108, %p109
      %p111 = scmp.ne.s32.totalorder %s99, %s100
      %p112 = scmp.eq.s32.totalorder %s27, 1
      %p113 = por %p111, %p112
      %p115 = scmp.ne.s32.totalorder %s100, %s114
      %p116 = scmp.eq.s32.totalorder %s27, 0
      %p117 = por %p115, %p116
      %s119 = sadd.s32 %s118, 1
      %p122 = scmp.eq.s32.totalorder %s21, 1
      %p123 = scmp.ne.s32.totalorder %s118, %s120
      %p124 = scmp.eq.s32.totalorder %s21, 0
      %p125 = por %p123, %p124
      %p126 = scmp.ne.s32.totalorder %s118, %s120
      %p127 = scmp.eq.s32.totalorder %s26, 1
      %p128 = por %p126, %p127
      %p129 = scmp.ne.s32.totalorder %s120, %s121
      %p130 = scmp.eq.s32.totalorder %s26, 0
      %p131 = por %p129, %p130
      %p132 = scmp.ne.s32.totalorder %s120, %s121
      %p133 = scmp.eq.s32.totalorder %s27, 1
      %p134 = por %p132, %p133
      %p136 = scmp.ne.s32.totalorder %s121, %s135
      %p137 = scmp.eq.s32.totalorder %s27, 0
      %p138 = por %p136, %p137
      %s139 = ssub.s32 %s21, %s28
      %p140 = scmp.eq.s32.totalorder %s139, 0
      %s142 = sadd.s32 %s141, 1
      %s143 = scalar_select %p140, %s141, %s142
      %p146 = pneg %p140
      %p147 = scmp.eq.s32.totalorder %s21, 1
      %p148 = por %p146, %p147
      %p149 = scmp.ne.s32.totalorder %s141, %s144
      %p150 = scmp.eq.s32.totalorder %s21, 0
      %p151 = por %p149, %p150
      %p152 = scmp.ne.s32.totalorder %s141, %s144
      %p153 = scmp.eq.s32.totalorder %s26, 1
      %p154 = por %p152, %p153
      %p155 = scmp.ne.s32.totalorder %s144, %s145
      %p156 = scmp.eq.s32.totalorder %s26, 0
      %p157 = por %p155, %p156
      %p158 = scmp.ne.s32.totalorder %s144, %s145
      %p159 = scmp.eq.s32.totalorder %s27, 1
      %p160 = por %p158, %p159
      %p162 = scmp.ne.s32.totalorder %s145, %s161
      %p163 = scmp.eq.s32.totalorder %s27, 0
      %p164 = por %p162, %p163
      %p165 = scmp.le.s32.totalorder 1, %s21
      %p166 = scmp.lt.s32.totalorder %s21, 3
      %p167 = pnand %p165, %p166
      %p168 = pneg %p167
      // Predicated region
      $region9: #{tpu_custom_call.1} parent=5 // pred_check
        _
      $region10: #{tpu_custom_call.1} parent=5 // pred_check_branch
        %170 = sbr.rel (%p167) target = $region12
      $region11: #{tpu_custom_call.1} parent=5 // pred_region
        %s171 = ssub.s32 %s21, 1
        // Predicated region
        $region13: #{tpu_custom_call.1} parent=11 // pred_check
          %p172 = pneg %p68
        $region14: #{tpu_custom_call.1} parent=11 // pred_check_branch
          %174 = sbr.rel (%p172) target = $region16
        $region15: #{tpu_custom_call.1} parent=11 // pred_region
          %176 = vsyncadd [#allocation9], 0
          %s177 = sshll.u32 %s1, 4
          %s178 = int_to_ptr.hbm [resolvable:$true] %s177
          %s179 = sshll.u32 [#allocation8], 4
          %s180 = int_to_ptr.vmem [resolvable:$true] %s179
          %185 = dma.hbm_to_vmem [thread:$0]  %s178, 6144, %s180, [#allocation9], 384, 384, 24
        $region16: #{tpu_custom_call.1} parent=11 // pred_fallthru
          _
        // Predicated region
        $region17: #{tpu_custom_call.1} parent=11 // pred_check
          %p186 = pneg %p89
        $region18: #{tpu_custom_call.1} parent=11 // pred_check_branch
          %188 = sbr.rel (%p186) target = $region20
        $region19: #{tpu_custom_call.1} parent=11 // pred_region
          %190 = vsyncadd [#allocation9], 0
          %s192 = sshll.u32 %s2, 4
          %s193 = int_to_ptr.hbm [resolvable:$true] %s192
          %s194 = sshll.u32 [#allocation10], 4
          %s195 = int_to_ptr.vmem [resolvable:$true] %s194
          %197 = dma.hbm_to_vmem [thread:$0]  %s193, 48, %s195, [#allocation9]
        $region20: #{tpu_custom_call.1} parent=11 // pred_fallthru
          _
        // Predicated region
        $region21: #{tpu_custom_call.1} parent=11 // pred_check
          %p198 = pneg %p110
        $region22: #{tpu_custom_call.1} parent=11 // pred_check_branch
          %200 = sbr.rel (%p198) target = $region24
        $region23: #{tpu_custom_call.1} parent=11 // pred_region
          %202 = vsyncadd [#allocation12], 0
          %s203 = sshll.u32 %s3, 4
          %s204 = int_to_ptr.hbm [resolvable:$true] %s203
          %s205 = sshll.u32 [#allocation11], 4
          %s206 = int_to_ptr.vmem [resolvable:$true] %s205
          %211 = dma.hbm_to_vmem [thread:$0]  %s204, 2048, %s206, [#allocation12], 128, 128, 8
        $region24: #{tpu_custom_call.1} parent=11 // pred_fallthru
          _
        // Predicated region
        $region25: #{tpu_custom_call.1} parent=11 // pred_check
          %p212 = pneg %p131
        $region26: #{tpu_custom_call.1} parent=11 // pred_check_branch
          %214 = sbr.rel (%p212) target = $region28
        $region27: #{tpu_custom_call.1} parent=11 // pred_region
          _
        $region28: #{tpu_custom_call.1} parent=11 // pred_fallthru
          _
      $region12: #{tpu_custom_call.1} parent=5 // pred_fallthru
        _
      %p215 = scmp.lt.s32.totalorder %s21, 2
      // Predicated region
      $region29: #{tpu_custom_call.1} parent=5 // pred_check
        %p216 = pneg %p215
      $region30: #{tpu_custom_call.1} parent=5 // pred_check_branch
        %218 = sbr.rel (%p216) target = $region32
      $region31: #{tpu_custom_call.1} parent=5 // pred_region
        // Predicated region
        $region33: #{tpu_custom_call.1} parent=31 // pred_check
          %p219 = pneg %p41
        $region34: #{tpu_custom_call.1} parent=31 // pred_check_branch
          %221 = sbr.rel (%p219) target = $region36
        $region35: #{tpu_custom_call.1} parent=31 // pred_region
          %s222 = sand.u32 %s31, 1
          %s223 = scalar_lea.sflag [#allocation6], %s222
          %s224 = sand.u32 %s31, 1
          %s225 = smul.addr %s224, 128
          %s226 = scalar_lea.vmem [#allocation5], %s225
          %228 = vsyncadd %s223, 0
          %s229 = smul.addr %s21, 16
          %s230 = smul.addr %s229, 8
          %s231 = scalar_lea.hbm %s0, %s230
          %s232 = sshll.u32 %s231, 4
          %s233 = int_to_ptr.hbm [resolvable:$true] %s232
          %s234 = sshll.u32 %s226, 4
          %s235 = int_to_ptr.vmem [resolvable:$true] %s234
          %240 = dma.hbm_to_vmem [thread:$0]  %s233, 2048, %s235, %s223, 128, 128, 8
        $region36: #{tpu_custom_call.1} parent=31 // pred_fallthru
          _
      $region32: #{tpu_custom_call.1} parent=5 // pred_fallthru
        _
      %p241 = scmp.le.s32.totalorder 1, %s21
      %p242 = scmp.lt.s32.totalorder %s21, 3
      %p243 = pnand %p241, %p242
      %p244 = pneg %p243
      // Predicated region
      $region37: #{tpu_custom_call.1} parent=5 // pred_check
        _
      $region38: #{tpu_custom_call.1} parent=5 // pred_check_branch
        %246 = sbr.rel (%p243) target = $region40
      $region39: #{tpu_custom_call.1} parent=5 // pred_region
        %s247 = ssub.s32 %s21, 1
        %s248 = sand.u32 %s34, 1
        %s249 = scalar_lea.sflag [#allocation6], %s248
        %s250 = sand.u32 %s34, 1
        %s251 = smul.addr %s250, 128
        %s252 = scalar_lea.vmem [#allocation5], %s251
        // Predicated region
        $region41: #{tpu_custom_call.1} parent=39 // pred_check
          %p253 = pneg %p47
        $region42: #{tpu_custom_call.1} parent=39 // pred_check_branch
          %255 = sbr.rel (%p253) target = $region44
        $region43: #{tpu_custom_call.1} parent=39 // pred_region
          %257 = dma.done %s249, 2048
        $region44: #{tpu_custom_call.1} parent=39 // pred_fallthru
          _
        // Predicated region
        $region45: #{tpu_custom_call.1} parent=39 // pred_check
          %p258 = pneg %p68
        $region46: #{tpu_custom_call.1} parent=39 // pred_check_branch
          %260 = sbr.rel (%p258) target = $region48
        $region47: #{tpu_custom_call.1} parent=39 // pred_region
          %262 = dma.done [#allocation9], 6144
        $region48: #{tpu_custom_call.1} parent=39 // pred_fallthru
          _
        // Predicated region
        $region49: #{tpu_custom_call.1} parent=39 // pred_check
          %p263 = pneg %p89
        $region50: #{tpu_custom_call.1} parent=39 // pred_check_branch
          %265 = sbr.rel (%p263) target = $region52
        $region51: #{tpu_custom_call.1} parent=39 // pred_region
          %267 = dma.done [#allocation9], 48
        $region52: #{tpu_custom_call.1} parent=39 // pred_fallthru
          _
        // Predicated region
        $region53: #{tpu_custom_call.1} parent=39 // pred_check
          %p268 = pneg %p110
        $region54: #{tpu_custom_call.1} parent=39 // pred_check_branch
          %270 = sbr.rel (%p268) target = $region56
        $region55: #{tpu_custom_call.1} parent=39 // pred_region
          %272 = dma.done [#allocation12], 2048
        $region56: #{tpu_custom_call.1} parent=39 // pred_fallthru
          _
        %s273 = sand.u32 %s34, 1
        %s274 = scalar_lea.sflag [#allocation6], %s273
        %s275 = sand.u32 %s34, 1
        %s276 = smul.addr %s275, 128
        %s277 = scalar_lea.vmem [#allocation5], %s276
        %p278 = pneg %p47
        %p279 = pneg %p44
        %p280 = pneg %p68
        %p281 = pneg %p65
        %p282 = pneg %p89
        %p283 = pneg %p86
        %p284 = pneg %p110
        %p285 = pneg %p107
        %p286 = pneg %p131
        %p287 = pneg %p128
        %p288 = pneg %p157
        %p289 = pneg %p154
        %s290 = sand.u32 %s144, 1
        %s291 = scalar_lea.sflag [#allocation7], %s290
        %s292 = sand.u32 %s144, 1
        %s293 = smul.addr %s292, 128
        %s294 = scalar_lea.vmem [#allocation13], %s293
        %v295 = vld [vmem:[%s252] sm:$0xff]
        %v296 = vld [vmem:[%s252 + $0x8] sm:$0xff]
        %v297 = vld [vmem:[%s252 + $0x10] sm:$0xff]
        %v298 = vld [vmem:[%s252 + $0x18] sm:$0xff]
        %v299 = vld [vmem:[%s252 + $0x20] sm:$0xff]
        %v300 = vld [vmem:[%s252 + $0x28] sm:$0xff]
        %v301 = vld [vmem:[%s252 + $0x30] sm:$0xff]
        %v302 = vld [vmem:[%s252 + $0x38] sm:$0xff]
        %v303 = vld [vmem:[%s252 + $0x40] sm:$0xff]
        %v304 = vld [vmem:[%s252 + $0x48] sm:$0xff]
        %v305 = vld [vmem:[%s252 + $0x50] sm:$0xff]
        %v306 = vld [vmem:[%s252 + $0x58] sm:$0xff]
        %v307 = vld [vmem:[%s252 + $0x60] sm:$0xff]
        %v308 = vld [vmem:[%s252 + $0x68] sm:$0xff]
        %v309 = vld [vmem:[%s252 + $0x70] sm:$0xff]
        %v310 = vld [vmem:[%s252 + $0x78] sm:$0xff]
        %v311 = vld [vmem:[#allocation8] sm:$0xff]
        %v312 = vld [vmem:[#allocation8 + $0x8] sm:$0xff]
        %v313 = vld [vmem:[#allocation8 + $0x10] sm:$0xff]
        %v314 = vld [vmem:[#allocation8 + $0x18] sm:$0xff]
        %v315 = vld [vmem:[#allocation8 + $0x20] sm:$0xff]
        %v316 = vld [vmem:[#allocation8 + $0x28] sm:$0xff]
        %v317 = vld [vmem:[#allocation8 + $0x30] sm:$0xff]
        %v318 = vld [vmem:[#allocation8 + $0x38] sm:$0xff]
        %v319 = vld [vmem:[#allocation8 + $0x40] sm:$0xff]
        %v320 = vld [vmem:[#allocation8 + $0x48] sm:$0xff]
        %v321 = vld [vmem:[#allocation8 + $0x50] sm:$0xff]
        %v322 = vld [vmem:[#allocation8 + $0x58] sm:$0xff]
        %v323 = vld [vmem:[#allocation8 + $0x60] sm:$0xff]
        %v324 = vld [vmem:[#allocation8 + $0x68] sm:$0xff]
        %v325 = vld [vmem:[#allocation8 + $0x70] sm:$0xff]
        %v326 = vld [vmem:[#allocation8 + $0x78] sm:$0xff]
        %v327 = vld [vmem:[#allocation8 + $0x80] sm:$0xff]
        %v328 = vld [vmem:[#allocation8 + $0x88] sm:$0xff]
        %v329 = vld [vmem:[#allocation8 + $0x90] sm:$0xff]
        %v330 = vld [vmem:[#allocation8 + $0x98] sm:$0xff]
        %v331 = vld [vmem:[#allocation8 + $0xa0] sm:$0xff]
        %v332 = vld [vmem:[#allocation8 + $0xa8] sm:$0xff]
        %v333 = vld [vmem:[#allocation8 + $0xb0] sm:$0xff]
        %v334 = vld [vmem:[#allocation8 + $0xb8] sm:$0xff]
        %v335 = vld [vmem:[#allocation8 + $0xc0] sm:$0xff]
        %v336 = vld [vmem:[#allocation8 + $0xc8] sm:$0xff]
        %v337 = vld [vmem:[#allocation8 + $0xd0] sm:$0xff]
        %v338 = vld [vmem:[#allocation8 + $0xd8] sm:$0xff]
        %v339 = vld [vmem:[#allocation8 + $0xe0] sm:$0xff]
        %v340 = vld [vmem:[#allocation8 + $0xe8] sm:$0xff]
        %v341 = vld [vmem:[#allocation8 + $0xf0] sm:$0xff]
        %v342 = vld [vmem:[#allocation8 + $0xf8] sm:$0xff]
        %v343 = vld [vmem:[#allocation8 + $0x100] sm:$0xff]
        %v344 = vld [vmem:[#allocation8 + $0x108] sm:$0xff]
        %v345 = vld [vmem:[#allocation8 + $0x110] sm:$0xff]
        %v346 = vld [vmem:[#allocation8 + $0x118] sm:$0xff]
        %v347 = vld [vmem:[#allocation8 + $0x120] sm:$0xff]
        %v348 = vld [vmem:[#allocation8 + $0x128] sm:$0xff]
        %v349 = vld [vmem:[#allocation8 + $0x130] sm:$0xff]
        %v350 = vld [vmem:[#allocation8 + $0x138] sm:$0xff]
        %v351 = vld [vmem:[#allocation8 + $0x140] sm:$0xff]
        %v352 = vld [vmem:[#allocation8 + $0x148] sm:$0xff]
        %v353 = vld [vmem:[#allocation8 + $0x150] sm:$0xff]
        %v354 = vld [vmem:[#allocation8 + $0x158] sm:$0xff]
        %v355 = vld [vmem:[#allocation8 + $0x160] sm:$0xff]
        %v356 = vld [vmem:[#allocation8 + $0x168] sm:$0xff]
        %v357 = vld [vmem:[#allocation8 + $0x170] sm:$0xff]
        %v358 = vld [vmem:[#allocation8 + $0x178] sm:$0xff]
        %v359 = vld [vmem:[#allocation10] sm:$0x7]
        %v361 = vperm.slane %v359, 0
        %v362 = vperm.slane %v359, 1
        %v363 = vperm.slane %v359, 2
        %367 = vmatpush.msra.mxu0 %v356
        %368 = vmatpush.msra.mxu0 %v353
        %369 = vmatpush.msra.mxu0 %v350
        %370 = vmatpush.msra.mxu0 %v347
        %371 = vmatpush.msra.mxu0 %v344
        %372 = vmatpush.msra.mxu0 %v341
        %373 = vmatpush.msra.mxu0 %v338
        %374 = vmatpush.msra.mxu0 %v335
        %375 = vmatpush.msra.mxu0 %v332
        %376 = vmatpush.msra.mxu0 %v329
        %377 = vmatpush.msra.mxu0 %v326
        %378 = vmatpush.msra.mxu0 %v323
        %379 = vmatpush.msra.mxu0 %v320
        %380 = vmatpush.msra.mxu0 %v317
        %381 = vmatpush.msra.mxu0 %v314
        %382 = vmatpush.msra.mxu0 %v311
        %383 = vmatmul.f32.gmra.mxu0 %v295
        %v384 = vpop.f32.mrf.mxu0
        %v385 = vadd.f32 %v361, %v384
        %386 = vmatmul.f32.gmra.mxu0 %v296
        %v387 = vpop.f32.mrf.mxu0
        %v388 = vadd.f32 %v361, %v387
        %389 = vmatmul.f32.gmra.mxu0 %v297
        %v390 = vpop.f32.mrf.mxu0
        %v391 = vadd.f32 %v361, %v390
        %392 = vmatmul.f32.gmra.mxu0 %v298
        %v393 = vpop.f32.mrf.mxu0
        %v394 = vadd.f32 %v361, %v393
        %395 = vmatmul.f32.gmra.mxu0 %v299
        %v396 = vpop.f32.mrf.mxu0
        %v397 = vadd.f32 %v361, %v396
        %398 = vmatmul.f32.gmra.mxu0 %v300
        %v399 = vpop.f32.mrf.mxu0
        %v400 = vadd.f32 %v361, %v399
        %401 = vmatmul.f32.gmra.mxu0 %v301
        %v402 = vpop.f32.mrf.mxu0
        %v403 = vadd.f32 %v361, %v402
        %404 = vmatmul.f32.gmra.mxu0 %v302
        %v405 = vpop.f32.mrf.mxu0
        %v406 = vadd.f32 %v361, %v405
        %407 = vmatmul.f32.gmra.mxu0 %v303
        %v408 = vpop.f32.mrf.mxu0
        %v409 = vadd.f32 %v361, %v408
        %410 = vmatmul.f32.gmra.mxu0 %v304
        %v411 = vpop.f32.mrf.mxu0
        %v412 = vadd.f32 %v361, %v411
        %413 = vmatmul.f32.gmra.mxu0 %v305
        %v414 = vpop.f32.mrf.mxu0
        %v415 = vadd.f32 %v361, %v414
        %416 = vmatmul.f32.gmra.mxu0 %v306
        %v417 = vpop.f32.mrf.mxu0
        %v418 = vadd.f32 %v361, %v417
        %419 = vmatmul.f32.gmra.mxu0 %v307
        %v420 = vpop.f32.mrf.mxu0
        %v421 = vadd.f32 %v361, %v420
        %422 = vmatmul.f32.gmra.mxu0 %v308
        %v423 = vpop.f32.mrf.mxu0
        %v424 = vadd.f32 %v361, %v423
        %425 = vmatmul.f32.gmra.mxu0 %v309
        %v426 = vpop.f32.mrf.mxu0
        %v427 = vadd.f32 %v361, %v426
        %428 = vmatmul.f32.gmra.mxu0 %v310
        %v429 = vpop.f32.mrf.mxu0
        %v430 = vadd.f32 %v361, %v429
        %431 = vdwg.mxu0
        %432 = vmatpush.msra.mxu0 %v357
        %433 = vmatpush.msra.mxu0 %v354
        %434 = vmatpush.msra.mxu0 %v351
        %435 = vmatpush.msra.mxu0 %v348
        %436 = vmatpush.msra.mxu0 %v345
        %437 = vmatpush.msra.mxu0 %v342
        %438 = vmatpush.msra.mxu0 %v339
        %439 = vmatpush.msra.mxu0 %v336
        %440 = vmatpush.msra.mxu0 %v333
        %441 = vmatpush.msra.mxu0 %v330
        %442 = vmatpush.msra.mxu0 %v327
        %443 = vmatpush.msra.mxu0 %v324
        %444 = vmatpush.msra.mxu0 %v321
        %445 = vmatpush.msra.mxu0 %v318
        %446 = vmatpush.msra.mxu0 %v315
        %447 = vmatpush.msra.mxu0 %v312
        %448 = vmatmul.f32.gmra.mxu0 %v295
        %v449 = vpop.f32.mrf.mxu0
        %v450 = vadd.f32 %v362, %v449
        %451 = vmatmul.f32.gmra.mxu0 %v296
        %v452 = vpop.f32.mrf.mxu0
        %v453 = vadd.f32 %v362, %v452
        %454 = vmatmul.f32.gmra.mxu0 %v297
        %v455 = vpop.f32.mrf.mxu0
        %v456 = vadd.f32 %v362, %v455
        %457 = vmatmul.f32.gmra.mxu0 %v298
        %v458 = vpop.f32.mrf.mxu0
        %v459 = vadd.f32 %v362, %v458
        %460 = vmatmul.f32.gmra.mxu0 %v299
        %v461 = vpop.f32.mrf.mxu0
        %v462 = vadd.f32 %v362, %v461
        %463 = vmatmul.f32.gmra.mxu0 %v300
        %v464 = vpop.f32.mrf.mxu0
        %v465 = vadd.f32 %v362, %v464
        %466 = vmatmul.f32.gmra.mxu0 %v301
        %v467 = vpop.f32.mrf.mxu0
        %v468 = vadd.f32 %v362, %v467
        %469 = vmatmul.f32.gmra.mxu0 %v302
        %v470 = vpop.f32.mrf.mxu0
        %v471 = vadd.f32 %v362, %v470
        %472 = vmatmul.f32.gmra.mxu0 %v303
        %v473 = vpop.f32.mrf.mxu0
        %v474 = vadd.f32 %v362, %v473
        %475 = vmatmul.f32.gmra.mxu0 %v304
        %v476 = vpop.f32.mrf.mxu0
        %v477 = vadd.f32 %v362, %v476
        %478 = vmatmul.f32.gmra.mxu0 %v305
        %v479 = vpop.f32.mrf.mxu0
        %v480 = vadd.f32 %v362, %v479
        %481 = vmatmul.f32.gmra.mxu0 %v306
        %v482 = vpop.f32.mrf.mxu0
        %v483 = vadd.f32 %v362, %v482
        %484 = vmatmul.f32.gmra.mxu0 %v307
        %v485 = vpop.f32.mrf.mxu0
        %v486 = vadd.f32 %v362, %v485
        %487 = vmatmul.f32.gmra.mxu0 %v308
        %v488 = vpop.f32.mrf.mxu0
        %v489 = vadd.f32 %v362, %v488
        %490 = vmatmul.f32.gmra.mxu0 %v309
        %v491 = vpop.f32.mrf.mxu0
        %v492 = vadd.f32 %v362, %v491
        %493 = vmatmul.f32.gmra.mxu0 %v310
        %v494 = vpop.f32.mrf.mxu0
        %v495 = vadd.f32 %v362, %v494
        %496 = vdwg.mxu0
        %497 = vmatpush.msra.mxu0 %v358
        %498 = vmatpush.msra.mxu0 %v355
        %499 = vmatpush.msra.mxu0 %v352
        %500 = vmatpush.msra.mxu0 %v349
        %501 = vmatpush.msra.mxu0 %v346
        %502 = vmatpush.msra.mxu0 %v343
        %503 = vmatpush.msra.mxu0 %v340
        %504 = vmatpush.msra.mxu0 %v337
        %505 = vmatpush.msra.mxu0 %v334
        %506 = vmatpush.msra.mxu0 %v331
        %507 = vmatpush.msra.mxu0 %v328
        %508 = vmatpush.msra.mxu0 %v325
        %509 = vmatpush.msra.mxu0 %v322
        %510 = vmatpush.msra.mxu0 %v319
        %511 = vmatpush.msra.mxu0 %v316
        %512 = vmatpush.msra.mxu0 %v313
        %513 = vmatmul.f32.gmra.mxu0 %v295
        %v514 = vpop.f32.mrf.mxu0
        %v515 = vadd.f32 %v363, %v514
        %516 = vmatmul.f32.gmra.mxu0 %v296
        %v517 = vpop.f32.mrf.mxu0
        %v518 = vadd.f32 %v363, %v517
        %519 = vmatmul.f32.gmra.mxu0 %v297
        %v520 = vpop.f32.mrf.mxu0
        %v521 = vadd.f32 %v363, %v520
        %522 = vmatmul.f32.gmra.mxu0 %v298
        %v523 = vpop.f32.mrf.mxu0
        %v524 = vadd.f32 %v363, %v523
        %525 = vmatmul.f32.gmra.mxu0 %v299
        %v526 = vpop.f32.mrf.mxu0
        %v527 = vadd.f32 %v363, %v526
        %528 = vmatmul.f32.gmra.mxu0 %v300
        %v529 = vpop.f32.mrf.mxu0
        %v530 = vadd.f32 %v363, %v529
        %531 = vmatmul.f32.gmra.mxu0 %v301
        %v532 = vpop.f32.mrf.mxu0
        %v533 = vadd.f32 %v363, %v532
        %534 = vmatmul.f32.gmra.mxu0 %v302
        %v535 = vpop.f32.mrf.mxu0
        %v536 = vadd.f32 %v363, %v535
        %537 = vmatmul.f32.gmra.mxu0 %v303
        %v538 = vpop.f32.mrf.mxu0
        %v539 = vadd.f32 %v363, %v538
        %540 = vmatmul.f32.gmra.mxu0 %v304
        %v541 = vpop.f32.mrf.mxu0
        %v542 = vadd.f32 %v363, %v541
        %543 = vmatmul.f32.gmra.mxu0 %v305
        %v544 = vpop.f32.mrf.mxu0
        %v545 = vadd.f32 %v363, %v544
        %546 = vmatmul.f32.gmra.mxu0 %v306
        %v547 = vpop.f32.mrf.mxu0
        %v548 = vadd.f32 %v363, %v547
        %549 = vmatmul.f32.gmra.mxu0 %v307
        %v550 = vpop.f32.mrf.mxu0
        %v551 = vadd.f32 %v363, %v550
        %552 = vmatmul.f32.gmra.mxu0 %v308
        %v553 = vpop.f32.mrf.mxu0
        %v554 = vadd.f32 %v363, %v553
        %555 = vmatmul.f32.gmra.mxu0 %v309
        %v556 = vpop.f32.mrf.mxu0
        %v557 = vadd.f32 %v363, %v556
        %558 = vmatmul.f32.gmra.mxu0 %v310
        %v559 = vpop.f32.mrf.mxu0
        %v560 = vadd.f32 %v363, %v559
        %561 = vdwg.mxu0
        %562 = vst [vmem:[#allocation2] sm:$0xff] %v385
        %563 = vst [vmem:[#allocation2 + $0x8] sm:$0xff] %v450
        %564 = vst [vmem:[#allocation2 + $0x10] sm:$0xff] %v515
        %565 = vst [vmem:[#allocation2 + $0x18] sm:$0xff] %v388
        %566 = vst [vmem:[#allocation2 + $0x20] sm:$0xff] %v453
        %567 = vst [vmem:[#allocation2 + $0x28] sm:$0xff] %v518
        %568 = vst [vmem:[#allocation2 + $0x30] sm:$0xff] %v391
        %569 = vst [vmem:[#allocation2 + $0x38] sm:$0xff] %v456
        %570 = vst [vmem:[#allocation2 + $0x40] sm:$0xff] %v521
        %571 = vst [vmem:[#allocation2 + $0x48] sm:$0xff] %v394
        %572 = vst [vmem:[#allocation2 + $0x50] sm:$0xff] %v459
        %573 = vst [vmem:[#allocation2 + $0x58] sm:$0xff] %v524
        %574 = vst [vmem:[#allocation2 + $0x60] sm:$0xff] %v397
        %575 = vst [vmem:[#allocation2 + $0x68] sm:$0xff] %v462
        %576 = vst [vmem:[#allocation2 + $0x70] sm:$0xff] %v527
        %577 = vst [vmem:[#allocation2 + $0x78] sm:$0xff] %v400
        %578 = vst [vmem:[#allocation2 + $0x80] sm:$0xff] %v465
        %579 = vst [vmem:[#allocation2 + $0x88] sm:$0xff] %v530
        %580 = vst [vmem:[#allocation2 + $0x90] sm:$0xff] %v403
        %581 = vst [vmem:[#allocation2 + $0x98] sm:$0xff] %v468
        %582 = vst [vmem:[#allocation2 + $0xa0] sm:$0xff] %v533
        %583 = vst [vmem:[#allocation2 + $0xa8] sm:$0xff] %v406
        %584 = vst [vmem:[#allocation2 + $0xb0] sm:$0xff] %v471
        %585 = vst [vmem:[#allocation2 + $0xb8] sm:$0xff] %v536
        %586 = vst [vmem:[#allocation2 + $0xc0] sm:$0xff] %v409
        %587 = vst [vmem:[#allocation2 + $0xc8] sm:$0xff] %v474
        %588 = vst [vmem:[#allocation2 + $0xd0] sm:$0xff] %v539
        %589 = vst [vmem:[#allocation2 + $0xd8] sm:$0xff] %v412
        %590 = vst [vmem:[#allocation2 + $0xe0] sm:$0xff] %v477
        %591 = vst [vmem:[#allocation2 + $0xe8] sm:$0xff] %v542
        %592 = vst [vmem:[#allocation2 + $0xf0] sm:$0xff] %v415
        %593 = vst [vmem:[#allocation2 + $0xf8] sm:$0xff] %v480
        %594 = vst [vmem:[#allocation2 + $0x100] sm:$0xff] %v545
        %595 = vst [vmem:[#allocation2 + $0x108] sm:$0xff] %v418
        %596 = vst [vmem:[#allocation2 + $0x110] sm:$0xff] %v483
        %597 = vst [vmem:[#allocation2 + $0x118] sm:$0xff] %v548
        %598 = vst [vmem:[#allocation2 + $0x120] sm:$0xff] %v421
        %599 = vst [vmem:[#allocation2 + $0x128] sm:$0xff] %v486
        %600 = vst [vmem:[#allocation2 + $0x130] sm:$0xff] %v551
        %601 = vst [vmem:[#allocation2 + $0x138] sm:$0xff] %v424
        %602 = vst [vmem:[#allocation2 + $0x140] sm:$0xff] %v489
        %603 = vst [vmem:[#allocation2 + $0x148] sm:$0xff] %v554
        %604 = vst [vmem:[#allocation2 + $0x150] sm:$0xff] %v427
        %605 = vst [vmem:[#allocation2 + $0x158] sm:$0xff] %v492
        %606 = vst [vmem:[#allocation2 + $0x160] sm:$0xff] %v557
        %607 = vst [vmem:[#allocation2 + $0x168] sm:$0xff] %v430
        %608 = vst [vmem:[#allocation2 + $0x170] sm:$0xff] %v495
        %609 = vst [vmem:[#allocation2 + $0x178] sm:$0xff] %v560
        %v610 = vld [vmem:[#allocation2] sm:$0xff]
        %v611 = vld [vmem:[#allocation2 + $0x18] sm:$0xff]
        %v612 = vld [vmem:[#allocation2 + $0x30] sm:$0xff]
        %v613 = vld [vmem:[#allocation2 + $0x48] sm:$0xff]
        %v614 = vld [vmem:[#allocation2 + $0x60] sm:$0xff]
        %v615 = vld [vmem:[#allocation2 + $0x78] sm:$0xff]
        %v616 = vld [vmem:[#allocation2 + $0x90] sm:$0xff]
        %v617 = vld [vmem:[#allocation2 + $0xa8] sm:$0xff]
        %v618 = vld [vmem:[#allocation2 + $0xc0] sm:$0xff]
        %v619 = vld [vmem:[#allocation2 + $0xd8] sm:$0xff]
        %v620 = vld [vmem:[#allocation2 + $0xf0] sm:$0xff]
        %v621 = vld [vmem:[#allocation2 + $0x108] sm:$0xff]
        %v622 = vld [vmem:[#allocation2 + $0x120] sm:$0xff]
        %v623 = vld [vmem:[#allocation2 + $0x138] sm:$0xff]
        %v624 = vld [vmem:[#allocation2 + $0x150] sm:$0xff]
        %v625 = vld [vmem:[#allocation2 + $0x168] sm:$0xff]
        %v626 = vmul.f32 %v610, 0.25
        %v627 = vmul.f32 %v611, 0.25
        %v628 = vmul.f32 %v612, 0.25
        %v629 = vmul.f32 %v613, 0.25
        %v630 = vmul.f32 %v614, 0.25
        %v631 = vmul.f32 %v615, 0.25
        %v632 = vmul.f32 %v616, 0.25
        %v633 = vmul.f32 %v617, 0.25
        %v634 = vmul.f32 %v618, 0.25
        %v635 = vmul.f32 %v619, 0.25
        %v636 = vmul.f32 %v620, 0.25
        %v637 = vmul.f32 %v621, 0.25
        %v638 = vmul.f32 %v622, 0.25
        %v639 = vmul.f32 %v623, 0.25
        %v640 = vmul.f32 %v624, 0.25
        %v641 = vmul.f32 %v625, 0.25
        %v642 = vld [vmem:[#allocation2 + $0x8] sm:$0xff]
        %v643 = vld [vmem:[#allocation2 + $0x20] sm:$0xff]
        %v644 = vld [vmem:[#allocation2 + $0x38] sm:$0xff]
        %v645 = vld [vmem:[#allocation2 + $0x50] sm:$0xff]
        %v646 = vld [vmem:[#allocation2 + $0x68] sm:$0xff]
        %v647 = vld [vmem:[#allocation2 + $0x80] sm:$0xff]
        %v648 = vld [vmem:[#allocation2 + $0x98] sm:$0xff]
        %v649 = vld [vmem:[#allocation2 + $0xb0] sm:$0xff]
        %v650 = vld [vmem:[#allocation2 + $0xc8] sm:$0xff]
        %v651 = vld [vmem:[#allocation2 + $0xe0] sm:$0xff]
        %v652 = vld [vmem:[#allocation2 + $0xf8] sm:$0xff]
        %v653 = vld [vmem:[#allocation2 + $0x110] sm:$0xff]
        %v654 = vld [vmem:[#allocation2 + $0x128] sm:$0xff]
        %v655 = vld [vmem:[#allocation2 + $0x140] sm:$0xff]
        %v656 = vld [vmem:[#allocation2 + $0x158] sm:$0xff]
        %v657 = vld [vmem:[#allocation2 + $0x170] sm:$0xff]
        %v658 = vld [vmem:[#allocation2 + $0x10] sm:$0xff]
        %v659 = vld [vmem:[#allocation2 + $0x28] sm:$0xff]
        %v660 = vld [vmem:[#allocation2 + $0x40] sm:$0xff]
        %v661 = vld [vmem:[#allocation2 + $0x58] sm:$0xff]
        %v662 = vld [vmem:[#allocation2 + $0x70] sm:$0xff]
        %v663 = vld [vmem:[#allocation2 + $0x88] sm:$0xff]
        %v664 = vld [vmem:[#allocation2 + $0xa0] sm:$0xff]
        %v665 = vld [vmem:[#allocation2 + $0xb8] sm:$0xff]
        %v666 = vld [vmem:[#allocation2 + $0xd0] sm:$0xff]
        %v667 = vld [vmem:[#allocation2 + $0xe8] sm:$0xff]
        %v668 = vld [vmem:[#allocation2 + $0x100] sm:$0xff]
        %v669 = vld [vmem:[#allocation2 + $0x118] sm:$0xff]
        %v670 = vld [vmem:[#allocation2 + $0x130] sm:$0xff]
        %v671 = vld [vmem:[#allocation2 + $0x148] sm:$0xff]
        %v672 = vld [vmem:[#allocation2 + $0x160] sm:$0xff]
        %v673 = vld [vmem:[#allocation2 + $0x178] sm:$0xff]
        %vm674 = vcmask 130048
        %v676 = vsel %vm674, %v626, 0
        %v679 = vsel %vm674, %v627, 0
        %v682 = vsel %vm674, %v628, 0
        %v685 = vsel %vm674, %v629, 0
        %v688 = vsel %vm674, %v630, 0
        %v691 = vsel %vm674, %v631, 0
        %v694 = vsel %vm674, %v632, 0
        %v697 = vsel %vm674, %v633, 0
        %v700 = vsel %vm674, %v634, 0
        %v703 = vsel %vm674, %v635, 0
        %v706 = vsel %vm674, %v636, 0
        %v709 = vsel %vm674, %v637, 0
        %v712 = vsel %vm674, %v638, 0
        %v715 = vsel %vm674, %v639, 0
        %v718 = vsel %vm674, %v640, 0
        %v721 = vsel %vm674, %v641, 0
        %v724 = vsel %vm674, %v642, 0
        %v727 = vsel %vm674, %v643, 0
        %v730 = vsel %vm674, %v644, 0
        %v733 = vsel %vm674, %v645, 0
        %v736 = vsel %vm674, %v646, 0
        %v739 = vsel %vm674, %v647, 0
        %v742 = vsel %vm674, %v648, 0
        %v745 = vsel %vm674, %v649, 0
        %v748 = vsel %vm674, %v650, 0
        %v751 = vsel %vm674, %v651, 0
        %v754 = vsel %vm674, %v652, 0
        %v757 = vsel %vm674, %v653, 0
        %v760 = vsel %vm674, %v654, 0
        %v763 = vsel %vm674, %v655, 0
        %v766 = vsel %vm674, %v656, 0
        %v769 = vsel %vm674, %v657, 0
        %771 = vmatpush.xpose.msra.mxu0 %v769
        %772 = vmatpush.xpose.msra.mxu0 %v766
        %773 = vmatpush.xpose.msra.mxu0 %v763
        %774 = vmatpush.xpose.msra.mxu0 %v760
        %775 = vmatpush.xpose.msra.mxu0 %v757
        %776 = vmatpush.xpose.msra.mxu0 %v754
        %777 = vmatpush.xpose.msra.mxu0 %v751
        %778 = vmatpush.xpose.msra.mxu0 %v748
        %779 = vmatpush.xpose.msra.mxu0 %v745
        %780 = vmatpush.xpose.msra.mxu0 %v742
        %781 = vmatpush.xpose.msra.mxu0 %v739
        %782 = vmatpush.xpose.msra.mxu0 %v736
        %783 = vmatpush.xpose.msra.mxu0 %v733
        %784 = vmatpush.xpose.msra.mxu0 %v730
        %785 = vmatpush.xpose.msra.mxu0 %v727
        %786 = vmatpush.xpose.msra.mxu0 %v724
        %787 = vmatmul.f32.gmra.mxu0 %v676
        %v788 = vpop.f32.mrf.mxu0
        %v789 = vadd.f32 0.0, %v788
        %790 = vmatmul.f32.gmra.mxu0 %v679
        %v791 = vpop.f32.mrf.mxu0
        %v792 = vadd.f32 0.0, %v791
        %793 = vmatmul.f32.gmra.mxu0 %v682
        %v794 = vpop.f32.mrf.mxu0
        %v795 = vadd.f32 0.0, %v794
        %796 = vmatmul.f32.gmra.mxu0 %v685
        %v797 = vpop.f32.mrf.mxu0
        %v798 = vadd.f32 0.0, %v797
        %799 = vmatmul.f32.gmra.mxu0 %v688
        %v800 = vpop.f32.mrf.mxu0
        %v801 = vadd.f32 0.0, %v800
        %802 = vmatmul.f32.gmra.mxu0 %v691
        %v803 = vpop.f32.mrf.mxu0
        %v804 = vadd.f32 0.0, %v803
        %805 = vmatmul.f32.gmra.mxu0 %v694
        %v806 = vpop.f32.mrf.mxu0
        %v807 = vadd.f32 0.0, %v806
        %808 = vmatmul.f32.gmra.mxu0 %v697
        %v809 = vpop.f32.mrf.mxu0
        %v810 = vadd.f32 0.0, %v809
        %811 = vmatmul.f32.gmra.mxu0 %v700
        %v812 = vpop.f32.mrf.mxu0
        %v813 = vadd.f32 0.0, %v812
        %814 = vmatmul.f32.gmra.mxu0 %v703
        %v815 = vpop.f32.mrf.mxu0
        %v816 = vadd.f32 0.0, %v815
        %817 = vmatmul.f32.gmra.mxu0 %v706
        %v818 = vpop.f32.mrf.mxu0
        %v819 = vadd.f32 0.0, %v818
        %820 = vmatmul.f32.gmra.mxu0 %v709
        %v821 = vpop.f32.mrf.mxu0
        %v822 = vadd.f32 0.0, %v821
        %823 = vmatmul.f32.gmra.mxu0 %v712
        %v824 = vpop.f32.mrf.mxu0
        %v825 = vadd.f32 0.0, %v824
        %826 = vmatmul.f32.gmra.mxu0 %v715
        %v827 = vpop.f32.mrf.mxu0
        %v828 = vadd.f32 0.0, %v827
        %829 = vmatmul.f32.gmra.mxu0 %v718
        %v830 = vpop.f32.mrf.mxu0
        %v831 = vadd.f32 0.0, %v830
        %832 = vmatmul.f32.gmra.mxu0 %v721
        %v833 = vpop.f32.mrf.mxu0
        %v834 = vadd.f32 0.0, %v833
        %835 = vdwg.mxu0
        %836 = vmax.xlane.f32.xlu0 %v789
        %v837 = vpop.xlane.xlu0 %836
        %838 = vmax.xlane.f32.xlu0 %v792
        %v839 = vpop.xlane.xlu0 %838
        %840 = vmax.xlane.f32.xlu0 %v795
        %v841 = vpop.xlane.xlu0 %840
        %842 = vmax.xlane.f32.xlu0 %v798
        %v843 = vpop.xlane.xlu0 %842
        %844 = vmax.xlane.f32.xlu0 %v801
        %v845 = vpop.xlane.xlu0 %844
        %846 = vmax.xlane.f32.xlu0 %v804
        %v847 = vpop.xlane.xlu0 %846
        %848 = vmax.xlane.f32.xlu0 %v807
        %v849 = vpop.xlane.xlu0 %848
        %850 = vmax.xlane.f32.xlu0 %v810
        %v851 = vpop.xlane.xlu0 %850
        %852 = vmax.xlane.f32.xlu0 %v813
        %v853 = vpop.xlane.xlu0 %852
        %854 = vmax.xlane.f32.xlu0 %v816
        %v855 = vpop.xlane.xlu0 %854
        %856 = vmax.xlane.f32.xlu0 %v819
        %v857 = vpop.xlane.xlu0 %856
        %858 = vmax.xlane.f32.xlu0 %v822
        %v859 = vpop.xlane.xlu0 %858
        %860 = vmax.xlane.f32.xlu0 %v825
        %v861 = vpop.xlane.xlu0 %860
        %862 = vmax.xlane.f32.xlu0 %v828
        %v863 = vpop.xlane.xlu0 %862
        %864 = vmax.xlane.f32.xlu0 %v831
        %v865 = vpop.xlane.xlu0 %864
        %866 = vmax.xlane.f32.xlu0 %v834
        %v867 = vpop.xlane.xlu0 %866
        %v868 = vsub.f32 %v789, %v837
        %v869 = vsub.f32 %v792, %v839
        %v870 = vsub.f32 %v795, %v841
        %v871 = vsub.f32 %v798, %v843
        %v872 = vsub.f32 %v801, %v845
        %v873 = vsub.f32 %v804, %v847
        %v874 = vsub.f32 %v807, %v849
        %v875 = vsub.f32 %v810, %v851
        %v876 = vsub.f32 %v813, %v853
        %v877 = vsub.f32 %v816, %v855
        %v878 = vsub.f32 %v819, %v857
        %v879 = vsub.f32 %v822, %v859
        %v880 = vsub.f32 %v825, %v861
        %v881 = vsub.f32 %v828, %v863
        %v882 = vsub.f32 %v831, %v865
        %v883 = vsub.f32 %v834, %v867
        %v884 = vmul.f32 %v868, 1.442695
        %v885 = vpow.pop %v884
        %v886 = vmul.f32 %v869, 1.442695
        %v887 = vpow.pop %v886
        %v888 = vmul.f32 %v870, 1.442695
        %v889 = vpow.pop %v888
        %v890 = vmul.f32 %v871, 1.442695
        %v891 = vpow.pop %v890
        %v892 = vmul.f32 %v872, 1.442695
        %v893 = vpow.pop %v892
        %v894 = vmul.f32 %v873, 1.442695
        %v895 = vpow.pop %v894
        %v896 = vmul.f32 %v874, 1.442695
        %v897 = vpow.pop %v896
        %v898 = vmul.f32 %v875, 1.442695
        %v899 = vpow.pop %v898
        %v900 = vmul.f32 %v876, 1.442695
        %v901 = vpow.pop %v900
        %v902 = vmul.f32 %v877, 1.442695
        %v903 = vpow.pop %v902
        %v904 = vmul.f32 %v878, 1.442695
        %v905 = vpow.pop %v904
        %v906 = vmul.f32 %v879, 1.442695
        %v907 = vpow.pop %v906
        %v908 = vmul.f32 %v880, 1.442695
        %v909 = vpow.pop %v908
        %v910 = vmul.f32 %v881, 1.442695
        %v911 = vpow.pop %v910
        %v912 = vmul.f32 %v882, 1.442695
        %v913 = vpow.pop %v912
        %v914 = vmul.f32 %v883, 1.442695
        %v915 = vpow.pop %v914
        %916 = vadd.xlane.f32.xlu0 %v885
        %v917 = vpop.xlane.xlu0 %916
        %918 = vadd.xlane.f32.xlu0 %v887
        %v919 = vpop.xlane.xlu0 %918
        %920 = vadd.xlane.f32.xlu0 %v889
        %v921 = vpop.xlane.xlu0 %920
        %922 = vadd.xlane.f32.xlu0 %v891
        %v923 = vpop.xlane.xlu0 %922
        %924 = vadd.xlane.f32.xlu0 %v893
        %v925 = vpop.xlane.xlu0 %924
        %926 = vadd.xlane.f32.xlu0 %v895
        %v927 = vpop.xlane.xlu0 %926
        %928 = vadd.xlane.f32.xlu0 %v897
        %v929 = vpop.xlane.xlu0 %928
        %930 = vadd.xlane.f32.xlu0 %v899
        %v931 = vpop.xlane.xlu0 %930
        %932 = vadd.xlane.f32.xlu0 %v901
        %v933 = vpop.xlane.xlu0 %932
        %934 = vadd.xlane.f32.xlu0 %v903
        %v935 = vpop.xlane.xlu0 %934
        %936 = vadd.xlane.f32.xlu0 %v905
        %v937 = vpop.xlane.xlu0 %936
        %938 = vadd.xlane.f32.xlu0 %v907
        %v939 = vpop.xlane.xlu0 %938
        %940 = vadd.xlane.f32.xlu0 %v909
        %v941 = vpop.xlane.xlu0 %940
        %942 = vadd.xlane.f32.xlu0 %v911
        %v943 = vpop.xlane.xlu0 %942
        %944 = vadd.xlane.f32.xlu0 %v913
        %v945 = vpop.xlane.xlu0 %944
        %946 = vadd.xlane.f32.xlu0 %v915
        %v947 = vpop.xlane.xlu0 %946
        %v948 = vrcp.pop %v917
        %v949 = vrcp.pop %v919
        %v950 = vrcp.pop %v921
        %v951 = vrcp.pop %v923
        %v952 = vrcp.pop %v925
        %v953 = vrcp.pop %v927
        %v954 = vrcp.pop %v929
        %v955 = vrcp.pop %v931
        %v956 = vrcp.pop %v933
        %v957 = vrcp.pop %v935
        %v958 = vrcp.pop %v937
        %v959 = vrcp.pop %v939
        %v960 = vrcp.pop %v941
        %v961 = vrcp.pop %v943
        %v962 = vrcp.pop %v945
        %v963 = vrcp.pop %v947
        %v964 = vmul.f32 %v885, %v948
        %v965 = vmul.f32 %v887, %v949
        %v966 = vmul.f32 %v889, %v950
        %v967 = vmul.f32 %v891, %v951
        %v968 = vmul.f32 %v893, %v952
        %v969 = vmul.f32 %v895, %v953
        %v970 = vmul.f32 %v897, %v954
        %v971 = vmul.f32 %v899, %v955
        %v972 = vmul.f32 %v901, %v956
        %v973 = vmul.f32 %v903, %v957
        %v974 = vmul.f32 %v905, %v958
        %v975 = vmul.f32 %v907, %v959
        %v976 = vmul.f32 %v909, %v960
        %v977 = vmul.f32 %v911, %v961
        %v978 = vmul.f32 %v913, %v962
        %v979 = vmul.f32 %v915, %v963
        %980 = vst [vmem:[#allocation3] sm:$0xff] %v964
        %981 = vst [vmem:[#allocation3 + $0x8] sm:$0xff] %v965
        %982 = vst [vmem:[#allocation3 + $0x10] sm:$0xff] %v966
        %983 = vst [vmem:[#allocation3 + $0x18] sm:$0xff] %v967
        %984 = vst [vmem:[#allocation3 + $0x20] sm:$0xff] %v968
        %985 = vst [vmem:[#allocation3 + $0x28] sm:$0xff] %v969
        %986 = vst [vmem:[#allocation3 + $0x30] sm:$0xff] %v970
        %987 = vst [vmem:[#allocation3 + $0x38] sm:$0xff] %v971
        %988 = vst [vmem:[#allocation3 + $0x40] sm:$0xff] %v972
        %989 = vst [vmem:[#allocation3 + $0x48] sm:$0xff] %v973
        %990 = vst [vmem:[#allocation3 + $0x50] sm:$0xff] %v974
        %991 = vst [vmem:[#allocation3 + $0x58] sm:$0xff] %v975
        %992 = vst [vmem:[#allocation3 + $0x60] sm:$0xff] %v976
        %993 = vst [vmem:[#allocation3 + $0x68] sm:$0xff] %v977
        %994 = vst [vmem:[#allocation3 + $0x70] sm:$0xff] %v978
        %995 = vst [vmem:[#allocation3 + $0x78] sm:$0xff] %v979
        %s996 = smul.u32 %s26, 1024
        %s997 = scalar_lea.hbm %s6, %s996
        // Predicated region
        $region57: #{tpu_custom_call.1} parent=39 // pred_check
          _
        $region58: #{tpu_custom_call.1} parent=39 // pred_check_branch
          %999 = sbr.rel target = $region60
        $region59: #{tpu_custom_call.1} parent=39 // pred_region
          %1000 = sst [smem:[#allocation16]] [#allocation15]
          %1001 = sst [smem:[#allocation17]] [#allocation14]
        $region60: #{tpu_custom_call.1} parent=39 // pred_fallthru
          _
        %1003 = shalt.err (0)
        %s1005 = sshll.u32 [#allocation3], 4
        %s1006 = int_to_ptr.vmem [resolvable:$true] %s1005
        %s1007 = sshll.u32 %s997, 4
        %s1008 = int_to_ptr.hbm [resolvable:$true] %s1007
        %1010 = dma.vmem_to_hbm [thread:$0]  %s1006, 2048, %s1008, [#allocation4]
        %v1011 = vpack.c.bf16 %v965, %v964
        %v1012 = vpack.c.bf16 %v967, %v966
        %v1013 = vpack.c.bf16 %v969, %v968
        %v1014 = vpack.c.bf16 %v971, %v970
        %v1015 = vpack.c.bf16 %v973, %v972
        %v1016 = vpack.c.bf16 %v975, %v974
        %v1017 = vpack.c.bf16 %v977, %v976
        %v1018 = vpack.c.bf16 %v979, %v978
        %v1019 = vpack.c.bf16 %v659, %v658
        %v1020 = vpack.c.bf16 %v661, %v660
        %v1021 = vpack.c.bf16 %v663, %v662
        %v1022 = vpack.c.bf16 %v665, %v664
        %v1023 = vpack.c.bf16 %v667, %v666
        %v1024 = vpack.c.bf16 %v669, %v668
        %v1025 = vpack.c.bf16 %v671, %v670
        %v1026 = vpack.c.bf16 %v673, %v672
        %1027 = vmatpush.bf16.msra.mxu0 %v1026
        %1028 = vmatpush.bf16.msra.mxu0 %v1025
        %1029 = vmatpush.bf16.msra.mxu0 %v1024
        %1030 = vmatpush.bf16.msra.mxu0 %v1023
        %1031 = vmatpush.bf16.msra.mxu0 %v1022
        %1032 = vmatpush.bf16.msra.mxu0 %v1021
        %1033 = vmatpush.bf16.msra.mxu0 %v1020
        %1034 = vmatpush.bf16.msra.mxu0 %v1019
        %1035 = vmatmul.bf16.gmra.mxu0 %v1011
        %v1036 = vpop.f32.mrf.mxu0
        %v1037 = vadd.f32 0.0, %v1036
        %v1038 = vpop.f32.mrf.mxu0
        %v1039 = vadd.f32 0.0, %v1038
        %1040 = vmatmul.bf16.gmra.mxu0 %v1012
        %v1041 = vpop.f32.mrf.mxu0
        %v1042 = vadd.f32 0.0, %v1041
        %v1043 = vpop.f32.mrf.mxu0
        %v1044 = vadd.f32 0.0, %v1043
        %1045 = vmatmul.bf16.gmra.mxu0 %v1013
        %v1046 = vpop.f32.mrf.mxu0
        %v1047 = vadd.f32 0.0, %v1046
        %v1048 = vpop.f32.mrf.mxu0
        %v1049 = vadd.f32 0.0, %v1048
        %1050 = vmatmul.bf16.gmra.mxu0 %v1014
        %v1051 = vpop.f32.mrf.mxu0
        %v1052 = vadd.f32 0.0, %v1051
        %v1053 = vpop.f32.mrf.mxu0
        %v1054 = vadd.f32 0.0, %v1053
        %1055 = vmatmul.bf16.gmra.mxu0 %v1015
        %v1056 = vpop.f32.mrf.mxu0
        %v1057 = vadd.f32 0.0, %v1056
        %v1058 = vpop.f32.mrf.mxu0
        %v1059 = vadd.f32 0.0, %v1058
        %1060 = vmatmul.bf16.gmra.mxu0 %v1016
        %v1061 = vpop.f32.mrf.mxu0
        %v1062 = vadd.f32 0.0, %v1061
        %v1063 = vpop.f32.mrf.mxu0
        %v1064 = vadd.f32 0.0, %v1063
        %1065 = vmatmul.bf16.gmra.mxu0 %v1017
        %v1066 = vpop.f32.mrf.mxu0
        %v1067 = vadd.f32 0.0, %v1066
        %v1068 = vpop.f32.mrf.mxu0
        %v1069 = vadd.f32 0.0, %v1068
        %1070 = vmatmul.bf16.gmra.mxu0 %v1018
        %v1071 = vpop.f32.mrf.mxu0
        %v1072 = vadd.f32 0.0, %v1071
        %v1073 = vpop.f32.mrf.mxu0
        %v1074 = vadd.f32 0.0, %v1073
        %1075 = vdwg.mxu0
        %v1076 = vld [vmem:[#allocation2] sm:$0xff]
        %v1077 = vld [vmem:[#allocation2 + $0x18] sm:$0xff]
        %v1078 = vld [vmem:[#allocation2 + $0x30] sm:$0xff]
        %v1079 = vld [vmem:[#allocation2 + $0x48] sm:$0xff]
        %v1080 = vld [vmem:[#allocation2 + $0x60] sm:$0xff]
        %v1081 = vld [vmem:[#allocation2 + $0x78] sm:$0xff]
        %v1082 = vld [vmem:[#allocation2 + $0x90] sm:$0xff]
        %v1083 = vld [vmem:[#allocation2 + $0xa8] sm:$0xff]
        %v1084 = vld [vmem:[#allocation2 + $0xc0] sm:$0xff]
        %v1085 = vld [vmem:[#allocation2 + $0xd8] sm:$0xff]
        %v1086 = vld [vmem:[#allocation2 + $0xf0] sm:$0xff]
        %v1087 = vld [vmem:[#allocation2 + $0x108] sm:$0xff]
        %v1088 = vld [vmem:[#allocation2 + $0x120] sm:$0xff]
        %v1089 = vld [vmem:[#allocation2 + $0x138] sm:$0xff]
        %v1090 = vld [vmem:[#allocation2 + $0x150] sm:$0xff]
        %v1091 = vld [vmem:[#allocation2 + $0x168] sm:$0xff]
        %v1092 = vmul.f32 %v1076, 0.25
        %v1093 = vmul.f32 %v1077, 0.25
        %v1094 = vmul.f32 %v1078, 0.25
        %v1095 = vmul.f32 %v1079, 0.25
        %v1096 = vmul.f32 %v1080, 0.25
        %v1097 = vmul.f32 %v1081, 0.25
        %v1098 = vmul.f32 %v1082, 0.25
        %v1099 = vmul.f32 %v1083, 0.25
        %v1100 = vmul.f32 %v1084, 0.25
        %v1101 = vmul.f32 %v1085, 0.25
        %v1102 = vmul.f32 %v1086, 0.25
        %v1103 = vmul.f32 %v1087, 0.25
        %v1104 = vmul.f32 %v1088, 0.25
        %v1105 = vmul.f32 %v1089, 0.25
        %v1106 = vmul.f32 %v1090, 0.25
        %v1107 = vmul.f32 %v1091, 0.25
        %v1108 = vld [vmem:[#allocation2 + $0x8] sm:$0xff]
        %v1109 = vld [vmem:[#allocation2 + $0x20] sm:$0xff]
        %v1110 = vld [vmem:[#allocation2 + $0x38] sm:$0xff]
        %v1111 = vld [vmem:[#allocation2 + $0x50] sm:$0xff]
        %v1112 = vld [vmem:[#allocation2 + $0x68] sm:$0xff]
        %v1113 = vld [vmem:[#allocation2 + $0x80] sm:$0xff]
        %v1114 = vld [vmem:[#allocation2 + $0x98] sm:$0xff]
        %v1115 = vld [vmem:[#allocation2 + $0xb0] sm:$0xff]
        %v1116 = vld [vmem:[#allocation2 + $0xc8] sm:$0xff]
        %v1117 = vld [vmem:[#allocation2 + $0xe0] sm:$0xff]
        %v1118 = vld [vmem:[#allocation2 + $0xf8] sm:$0xff]
        %v1119 = vld [vmem:[#allocation2 + $0x110] sm:$0xff]
        %v1120 = vld [vmem:[#allocation2 + $0x128] sm:$0xff]
        %v1121 = vld [vmem:[#allocation2 + $0x140] sm:$0xff]
        %v1122 = vld [vmem:[#allocation2 + $0x158] sm:$0xff]
        %v1123 = vld [vmem:[#allocation2 + $0x170] sm:$0xff]
        %v1124 = vld [vmem:[#allocation2 + $0x10] sm:$0xff]
        %v1125 = vld [vmem:[#allocation2 + $0x28] sm:$0xff]
        %v1126 = vld [vmem:[#allocation2 + $0x40] sm:$0xff]
        %v1127 = vld [vmem:[#allocation2 + $0x58] sm:$0xff]
        %v1128 = vld [vmem:[#allocation2 + $0x70] sm:$0xff]
        %v1129 = vld [vmem:[#allocation2 + $0x88] sm:$0xff]
        %v1130 = vld [vmem:[#allocation2 + $0xa0] sm:$0xff]
        %v1131 = vld [vmem:[#allocation2 + $0xb8] sm:$0xff]
        %v1132 = vld [vmem:[#allocation2 + $0xd0] sm:$0xff]
        %v1133 = vld [vmem:[#allocation2 + $0xe8] sm:$0xff]
        %v1134 = vld [vmem:[#allocation2 + $0x100] sm:$0xff]
        %v1135 = vld [vmem:[#allocation2 + $0x118] sm:$0xff]
        %v1136 = vld [vmem:[#allocation2 + $0x130] sm:$0xff]
        %v1137 = vld [vmem:[#allocation2 + $0x148] sm:$0xff]
        %v1138 = vld [vmem:[#allocation2 + $0x160] sm:$0xff]
        %v1139 = vld [vmem:[#allocation2 + $0x178] sm:$0xff]
        %1156 = vrot.lane.b32.xlu0 %v1092, 112
        %v1157 = vpop.permute.xlu0 %1156
        %1158 = vrot.lane.b32.xlu0 %v1093, 112
        %v1159 = vpop.permute.xlu0 %1158
        %1160 = vrot.lane.b32.xlu0 %v1094, 112
        %v1161 = vpop.permute.xlu0 %1160
        %1162 = vrot.lane.b32.xlu0 %v1095, 112
        %v1163 = vpop.permute.xlu0 %1162
        %1164 = vrot.lane.b32.xlu0 %v1096, 112
        %v1165 = vpop.permute.xlu0 %1164
        %1166 = vrot.lane.b32.xlu0 %v1097, 112
        %v1167 = vpop.permute.xlu0 %1166
        %1168 = vrot.lane.b32.xlu0 %v1098, 112
        %v1169 = vpop.permute.xlu0 %1168
        %1170 = vrot.lane.b32.xlu0 %v1099, 112
        %v1171 = vpop.permute.xlu0 %1170
        %1172 = vrot.lane.b32.xlu0 %v1100, 112
        %v1173 = vpop.permute.xlu0 %1172
        %1174 = vrot.lane.b32.xlu0 %v1101, 112
        %v1175 = vpop.permute.xlu0 %1174
        %1176 = vrot.lane.b32.xlu0 %v1102, 112
        %v1177 = vpop.permute.xlu0 %1176
        %1178 = vrot.lane.b32.xlu0 %v1103, 112
        %v1179 = vpop.permute.xlu0 %1178
        %1180 = vrot.lane.b32.xlu0 %v1104, 112
        %v1181 = vpop.permute.xlu0 %1180
        %1182 = vrot.lane.b32.xlu0 %v1105, 112
        %v1183 = vpop.permute.xlu0 %1182
        %1184 = vrot.lane.b32.xlu0 %v1106, 112
        %v1185 = vpop.permute.xlu0 %1184
        %1186 = vrot.lane.b32.xlu0 %v1107, 112
        %v1187 = vpop.permute.xlu0 %1186
        %1204 = vrot.lane.b32.xlu0 %v1108, 112
        %v1205 = vpop.permute.xlu0 %1204
        %1206 = vrot.lane.b32.xlu0 %v1109, 112
        %v1207 = vpop.permute.xlu0 %1206
        %1208 = vrot.lane.b32.xlu0 %v1110, 112
        %v1209 = vpop.permute.xlu0 %1208
        %1210 = vrot.lane.b32.xlu0 %v1111, 112
        %v1211 = vpop.permute.xlu0 %1210
        %1212 = vrot.lane.b32.xlu0 %v1112, 112
        %v1213 = vpop.permute.xlu0 %1212
        %1214 = vrot.lane.b32.xlu0 %v1113, 112
        %v1215 = vpop.permute.xlu0 %1214
        %1216 = vrot.lane.b32.xlu0 %v1114, 112
        %v1217 = vpop.permute.xlu0 %1216
        %1218 = vrot.lane.b32.xlu0 %v1115, 112
        %v1219 = vpop.permute.xlu0 %1218
        %1220 = vrot.lane.b32.xlu0 %v1116, 112
        %v1221 = vpop.permute.xlu0 %1220
        %1222 = vrot.lane.b32.xlu0 %v1117, 112
        %v1223 = vpop.permute.xlu0 %1222
        %1224 = vrot.lane.b32.xlu0 %v1118, 112
        %v1225 = vpop.permute.xlu0 %1224
        %1226 = vrot.lane.b32.xlu0 %v1119, 112
        %v1227 = vpop.permute.xlu0 %1226
        %1228 = vrot.lane.b32.xlu0 %v1120, 112
        %v1229 = vpop.permute.xlu0 %1228
        %1230 = vrot.lane.b32.xlu0 %v1121, 112
        %v1231 = vpop.permute.xlu0 %1230
        %1232 = vrot.lane.b32.xlu0 %v1122, 112
        %v1233 = vpop.permute.xlu0 %1232
        %1234 = vrot.lane.b32.xlu0 %v1123, 112
        %v1235 = vpop.permute.xlu0 %1234
        %v1236 = vsel %vm674, %v1157, 0
        %v1238 = vsel %vm674, %v1159, 0
        %v1240 = vsel %vm674, %v1161, 0
        %v1242 = vsel %vm674, %v1163, 0
        %v1244 = vsel %vm674, %v1165, 0
        %v1246 = vsel %vm674, %v1167, 0
        %v1248 = vsel %vm674, %v1169, 0
        %v1250 = vsel %vm674, %v1171, 0
        %v1252 = vsel %vm674, %v1173, 0
        %v1254 = vsel %vm674, %v1175, 0
        %v1256 = vsel %vm674, %v1177, 0
        %v1258 = vsel %vm674, %v1179, 0
        %v1260 = vsel %vm674, %v1181, 0
        %v1262 = vsel %vm674, %v1183, 0
        %v1264 = vsel %vm674, %v1185, 0
        %v1266 = vsel %vm674, %v1187, 0
        %v1268 = vsel %vm674, %v1205, 0
        %v1270 = vsel %vm674, %v1207, 0
        %v1272 = vsel %vm674, %v1209, 0
        %v1274 = vsel %vm674, %v1211, 0
        %v1276 = vsel %vm674, %v1213, 0
        %v1278 = vsel %vm674, %v1215, 0
        %v1280 = vsel %vm674, %v1217, 0
        %v1282 = vsel %vm674, %v1219, 0
        %v1284 = vsel %vm674, %v1221, 0
        %v1286 = vsel %vm674, %v1223, 0
        %v1288 = vsel %vm674, %v1225, 0
        %v1290 = vsel %vm674, %v1227, 0
        %v1292 = vsel %vm674, %v1229, 0
        %v1294 = vsel %vm674, %v1231, 0
        %v1296 = vsel %vm674, %v1233, 0
        %v1298 = vsel %vm674, %v1235, 0
        %1300 = vmatpush.xpose.msra.mxu0 %v1298
        %1301 = vmatpush.xpose.msra.mxu0 %v1296
        %1302 = vmatpush.xpose.msra.mxu0 %v1294
        %1303 = vmatpush.xpose.msra.mxu0 %v1292
        %1304 = vmatpush.xpose.msra.mxu0 %v1290
        %1305 = vmatpush.xpose.msra.mxu0 %v1288
        %1306 = vmatpush.xpose.msra.mxu0 %v1286
        %1307 = vmatpush.xpose.msra.mxu0 %v1284
        %1308 = vmatpush.xpose.msra.mxu0 %v1282
        %1309 = vmatpush.xpose.msra.mxu0 %v1280
        %1310 = vmatpush.xpose.msra.mxu0 %v1278
        %1311 = vmatpush.xpose.msra.mxu0 %v1276
        %1312 = vmatpush.xpose.msra.mxu0 %v1274
        %1313 = vmatpush.xpose.msra.mxu0 %v1272
        %1314 = vmatpush.xpose.msra.mxu0 %v1270
        %1315 = vmatpush.xpose.msra.mxu0 %v1268
        %1316 = vmatmul.f32.gmra.mxu0 %v1236
        %v1317 = vpop.f32.mrf.mxu0
        %v1318 = vadd.f32 0.0, %v1317
        %1319 = vmatmul.f32.gmra.mxu0 %v1238
        %v1320 = vpop.f32.mrf.mxu0
        %v1321 = vadd.f32 0.0, %v1320
        %1322 = vmatmul.f32.gmra.mxu0 %v1240
        %v1323 = vpop.f32.mrf.mxu0
        %v1324 = vadd.f32 0.0, %v1323
        %1325 = vmatmul.f32.gmra.mxu0 %v1242
        %v1326 = vpop.f32.mrf.mxu0
        %v1327 = vadd.f32 0.0, %v1326
        %1328 = vmatmul.f32.gmra.mxu0 %v1244
        %v1329 = vpop.f32.mrf.mxu0
        %v1330 = vadd.f32 0.0, %v1329
        %1331 = vmatmul.f32.gmra.mxu0 %v1246
        %v1332 = vpop.f32.mrf.mxu0
        %v1333 = vadd.f32 0.0, %v1332
        %1334 = vmatmul.f32.gmra.mxu0 %v1248
        %v1335 = vpop.f32.mrf.mxu0
        %v1336 = vadd.f32 0.0, %v1335
        %1337 = vmatmul.f32.gmra.mxu0 %v1250
        %v1338 = vpop.f32.mrf.mxu0
        %v1339 = vadd.f32 0.0, %v1338
        %1340 = vmatmul.f32.gmra.mxu0 %v1252
        %v1341 = vpop.f32.mrf.mxu0
        %v1342 = vadd.f32 0.0, %v1341
        %1343 = vmatmul.f32.gmra.mxu0 %v1254
        %v1344 = vpop.f32.mrf.mxu0
        %v1345 = vadd.f32 0.0, %v1344
        %1346 = vmatmul.f32.gmra.mxu0 %v1256
        %v1347 = vpop.f32.mrf.mxu0
        %v1348 = vadd.f32 0.0, %v1347
        %1349 = vmatmul.f32.gmra.mxu0 %v1258
        %v1350 = vpop.f32.mrf.mxu0
        %v1351 = vadd.f32 0.0, %v1350
        %1352 = vmatmul.f32.gmra.mxu0 %v1260
        %v1353 = vpop.f32.mrf.mxu0
        %v1354 = vadd.f32 0.0, %v1353
        %1355 = vmatmul.f32.gmra.mxu0 %v1262
        %v1356 = vpop.f32.mrf.mxu0
        %v1357 = vadd.f32 0.0, %v1356
        %1358 = vmatmul.f32.gmra.mxu0 %v1264
        %v1359 = vpop.f32.mrf.mxu0
        %v1360 = vadd.f32 0.0, %v1359
        %1361 = vmatmul.f32.gmra.mxu0 %v1266
        %v1362 = vpop.f32.mrf.mxu0
        %v1363 = vadd.f32 0.0, %v1362
        %1364 = vdwg.mxu0
        %1365 = vmax.xlane.f32.xlu0 %v1318
        %v1366 = vpop.xlane.xlu0 %1365
        %1367 = vmax.xlane.f32.xlu0 %v1321
        %v1368 = vpop.xlane.xlu0 %1367
        %1369 = vmax.xlane.f32.xlu0 %v1324
        %v1370 = vpop.xlane.xlu0 %1369
        %1371 = vmax.xlane.f32.xlu0 %v1327
        %v1372 = vpop.xlane.xlu0 %1371
        %1373 = vmax.xlane.f32.xlu0 %v1330
        %v1374 = vpop.xlane.xlu0 %1373
        %1375 = vmax.xlane.f32.xlu0 %v1333
        %v1376 = vpop.xlane.xlu0 %1375
        %1377 = vmax.xlane.f32.xlu0 %v1336
        %v1378 = vpop.xlane.xlu0 %1377
        %1379 = vmax.xlane.f32.xlu0 %v1339
        %v1380 = vpop.xlane.xlu0 %1379
        %1381 = vmax.xlane.f32.xlu0 %v1342
        %v1382 = vpop.xlane.xlu0 %1381
        %1383 = vmax.xlane.f32.xlu0 %v1345
        %v1384 = vpop.xlane.xlu0 %1383
        %1385 = vmax.xlane.f32.xlu0 %v1348
        %v1386 = vpop.xlane.xlu0 %1385
        %1387 = vmax.xlane.f32.xlu0 %v1351
        %v1388 = vpop.xlane.xlu0 %1387
        %1389 = vmax.xlane.f32.xlu0 %v1354
        %v1390 = vpop.xlane.xlu0 %1389
        %1391 = vmax.xlane.f32.xlu0 %v1357
        %v1392 = vpop.xlane.xlu0 %1391
        %1393 = vmax.xlane.f32.xlu0 %v1360
        %v1394 = vpop.xlane.xlu0 %1393
        %1395 = vmax.xlane.f32.xlu0 %v1363
        %v1396 = vpop.xlane.xlu0 %1395
        %v1397 = vsub.f32 %v1318, %v1366
        %v1398 = vsub.f32 %v1321, %v1368
        %v1399 = vsub.f32 %v1324, %v1370
        %v1400 = vsub.f32 %v1327, %v1372
        %v1401 = vsub.f32 %v1330, %v1374
        %v1402 = vsub.f32 %v1333, %v1376
        %v1403 = vsub.f32 %v1336, %v1378
        %v1404 = vsub.f32 %v1339, %v1380
        %v1405 = vsub.f32 %v1342, %v1382
        %v1406 = vsub.f32 %v1345, %v1384
        %v1407 = vsub.f32 %v1348, %v1386
        %v1408 = vsub.f32 %v1351, %v1388
        %v1409 = vsub.f32 %v1354, %v1390
        %v1410 = vsub.f32 %v1357, %v1392
        %v1411 = vsub.f32 %v1360, %v1394
        %v1412 = vsub.f32 %v1363, %v1396
        %v1413 = vmul.f32 %v1397, 1.442695
        %v1414 = vpow.pop %v1413
        %v1415 = vmul.f32 %v1398, 1.442695
        %v1416 = vpow.pop %v1415
        %v1417 = vmul.f32 %v1399, 1.442695
        %v1418 = vpow.pop %v1417
        %v1419 = vmul.f32 %v1400, 1.442695
        %v1420 = vpow.pop %v1419
        %v1421 = vmul.f32 %v1401, 1.442695
        %v1422 = vpow.pop %v1421
        %v1423 = vmul.f32 %v1402, 1.442695
        %v1424 = vpow.pop %v1423
        %v1425 = vmul.f32 %v1403, 1.442695
        %v1426 = vpow.pop %v1425
        %v1427 = vmul.f32 %v1404, 1.442695
        %v1428 = vpow.pop %v1427
        %v1429 = vmul.f32 %v1405, 1.442695
        %v1430 = vpow.pop %v1429
        %v1431 = vmul.f32 %v1406, 1.442695
        %v1432 = vpow.pop %v1431
        %v1433 = vmul.f32 %v1407, 1.442695
        %v1434 = vpow.pop %v1433
        %v1435 = vmul.f32 %v1408, 1.442695
        %v1436 = vpow.pop %v1435
        %v1437 = vmul.f32 %v1409, 1.442695
        %v1438 = vpow.pop %v1437
        %v1439 = vmul.f32 %v1410, 1.442695
        %v1440 = vpow.pop %v1439
        %v1441 = vmul.f32 %v1411, 1.442695
        %v1442 = vpow.pop %v1441
        %v1443 = vmul.f32 %v1412, 1.442695
        %v1444 = vpow.pop %v1443
        %1445 = vadd.xlane.f32.xlu0 %v1414
        %v1446 = vpop.xlane.xlu0 %1445
        %1447 = vadd.xlane.f32.xlu0 %v1416
        %v1448 = vpop.xlane.xlu0 %1447
        %1449 = vadd.xlane.f32.xlu0 %v1418
        %v1450 = vpop.xlane.xlu0 %1449
        %1451 = vadd.xlane.f32.xlu0 %v1420
        %v1452 = vpop.xlane.xlu0 %1451
        %1453 = vadd.xlane.f32.xlu0 %v1422
        %v1454 = vpop.xlane.xlu0 %1453
        %1455 = vadd.xlane.f32.xlu0 %v1424
        %v1456 = vpop.xlane.xlu0 %1455
        %1457 = vadd.xlane.f32.xlu0 %v1426
        %v1458 = vpop.xlane.xlu0 %1457
        %1459 = vadd.xlane.f32.xlu0 %v1428
        %v1460 = vpop.xlane.xlu0 %1459
        %1461 = vadd.xlane.f32.xlu0 %v1430
        %v1462 = vpop.xlane.xlu0 %1461
        %1463 = vadd.xlane.f32.xlu0 %v1432
        %v1464 = vpop.xlane.xlu0 %1463
        %1465 = vadd.xlane.f32.xlu0 %v1434
        %v1466 = vpop.xlane.xlu0 %1465
        %1467 = vadd.xlane.f32.xlu0 %v1436
        %v1468 = vpop.xlane.xlu0 %1467
        %1469 = vadd.xlane.f32.xlu0 %v1438
        %v1470 = vpop.xlane.xlu0 %1469
        %1471 = vadd.xlane.f32.xlu0 %v1440
        %v1472 = vpop.xlane.xlu0 %1471
        %1473 = vadd.xlane.f32.xlu0 %v1442
        %v1474 = vpop.xlane.xlu0 %1473
        %1475 = vadd.xlane.f32.xlu0 %v1444
        %v1476 = vpop.xlane.xlu0 %1475
        %v1477 = vrcp.pop %v1446
        %v1478 = vrcp.pop %v1448
        %v1479 = vrcp.pop %v1450
        %v1480 = vrcp.pop %v1452
        %v1481 = vrcp.pop %v1454
        %v1482 = vrcp.pop %v1456
        %v1483 = vrcp.pop %v1458
        %v1484 = vrcp.pop %v1460
        %v1485 = vrcp.pop %v1462
        %v1486 = vrcp.pop %v1464
        %v1487 = vrcp.pop %v1466
        %v1488 = vrcp.pop %v1468
        %v1489 = vrcp.pop %v1470
        %v1490 = vrcp.pop %v1472
        %v1491 = vrcp.pop %v1474
        %v1492 = vrcp.pop %v1476
        %v1493 = vmul.f32 %v1414, %v1477
        %v1494 = vmul.f32 %v1416, %v1478
        %v1495 = vmul.f32 %v1418, %v1479
        %v1496 = vmul.f32 %v1420, %v1480
        %v1497 = vmul.f32 %v1422, %v1481
        %v1498 = vmul.f32 %v1424, %v1482
        %v1499 = vmul.f32 %v1426, %v1483
        %v1500 = vmul.f32 %v1428, %v1484
        %v1501 = vmul.f32 %v1430, %v1485
        %v1502 = vmul.f32 %v1432, %v1486
        %v1503 = vmul.f32 %v1434, %v1487
        %v1504 = vmul.f32 %v1436, %v1488
        %v1505 = vmul.f32 %v1438, %v1489
        %v1506 = vmul.f32 %v1440, %v1490
        %v1507 = vmul.f32 %v1442, %v1491
        %v1508 = vmul.f32 %v1444, %v1492
        %s1509 = scalar_lea.vmem [#allocation3], 128
        %1510 = vst [vmem:[%s1509] sm:$0xff] %v1493
        %1511 = vst [vmem:[%s1509 + $0x8] sm:$0xff] %v1494
        %1512 = vst [vmem:[%s1509 + $0x10] sm:$0xff] %v1495
        %1513 = vst [vmem:[%s1509 + $0x18] sm:$0xff] %v1496
        %1514 = vst [vmem:[%s1509 + $0x20] sm:$0xff] %v1497
        %1515 = vst [vmem:[%s1509 + $0x28] sm:$0xff] %v1498
        %1516 = vst [vmem:[%s1509 + $0x30] sm:$0xff] %v1499
        %1517 = vst [vmem:[%s1509 + $0x38] sm:$0xff] %v1500
        %1518 = vst [vmem:[%s1509 + $0x40] sm:$0xff] %v1501
        %1519 = vst [vmem:[%s1509 + $0x48] sm:$0xff] %v1502
        %1520 = vst [vmem:[%s1509 + $0x50] sm:$0xff] %v1503
        %1521 = vst [vmem:[%s1509 + $0x58] sm:$0xff] %v1504
        %1522 = vst [vmem:[%s1509 + $0x60] sm:$0xff] %v1505
        %1523 = vst [vmem:[%s1509 + $0x68] sm:$0xff] %v1506
        %1524 = vst [vmem:[%s1509 + $0x70] sm:$0xff] %v1507
        %1525 = vst [vmem:[%s1509 + $0x78] sm:$0xff] %v1508
        %s1526 = sadd.s32 128, %s996
        %s1527 = scalar_lea.hbm %s6, %s1526
        %s1528 = scalar_lea.sflag [#allocation4], 1
        // Predicated region
        $region61: #{tpu_custom_call.1} parent=39 // pred_check
          _
        $region62: #{tpu_custom_call.1} parent=39 // pred_check_branch
          %1530 = sbr.rel target = $region64
        $region63: #{tpu_custom_call.1} parent=39 // pred_region
          %1531 = sst [smem:[#allocation16]] [#allocation19]
          %1532 = sst [smem:[#allocation17]] [#allocation18]
        $region64: #{tpu_custom_call.1} parent=39 // pred_fallthru
          _
        %1534 = shalt.err (0)
        %s1536 = sshll.u32 %s1509, 4
        %s1537 = int_to_ptr.vmem [resolvable:$true] %s1536
        %s1538 = sshll.u32 %s1527, 4
        %s1539 = int_to_ptr.hbm [resolvable:$true] %s1538
        %1541 = dma.vmem_to_hbm [thread:$0]  %s1537, 2048, %s1539, %s1528
        %v1542 = vpack.c.bf16 %v1494, %v1493
        %v1543 = vpack.c.bf16 %v1496, %v1495
        %v1544 = vpack.c.bf16 %v1498, %v1497
        %v1545 = vpack.c.bf16 %v1500, %v1499
        %v1546 = vpack.c.bf16 %v1502, %v1501
        %v1547 = vpack.c.bf16 %v1504, %v1503
        %v1548 = vpack.c.bf16 %v1506, %v1505
        %v1549 = vpack.c.bf16 %v1508, %v1507
        %v1550 = vpack.c.bf16 %v1125, %v1124
        %v1551 = vpack.c.bf16 %v1127, %v1126
        %v1552 = vpack.c.bf16 %v1129, %v1128
        %v1553 = vpack.c.bf16 %v1131, %v1130
        %v1554 = vpack.c.bf16 %v1133, %v1132
        %v1555 = vpack.c.bf16 %v1135, %v1134
        %v1556 = vpack.c.bf16 %v1137, %v1136
        %v1557 = vpack.c.bf16 %v1139, %v1138
        %1566 = vrot.lane.b32.xlu0 %v1550, 112
        %v1567 = vpop.permute.xlu0 %1566
        %1568 = vrot.lane.b32.xlu0 %v1551, 112
        %v1569 = vpop.permute.xlu0 %1568
        %1570 = vrot.lane.b32.xlu0 %v1552, 112
        %v1571 = vpop.permute.xlu0 %1570
        %1572 = vrot.lane.b32.xlu0 %v1553, 112
        %v1573 = vpop.permute.xlu0 %1572
        %1574 = vrot.lane.b32.xlu0 %v1554, 112
        %v1575 = vpop.permute.xlu0 %1574
        %1576 = vrot.lane.b32.xlu0 %v1555, 112
        %v1577 = vpop.permute.xlu0 %1576
        %1578 = vrot.lane.b32.xlu0 %v1556, 112
        %v1579 = vpop.permute.xlu0 %1578
        %1580 = vrot.lane.b32.xlu0 %v1557, 112
        %v1581 = vpop.permute.xlu0 %1580
        %1590 = vmatpush.bf16.msra.mxu0 %v1581
        %1591 = vmatpush.bf16.msra.mxu0 %v1579
        %1592 = vmatpush.bf16.msra.mxu0 %v1577
        %1593 = vmatpush.bf16.msra.mxu0 %v1575
        %1594 = vmatpush.bf16.msra.mxu0 %v1573
        %1595 = vmatpush.bf16.msra.mxu0 %v1571
        %1596 = vmatpush.bf16.msra.mxu0 %v1569
        %1597 = vmatpush.bf16.msra.mxu0 %v1567
        %1598 = vmatmul.bf16.gmra.mxu0 %v1542
        %v1599 = vpop.f32.mrf.mxu0
        %v1600 = vadd.f32 0.0, %v1599
        %v1601 = vpop.f32.mrf.mxu0
        %v1602 = vadd.f32 0.0, %v1601
        %1603 = vmatmul.bf16.gmra.mxu0 %v1543
        %v1604 = vpop.f32.mrf.mxu0
        %v1605 = vadd.f32 0.0, %v1604
        %v1606 = vpop.f32.mrf.mxu0
        %v1607 = vadd.f32 0.0, %v1606
        %1608 = vmatmul.bf16.gmra.mxu0 %v1544
        %v1609 = vpop.f32.mrf.mxu0
        %v1610 = vadd.f32 0.0, %v1609
        %v1611 = vpop.f32.mrf.mxu0
        %v1612 = vadd.f32 0.0, %v1611
        %1613 = vmatmul.bf16.gmra.mxu0 %v1545
        %v1614 = vpop.f32.mrf.mxu0
        %v1615 = vadd.f32 0.0, %v1614
        %v1616 = vpop.f32.mrf.mxu0
        %v1617 = vadd.f32 0.0, %v1616
        %1618 = vmatmul.bf16.gmra.mxu0 %v1546
        %v1619 = vpop.f32.mrf.mxu0
        %v1620 = vadd.f32 0.0, %v1619
        %v1621 = vpop.f32.mrf.mxu0
        %v1622 = vadd.f32 0.0, %v1621
        %1623 = vmatmul.bf16.gmra.mxu0 %v1547
        %v1624 = vpop.f32.mrf.mxu0
        %v1625 = vadd.f32 0.0, %v1624
        %v1626 = vpop.f32.mrf.mxu0
        %v1627 = vadd.f32 0.0, %v1626
        %1628 = vmatmul.bf16.gmra.mxu0 %v1548
        %v1629 = vpop.f32.mrf.mxu0
        %v1630 = vadd.f32 0.0, %v1629
        %v1631 = vpop.f32.mrf.mxu0
        %v1632 = vadd.f32 0.0, %v1631
        %1633 = vmatmul.bf16.gmra.mxu0 %v1549
        %v1634 = vpop.f32.mrf.mxu0
        %v1635 = vadd.f32 0.0, %v1634
        %v1636 = vpop.f32.mrf.mxu0
        %v1637 = vadd.f32 0.0, %v1636
        %1638 = vdwg.mxu0
        %v1639 = vld [vmem:[#allocation2] sm:$0xff]
        %v1640 = vld [vmem:[#allocation2 + $0x18] sm:$0xff]
        %v1641 = vld [vmem:[#allocation2 + $0x30] sm:$0xff]
        %v1642 = vld [vmem:[#allocation2 + $0x48] sm:$0xff]
        %v1643 = vld [vmem:[#allocation2 + $0x60] sm:$0xff]
        %v1644 = vld [vmem:[#allocation2 + $0x78] sm:$0xff]
        %v1645 = vld [vmem:[#allocation2 + $0x90] sm:$0xff]
        %v1646 = vld [vmem:[#allocation2 + $0xa8] sm:$0xff]
        %v1647 = vld [vmem:[#allocation2 + $0xc0] sm:$0xff]
        %v1648 = vld [vmem:[#allocation2 + $0xd8] sm:$0xff]
        %v1649 = vld [vmem:[#allocation2 + $0xf0] sm:$0xff]
        %v1650 = vld [vmem:[#allocation2 + $0x108] sm:$0xff]
        %v1651 = vld [vmem:[#allocation2 + $0x120] sm:$0xff]
        %v1652 = vld [vmem:[#allocation2 + $0x138] sm:$0xff]
        %v1653 = vld [vmem:[#allocation2 + $0x150] sm:$0xff]
        %v1654 = vld [vmem:[#allocation2 + $0x168] sm:$0xff]
        %v1655 = vmul.f32 %v1639, 0.25
        %v1656 = vmul.f32 %v1640, 0.25
        %v1657 = vmul.f32 %v1641, 0.25
        %v1658 = vmul.f32 %v1642, 0.25
        %v1659 = vmul.f32 %v1643, 0.25
        %v1660 = vmul.f32 %v1644, 0.25
        %v1661 = vmul.f32 %v1645, 0.25
        %v1662 = vmul.f32 %v1646, 0.25
        %v1663 = vmul.f32 %v1647, 0.25
        %v1664 = vmul.f32 %v1648, 0.25
        %v1665 = vmul.f32 %v1649, 0.25
        %v1666 = vmul.f32 %v1650, 0.25
        %v1667 = vmul.f32 %v1651, 0.25
        %v1668 = vmul.f32 %v1652, 0.25
        %v1669 = vmul.f32 %v1653, 0.25
        %v1670 = vmul.f32 %v1654, 0.25
        %v1671 = vld [vmem:[#allocation2 + $0x8] sm:$0xff]
        %v1672 = vld [vmem:[#allocation2 + $0x20] sm:$0xff]
        %v1673 = vld [vmem:[#allocation2 + $0x38] sm:$0xff]
        %v1674 = vld [vmem:[#allocation2 + $0x50] sm:$0xff]
        %v1675 = vld [vmem:[#allocation2 + $0x68] sm:$0xff]
        %v1676 = vld [vmem:[#allocation2 + $0x80] sm:$0xff]
        %v1677 = vld [vmem:[#allocation2 + $0x98] sm:$0xff]
        %v1678 = vld [vmem:[#allocation2 + $0xb0] sm:$0xff]
        %v1679 = vld [vmem:[#allocation2 + $0xc8] sm:$0xff]
        %v1680 = vld [vmem:[#allocation2 + $0xe0] sm:$0xff]
        %v1681 = vld [vmem:[#allocation2 + $0xf8] sm:$0xff]
        %v1682 = vld [vmem:[#allocation2 + $0x110] sm:$0xff]
        %v1683 = vld [vmem:[#allocation2 + $0x128] sm:$0xff]
        %v1684 = vld [vmem:[#allocation2 + $0x140] sm:$0xff]
        %v1685 = vld [vmem:[#allocation2 + $0x158] sm:$0xff]
        %v1686 = vld [vmem:[#allocation2 + $0x170] sm:$0xff]
        %v1687 = vld [vmem:[#allocation2 + $0x10] sm:$0xff]
        %v1688 = vld [vmem:[#allocation2 + $0x28] sm:$0xff]
        %v1689 = vld [vmem:[#allocation2 + $0x40] sm:$0xff]
        %v1690 = vld [vmem:[#allocation2 + $0x58] sm:$0xff]
        %v1691 = vld [vmem:[#allocation2 + $0x70] sm:$0xff]
        %v1692 = vld [vmem:[#allocation2 + $0x88] sm:$0xff]
        %v1693 = vld [vmem:[#allocation2 + $0xa0] sm:$0xff]
        %v1694 = vld [vmem:[#allocation2 + $0xb8] sm:$0xff]
        %v1695 = vld [vmem:[#allocation2 + $0xd0] sm:$0xff]
        %v1696 = vld [vmem:[#allocation2 + $0xe8] sm:$0xff]
        %v1697 = vld [vmem:[#allocation2 + $0x100] sm:$0xff]
        %v1698 = vld [vmem:[#allocation2 + $0x118] sm:$0xff]
        %v1699 = vld [vmem:[#allocation2 + $0x130] sm:$0xff]
        %v1700 = vld [vmem:[#allocation2 + $0x148] sm:$0xff]
        %v1701 = vld [vmem:[#allocation2 + $0x160] sm:$0xff]
        %v1702 = vld [vmem:[#allocation2 + $0x178] sm:$0xff]
        %1719 = vrot.lane.b32.xlu0 %v1655, 96
        %v1720 = vpop.permute.xlu0 %1719
        %1721 = vrot.lane.b32.xlu0 %v1656, 96
        %v1722 = vpop.permute.xlu0 %1721
        %1723 = vrot.lane.b32.xlu0 %v1657, 96
        %v1724 = vpop.permute.xlu0 %1723
        %1725 = vrot.lane.b32.xlu0 %v1658, 96
        %v1726 = vpop.permute.xlu0 %1725
        %1727 = vrot.lane.b32.xlu0 %v1659, 96
        %v1728 = vpop.permute.xlu0 %1727
        %1729 = vrot.lane.b32.xlu0 %v1660, 96
        %v1730 = vpop.permute.xlu0 %1729
        %1731 = vrot.lane.b32.xlu0 %v1661, 96
        %v1732 = vpop.permute.xlu0 %1731
        %1733 = vrot.lane.b32.xlu0 %v1662, 96
        %v1734 = vpop.permute.xlu0 %1733
        %1735 = vrot.lane.b32.xlu0 %v1663, 96
        %v1736 = vpop.permute.xlu0 %1735
        %1737 = vrot.lane.b32.xlu0 %v1664, 96
        %v1738 = vpop.permute.xlu0 %1737
        %1739 = vrot.lane.b32.xlu0 %v1665, 96
        %v1740 = vpop.permute.xlu0 %1739
        %1741 = vrot.lane.b32.xlu0 %v1666, 96
        %v1742 = vpop.permute.xlu0 %1741
        %1743 = vrot.lane.b32.xlu0 %v1667, 96
        %v1744 = vpop.permute.xlu0 %1743
        %1745 = vrot.lane.b32.xlu0 %v1668, 96
        %v1746 = vpop.permute.xlu0 %1745
        %1747 = vrot.lane.b32.xlu0 %v1669, 96
        %v1748 = vpop.permute.xlu0 %1747
        %1749 = vrot.lane.b32.xlu0 %v1670, 96
        %v1750 = vpop.permute.xlu0 %1749
        %1767 = vrot.lane.b32.xlu0 %v1671, 96
        %v1768 = vpop.permute.xlu0 %1767
        %1769 = vrot.lane.b32.xlu0 %v1672, 96
        %v1770 = vpop.permute.xlu0 %1769
        %1771 = vrot.lane.b32.xlu0 %v1673, 96
        %v1772 = vpop.permute.xlu0 %1771
        %1773 = vrot.lane.b32.xlu0 %v1674, 96
        %v1774 = vpop.permute.xlu0 %1773
        %1775 = vrot.lane.b32.xlu0 %v1675, 96
        %v1776 = vpop.permute.xlu0 %1775
        %1777 = vrot.lane.b32.xlu0 %v1676, 96
        %v1778 = vpop.permute.xlu0 %1777
        %1779 = vrot.lane.b32.xlu0 %v1677, 96
        %v1780 = vpop.permute.xlu0 %1779
        %1781 = vrot.lane.b32.xlu0 %v1678, 96
        %v1782 = vpop.permute.xlu0 %1781
        %1783 = vrot.lane.b32.xlu0 %v1679, 96
        %v1784 = vpop.permute.xlu0 %1783
        %1785 = vrot.lane.b32.xlu0 %v1680, 96
        %v1786 = vpop.permute.xlu0 %1785
        %1787 = vrot.lane.b32.xlu0 %v1681, 96
        %v1788 = vpop.permute.xlu0 %1787
        %1789 = vrot.lane.b32.xlu0 %v1682, 96
        %v1790 = vpop.permute.xlu0 %1789
        %1791 = vrot.lane.b32.xlu0 %v1683, 96
        %v1792 = vpop.permute.xlu0 %1791
        %1793 = vrot.lane.b32.xlu0 %v1684, 96
        %v1794 = vpop.permute.xlu0 %1793
        %1795 = vrot.lane.b32.xlu0 %v1685, 96
        %v1796 = vpop.permute.xlu0 %1795
        %1797 = vrot.lane.b32.xlu0 %v1686, 96
        %v1798 = vpop.permute.xlu0 %1797
        %v1799 = vsel %vm674, %v1720, 0
        %v1801 = vsel %vm674, %v1722, 0
        %v1803 = vsel %vm674, %v1724, 0
        %v1805 = vsel %vm674, %v1726, 0
        %v1807 = vsel %vm674, %v1728, 0
        %v1809 = vsel %vm674, %v1730, 0
        %v1811 = vsel %vm674, %v1732, 0
        %v1813 = vsel %vm674, %v1734, 0
        %v1815 = vsel %vm674, %v1736, 0
        %v1817 = vsel %vm674, %v1738, 0
        %v1819 = vsel %vm674, %v1740, 0
        %v1821 = vsel %vm674, %v1742, 0
        %v1823 = vsel %vm674, %v1744, 0
        %v1825 = vsel %vm674, %v1746, 0
        %v1827 = vsel %vm674, %v1748, 0
        %v1829 = vsel %vm674, %v1750, 0
        %v1831 = vsel %vm674, %v1768, 0
        %v1833 = vsel %vm674, %v1770, 0
        %v1835 = vsel %vm674, %v1772, 0
        %v1837 = vsel %vm674, %v1774, 0
        %v1839 = vsel %vm674, %v1776, 0
        %v1841 = vsel %vm674, %v1778, 0
        %v1843 = vsel %vm674, %v1780, 0
        %v1845 = vsel %vm674, %v1782, 0
        %v1847 = vsel %vm674, %v1784, 0
        %v1849 = vsel %vm674, %v1786, 0
        %v1851 = vsel %vm674, %v1788, 0
        %v1853 = vsel %vm674, %v1790, 0
        %v1855 = vsel %vm674, %v1792, 0
        %v1857 = vsel %vm674, %v1794, 0
        %v1859 = vsel %vm674, %v1796, 0
        %v1861 = vsel %vm674, %v1798, 0
        %1863 = vmatpush.xpose.msra.mxu0 %v1861
        %1864 = vmatpush.xpose.msra.mxu0 %v1859
        %1865 = vmatpush.xpose.msra.mxu0 %v1857
        %1866 = vmatpush.xpose.msra.mxu0 %v1855
        %1867 = vmatpush.xpose.msra.mxu0 %v1853
        %1868 = vmatpush.xpose.msra.mxu0 %v1851
        %1869 = vmatpush.xpose.msra.mxu0 %v1849
        %1870 = vmatpush.xpose.msra.mxu0 %v1847
        %1871 = vmatpush.xpose.msra.mxu0 %v1845
        %1872 = vmatpush.xpose.msra.mxu0 %v1843
        %1873 = vmatpush.xpose.msra.mxu0 %v1841
        %1874 = vmatpush.xpose.msra.mxu0 %v1839
        %1875 = vmatpush.xpose.msra.mxu0 %v1837
        %1876 = vmatpush.xpose.msra.mxu0 %v1835
        %1877 = vmatpush.xpose.msra.mxu0 %v1833
        %1878 = vmatpush.xpose.msra.mxu0 %v1831
        %1879 = vmatmul.f32.gmra.mxu0 %v1799
        %v1880 = vpop.f32.mrf.mxu0
        %v1881 = vadd.f32 0.0, %v1880
        %1882 = vmatmul.f32.gmra.mxu0 %v1801
        %v1883 = vpop.f32.mrf.mxu0
        %v1884 = vadd.f32 0.0, %v1883
        %1885 = vmatmul.f32.gmra.mxu0 %v1803
        %v1886 = vpop.f32.mrf.mxu0
        %v1887 = vadd.f32 0.0, %v1886
        %1888 = vmatmul.f32.gmra.mxu0 %v1805
        %v1889 = vpop.f32.mrf.mxu0
        %v1890 = vadd.f32 0.0, %v1889
        %1891 = vmatmul.f32.gmra.mxu0 %v1807
        %v1892 = vpop.f32.mrf.mxu0
        %v1893 = vadd.f32 0.0, %v1892
        %1894 = vmatmul.f32.gmra.mxu0 %v1809
        %v1895 = vpop.f32.mrf.mxu0
        %v1896 = vadd.f32 0.0, %v1895
        %1897 = vmatmul.f32.gmra.mxu0 %v1811
        %v1898 = vpop.f32.mrf.mxu0
        %v1899 = vadd.f32 0.0, %v1898
        %1900 = vmatmul.f32.gmra.mxu0 %v1813
        %v1901 = vpop.f32.mrf.mxu0
        %v1902 = vadd.f32 0.0, %v1901
        %1903 = vmatmul.f32.gmra.mxu0 %v1815
        %v1904 = vpop.f32.mrf.mxu0
        %v1905 = vadd.f32 0.0, %v1904
        %1906 = vmatmul.f32.gmra.mxu0 %v1817
        %v1907 = vpop.f32.mrf.mxu0
        %v1908 = vadd.f32 0.0, %v1907
        %1909 = vmatmul.f32.gmra.mxu0 %v1819
        %v1910 = vpop.f32.mrf.mxu0
        %v1911 = vadd.f32 0.0, %v1910
        %1912 = vmatmul.f32.gmra.mxu0 %v1821
        %v1913 = vpop.f32.mrf.mxu0
        %v1914 = vadd.f32 0.0, %v1913
        %1915 = vmatmul.f32.gmra.mxu0 %v1823
        %v1916 = vpop.f32.mrf.mxu0
        %v1917 = vadd.f32 0.0, %v1916
        %1918 = vmatmul.f32.gmra.mxu0 %v1825
        %v1919 = vpop.f32.mrf.mxu0
        %v1920 = vadd.f32 0.0, %v1919
        %1921 = vmatmul.f32.gmra.mxu0 %v1827
        %v1922 = vpop.f32.mrf.mxu0
        %v1923 = vadd.f32 0.0, %v1922
        %1924 = vmatmul.f32.gmra.mxu0 %v1829
        %v1925 = vpop.f32.mrf.mxu0
        %v1926 = vadd.f32 0.0, %v1925
        %1927 = vdwg.mxu0
        %1928 = vmax.xlane.f32.xlu0 %v1881
        %v1929 = vpop.xlane.xlu0 %1928
        %1930 = vmax.xlane.f32.xlu0 %v1884
        %v1931 = vpop.xlane.xlu0 %1930
        %1932 = vmax.xlane.f32.xlu0 %v1887
        %v1933 = vpop.xlane.xlu0 %1932
        %1934 = vmax.xlane.f32.xlu0 %v1890
        %v1935 = vpop.xlane.xlu0 %1934
        %1936 = vmax.xlane.f32.xlu0 %v1893
        %v1937 = vpop.xlane.xlu0 %1936
        %1938 = vmax.xlane.f32.xlu0 %v1896
        %v1939 = vpop.xlane.xlu0 %1938
        %1940 = vmax.xlane.f32.xlu0 %v1899
        %v1941 = vpop.xlane.xlu0 %1940
        %1942 = vmax.xlane.f32.xlu0 %v1902
        %v1943 = vpop.xlane.xlu0 %1942
        %1944 = vmax.xlane.f32.xlu0 %v1905
        %v1945 = vpop.xlane.xlu0 %1944
        %1946 = vmax.xlane.f32.xlu0 %v1908
        %v1947 = vpop.xlane.xlu0 %1946
        %1948 = vmax.xlane.f32.xlu0 %v1911
        %v1949 = vpop.xlane.xlu0 %1948
        %1950 = vmax.xlane.f32.xlu0 %v1914
        %v1951 = vpop.xlane.xlu0 %1950
        %1952 = vmax.xlane.f32.xlu0 %v1917
        %v1953 = vpop.xlane.xlu0 %1952
        %1954 = vmax.xlane.f32.xlu0 %v1920
        %v1955 = vpop.xlane.xlu0 %1954
        %1956 = vmax.xlane.f32.xlu0 %v1923
        %v1957 = vpop.xlane.xlu0 %1956
        %1958 = vmax.xlane.f32.xlu0 %v1926
        %v1959 = vpop.xlane.xlu0 %1958
        %v1960 = vsub.f32 %v1881, %v1929
        %v1961 = vsub.f32 %v1884, %v1931
        %v1962 = vsub.f32 %v1887, %v1933
        %v1963 = vsub.f32 %v1890, %v1935
        %v1964 = vsub.f32 %v1893, %v1937
        %v1965 = vsub.f32 %v1896, %v1939
        %v1966 = vsub.f32 %v1899, %v1941
        %v1967 = vsub.f32 %v1902, %v1943
        %v1968 = vsub.f32 %v1905, %v1945
        %v1969 = vsub.f32 %v1908, %v1947
        %v1970 = vsub.f32 %v1911, %v1949
        %v1971 = vsub.f32 %v1914, %v1951
        %v1972 = vsub.f32 %v1917, %v1953
        %v1973 = vsub.f32 %v1920, %v1955
        %v1974 = vsub.f32 %v1923, %v1957
        %v1975 = vsub.f32 %v1926, %v1959
        %v1976 = vmul.f32 %v1960, 1.442695
        %v1977 = vpow.pop %v1976
        %v1978 = vmul.f32 %v1961, 1.442695
        %v1979 = vpow.pop %v1978
        %v1980 = vmul.f32 %v1962, 1.442695
        %v1981 = vpow.pop %v1980
        %v1982 = vmul.f32 %v1963, 1.442695
        %v1983 = vpow.pop %v1982
        %v1984 = vmul.f32 %v1964, 1.442695
        %v1985 = vpow.pop %v1984
        %v1986 = vmul.f32 %v1965, 1.442695
        %v1987 = vpow.pop %v1986
        %v1988 = vmul.f32 %v1966, 1.442695
        %v1989 = vpow.pop %v1988
        %v1990 = vmul.f32 %v1967, 1.442695
        %v1991 = vpow.pop %v1990
        %v1992 = vmul.f32 %v1968, 1.442695
        %v1993 = vpow.pop %v1992
        %v1994 = vmul.f32 %v1969, 1.442695
        %v1995 = vpow.pop %v1994
        %v1996 = vmul.f32 %v1970, 1.442695
        %v1997 = vpow.pop %v1996
        %v1998 = vmul.f32 %v1971, 1.442695
        %v1999 = vpow.pop %v1998
        %v2000 = vmul.f32 %v1972, 1.442695
        %v2001 = vpow.pop %v2000
        %v2002 = vmul.f32 %v1973, 1.442695
        %v2003 = vpow.pop %v2002
        %v2004 = vmul.f32 %v1974, 1.442695
        %v2005 = vpow.pop %v2004
        %v2006 = vmul.f32 %v1975, 1.442695
        %v2007 = vpow.pop %v2006
        %2008 = vadd.xlane.f32.xlu0 %v1977
        %v2009 = vpop.xlane.xlu0 %2008
        %2010 = vadd.xlane.f32.xlu0 %v1979
        %v2011 = vpop.xlane.xlu0 %2010
        %2012 = vadd.xlane.f32.xlu0 %v1981
        %v2013 = vpop.xlane.xlu0 %2012
        %2014 = vadd.xlane.f32.xlu0 %v1983
        %v2015 = vpop.xlane.xlu0 %2014
        %2016 = vadd.xlane.f32.xlu0 %v1985
        %v2017 = vpop.xlane.xlu0 %2016
        %2018 = vadd.xlane.f32.xlu0 %v1987
        %v2019 = vpop.xlane.xlu0 %2018
        %2020 = vadd.xlane.f32.xlu0 %v1989
        %v2021 = vpop.xlane.xlu0 %2020
        %2022 = vadd.xlane.f32.xlu0 %v1991
        %v2023 = vpop.xlane.xlu0 %2022
        %2024 = vadd.xlane.f32.xlu0 %v1993
        %v2025 = vpop.xlane.xlu0 %2024
        %2026 = vadd.xlane.f32.xlu0 %v1995
        %v2027 = vpop.xlane.xlu0 %2026
        %2028 = vadd.xlane.f32.xlu0 %v1997
        %v2029 = vpop.xlane.xlu0 %2028
        %2030 = vadd.xlane.f32.xlu0 %v1999
        %v2031 = vpop.xlane.xlu0 %2030
        %2032 = vadd.xlane.f32.xlu0 %v2001
        %v2033 = vpop.xlane.xlu0 %2032
        %2034 = vadd.xlane.f32.xlu0 %v2003
        %v2035 = vpop.xlane.xlu0 %2034
        %2036 = vadd.xlane.f32.xlu0 %v2005
        %v2037 = vpop.xlane.xlu0 %2036
        %2038 = vadd.xlane.f32.xlu0 %v2007
        %v2039 = vpop.xlane.xlu0 %2038
        %v2040 = vrcp.pop %v2009
        %v2041 = vrcp.pop %v2011
        %v2042 = vrcp.pop %v2013
        %v2043 = vrcp.pop %v2015
        %v2044 = vrcp.pop %v2017
        %v2045 = vrcp.pop %v2019
        %v2046 = vrcp.pop %v2021
        %v2047 = vrcp.pop %v2023
        %v2048 = vrcp.pop %v2025
        %v2049 = vrcp.pop %v2027
        %v2050 = vrcp.pop %v2029
        %v2051 = vrcp.pop %v2031
        %v2052 = vrcp.pop %v2033
        %v2053 = vrcp.pop %v2035
        %v2054 = vrcp.pop %v2037
        %v2055 = vrcp.pop %v2039
        %v2056 = vmul.f32 %v1977, %v2040
        %v2057 = vmul.f32 %v1979, %v2041
        %v2058 = vmul.f32 %v1981, %v2042
        %v2059 = vmul.f32 %v1983, %v2043
        %v2060 = vmul.f32 %v1985, %v2044
        %v2061 = vmul.f32 %v1987, %v2045
        %v2062 = vmul.f32 %v1989, %v2046
        %v2063 = vmul.f32 %v1991, %v2047
        %v2064 = vmul.f32 %v1993, %v2048
        %v2065 = vmul.f32 %v1995, %v2049
        %v2066 = vmul.f32 %v1997, %v2050
        %v2067 = vmul.f32 %v1999, %v2051
        %v2068 = vmul.f32 %v2001, %v2052
        %v2069 = vmul.f32 %v2003, %v2053
        %v2070 = vmul.f32 %v2005, %v2054
        %v2071 = vmul.f32 %v2007, %v2055
        %s2072 = scalar_lea.vmem [#allocation3], 256
        %2073 = vst [vmem:[%s2072] sm:$0xff] %v2056
        %2074 = vst [vmem:[%s2072 + $0x8] sm:$0xff] %v2057
        %2075 = vst [vmem:[%s2072 + $0x10] sm:$0xff] %v2058
        %2076 = vst [vmem:[%s2072 + $0x18] sm:$0xff] %v2059
        %2077 = vst [vmem:[%s2072 + $0x20] sm:$0xff] %v2060
        %2078 = vst [vmem:[%s2072 + $0x28] sm:$0xff] %v2061
        %2079 = vst [vmem:[%s2072 + $0x30] sm:$0xff] %v2062
        %2080 = vst [vmem:[%s2072 + $0x38] sm:$0xff] %v2063
        %2081 = vst [vmem:[%s2072 + $0x40] sm:$0xff] %v2064
        %2082 = vst [vmem:[%s2072 + $0x48] sm:$0xff] %v2065
        %2083 = vst [vmem:[%s2072 + $0x50] sm:$0xff] %v2066
        %2084 = vst [vmem:[%s2072 + $0x58] sm:$0xff] %v2067
        %2085 = vst [vmem:[%s2072 + $0x60] sm:$0xff] %v2068
        %2086 = vst [vmem:[%s2072 + $0x68] sm:$0xff] %v2069
        %2087 = vst [vmem:[%s2072 + $0x70] sm:$0xff] %v2070
        %2088 = vst [vmem:[%s2072 + $0x78] sm:$0xff] %v2071
        %s2089 = sadd.s32 256, %s996
        %s2090 = scalar_lea.hbm %s6, %s2089
        %s2091 = scalar_lea.sflag [#allocation4], 2
        // Predicated region
        $region65: #{tpu_custom_call.1} parent=39 // pred_check
          _
        $region66: #{tpu_custom_call.1} parent=39 // pred_check_branch
          %2093 = sbr.rel target = $region68
        $region67: #{tpu_custom_call.1} parent=39 // pred_region
          %2094 = sst [smem:[#allocation16]] [#allocation21]
          %2095 = sst [smem:[#allocation17]] [#allocation20]
        $region68: #{tpu_custom_call.1} parent=39 // pred_fallthru
          _
        %2097 = shalt.err (0)
        %s2099 = sshll.u32 %s2072, 4
        %s2100 = int_to_ptr.vmem [resolvable:$true] %s2099
        %s2101 = sshll.u32 %s2090, 4
        %s2102 = int_to_ptr.hbm [resolvable:$true] %s2101
        %2104 = dma.vmem_to_hbm [thread:$0]  %s2100, 2048, %s2102, %s2091
        %v2105 = vpack.c.bf16 %v2057, %v2056
        %v2106 = vpack.c.bf16 %v2059, %v2058
        %v2107 = vpack.c.bf16 %v2061, %v2060
        %v2108 = vpack.c.bf16 %v2063, %v2062
        %v2109 = vpack.c.bf16 %v2065, %v2064
        %v2110 = vpack.c.bf16 %v2067, %v2066
        %v2111 = vpack.c.bf16 %v2069, %v2068
        %v2112 = vpack.c.bf16 %v2071, %v2070
        %v2113 = vpack.c.bf16 %v1688, %v1687
        %v2114 = vpack.c.bf16 %v1690, %v1689
        %v2115 = vpack.c.bf16 %v1692, %v1691
        %v2116 = vpack.c.bf16 %v1694, %v1693
        %v2117 = vpack.c.bf16 %v1696, %v1695
        %v2118 = vpack.c.bf16 %v1698, %v1697
        %v2119 = vpack.c.bf16 %v1700, %v1699
        %v2120 = vpack.c.bf16 %v1702, %v1701
        %2129 = vrot.lane.b32.xlu0 %v2113, 96
        %v2130 = vpop.permute.xlu0 %2129
        %2131 = vrot.lane.b32.xlu0 %v2114, 96
        %v2132 = vpop.permute.xlu0 %2131
        %2133 = vrot.lane.b32.xlu0 %v2115, 96
        %v2134 = vpop.permute.xlu0 %2133
        %2135 = vrot.lane.b32.xlu0 %v2116, 96
        %v2136 = vpop.permute.xlu0 %2135
        %2137 = vrot.lane.b32.xlu0 %v2117, 96
        %v2138 = vpop.permute.xlu0 %2137
        %2139 = vrot.lane.b32.xlu0 %v2118, 96
        %v2140 = vpop.permute.xlu0 %2139
        %2141 = vrot.lane.b32.xlu0 %v2119, 96
        %v2142 = vpop.permute.xlu0 %2141
        %2143 = vrot.lane.b32.xlu0 %v2120, 96
        %v2144 = vpop.permute.xlu0 %2143
        %2153 = vmatpush.bf16.msra.mxu0 %v2144
        %2154 = vmatpush.bf16.msra.mxu0 %v2142
        %2155 = vmatpush.bf16.msra.mxu0 %v2140
        %2156 = vmatpush.bf16.msra.mxu0 %v2138
        %2157 = vmatpush.bf16.msra.mxu0 %v2136
        %2158 = vmatpush.bf16.msra.mxu0 %v2134
        %2159 = vmatpush.bf16.msra.mxu0 %v2132
        %2160 = vmatpush.bf16.msra.mxu0 %v2130
        %2161 = vmatmul.bf16.gmra.mxu0 %v2105
        %v2162 = vpop.f32.mrf.mxu0
        %v2163 = vadd.f32 0.0, %v2162
        %v2164 = vpop.f32.mrf.mxu0
        %v2165 = vadd.f32 0.0, %v2164
        %2166 = vmatmul.bf16.gmra.mxu0 %v2106
        %v2167 = vpop.f32.mrf.mxu0
        %v2168 = vadd.f32 0.0, %v2167
        %v2169 = vpop.f32.mrf.mxu0
        %v2170 = vadd.f32 0.0, %v2169
        %2171 = vmatmul.bf16.gmra.mxu0 %v2107
        %v2172 = vpop.f32.mrf.mxu0
        %v2173 = vadd.f32 0.0, %v2172
        %v2174 = vpop.f32.mrf.mxu0
        %v2175 = vadd.f32 0.0, %v2174
        %2176 = vmatmul.bf16.gmra.mxu0 %v2108
        %v2177 = vpop.f32.mrf.mxu0
        %v2178 = vadd.f32 0.0, %v2177
        %v2179 = vpop.f32.mrf.mxu0
        %v2180 = vadd.f32 0.0, %v2179
        %2181 = vmatmul.bf16.gmra.mxu0 %v2109
        %v2182 = vpop.f32.mrf.mxu0
        %v2183 = vadd.f32 0.0, %v2182
        %v2184 = vpop.f32.mrf.mxu0
        %v2185 = vadd.f32 0.0, %v2184
        %2186 = vmatmul.bf16.gmra.mxu0 %v2110
        %v2187 = vpop.f32.mrf.mxu0
        %v2188 = vadd.f32 0.0, %v2187
        %v2189 = vpop.f32.mrf.mxu0
        %v2190 = vadd.f32 0.0, %v2189
        %2191 = vmatmul.bf16.gmra.mxu0 %v2111
        %v2192 = vpop.f32.mrf.mxu0
        %v2193 = vadd.f32 0.0, %v2192
        %v2194 = vpop.f32.mrf.mxu0
        %v2195 = vadd.f32 0.0, %v2194
        %2196 = vmatmul.bf16.gmra.mxu0 %v2112
        %v2197 = vpop.f32.mrf.mxu0
        %v2198 = vadd.f32 0.0, %v2197
        %v2199 = vpop.f32.mrf.mxu0
        %v2200 = vadd.f32 0.0, %v2199
        %2201 = vdwg.mxu0
        %v2202 = vld [vmem:[#allocation2] sm:$0xff]
        %v2203 = vld [vmem:[#allocation2 + $0x18] sm:$0xff]
        %v2204 = vld [vmem:[#allocation2 + $0x30] sm:$0xff]
        %v2205 = vld [vmem:[#allocation2 + $0x48] sm:$0xff]
        %v2206 = vld [vmem:[#allocation2 + $0x60] sm:$0xff]
        %v2207 = vld [vmem:[#allocation2 + $0x78] sm:$0xff]
        %v2208 = vld [vmem:[#allocation2 + $0x90] sm:$0xff]
        %v2209 = vld [vmem:[#allocation2 + $0xa8] sm:$0xff]
        %v2210 = vld [vmem:[#allocation2 + $0xc0] sm:$0xff]
        %v2211 = vld [vmem:[#allocation2 + $0xd8] sm:$0xff]
        %v2212 = vld [vmem:[#allocation2 + $0xf0] sm:$0xff]
        %v2213 = vld [vmem:[#allocation2 + $0x108] sm:$0xff]
        %v2214 = vld [vmem:[#allocation2 + $0x120] sm:$0xff]
        %v2215 = vld [vmem:[#allocation2 + $0x138] sm:$0xff]
        %v2216 = vld [vmem:[#allocation2 + $0x150] sm:$0xff]
        %v2217 = vld [vmem:[#allocation2 + $0x168] sm:$0xff]
        %v2218 = vmul.f32 %v2202, 0.25
        %v2219 = vmul.f32 %v2203, 0.25
        %v2220 = vmul.f32 %v2204, 0.25
        %v2221 = vmul.f32 %v2205, 0.25
        %v2222 = vmul.f32 %v2206, 0.25
        %v2223 = vmul.f32 %v2207, 0.25
        %v2224 = vmul.f32 %v2208, 0.25
        %v2225 = vmul.f32 %v2209, 0.25
        %v2226 = vmul.f32 %v2210, 0.25
        %v2227 = vmul.f32 %v2211, 0.25
        %v2228 = vmul.f32 %v2212, 0.25
        %v2229 = vmul.f32 %v2213, 0.25
        %v2230 = vmul.f32 %v2214, 0.25
        %v2231 = vmul.f32 %v2215, 0.25
        %v2232 = vmul.f32 %v2216, 0.25
        %v2233 = vmul.f32 %v2217, 0.25
        %v2234 = vld [vmem:[#allocation2 + $0x8] sm:$0xff]
        %v2235 = vld [vmem:[#allocation2 + $0x20] sm:$0xff]
        %v2236 = vld [vmem:[#allocation2 + $0x38] sm:$0xff]
        %v2237 = vld [vmem:[#allocation2 + $0x50] sm:$0xff]
        %v2238 = vld [vmem:[#allocation2 + $0x68] sm:$0xff]
        %v2239 = vld [vmem:[#allocation2 + $0x80] sm:$0xff]
        %v2240 = vld [vmem:[#allocation2 + $0x98] sm:$0xff]
        %v2241 = vld [vmem:[#allocation2 + $0xb0] sm:$0xff]
        %v2242 = vld [vmem:[#allocation2 + $0xc8] sm:$0xff]
        %v2243 = vld [vmem:[#allocation2 + $0xe0] sm:$0xff]
        %v2244 = vld [vmem:[#allocation2 + $0xf8] sm:$0xff]
        %v2245 = vld [vmem:[#allocation2 + $0x110] sm:$0xff]
        %v2246 = vld [vmem:[#allocation2 + $0x128] sm:$0xff]
        %v2247 = vld [vmem:[#allocation2 + $0x140] sm:$0xff]
        %v2248 = vld [vmem:[#allocation2 + $0x158] sm:$0xff]
        %v2249 = vld [vmem:[#allocation2 + $0x170] sm:$0xff]
        %v2250 = vld [vmem:[#allocation2 + $0x10] sm:$0xff]
        %v2251 = vld [vmem:[#allocation2 + $0x28] sm:$0xff]
        %v2252 = vld [vmem:[#allocation2 + $0x40] sm:$0xff]
        %v2253 = vld [vmem:[#allocation2 + $0x58] sm:$0xff]
        %v2254 = vld [vmem:[#allocation2 + $0x70] sm:$0xff]
        %v2255 = vld [vmem:[#allocation2 + $0x88] sm:$0xff]
        %v2256 = vld [vmem:[#allocation2 + $0xa0] sm:$0xff]
        %v2257 = vld [vmem:[#allocation2 + $0xb8] sm:$0xff]
        %v2258 = vld [vmem:[#allocation2 + $0xd0] sm:$0xff]
        %v2259 = vld [vmem:[#allocation2 + $0xe8] sm:$0xff]
        %v2260 = vld [vmem:[#allocation2 + $0x100] sm:$0xff]
        %v2261 = vld [vmem:[#allocation2 + $0x118] sm:$0xff]
        %v2262 = vld [vmem:[#allocation2 + $0x130] sm:$0xff]
        %v2263 = vld [vmem:[#allocation2 + $0x148] sm:$0xff]
        %v2264 = vld [vmem:[#allocation2 + $0x160] sm:$0xff]
        %v2265 = vld [vmem:[#allocation2 + $0x178] sm:$0xff]
        %2282 = vrot.lane.b32.xlu0 %v2218, 80
        %v2283 = vpop.permute.xlu0 %2282
        %2284 = vrot.lane.b32.xlu0 %v2219, 80
        %v2285 = vpop.permute.xlu0 %2284
        %2286 = vrot.lane.b32.xlu0 %v2220, 80
        %v2287 = vpop.permute.xlu0 %2286
        %2288 = vrot.lane.b32.xlu0 %v2221, 80
        %v2289 = vpop.permute.xlu0 %2288
        %2290 = vrot.lane.b32.xlu0 %v2222, 80
        %v2291 = vpop.permute.xlu0 %2290
        %2292 = vrot.lane.b32.xlu0 %v2223, 80
        %v2293 = vpop.permute.xlu0 %2292
        %2294 = vrot.lane.b32.xlu0 %v2224, 80
        %v2295 = vpop.permute.xlu0 %2294
        %2296 = vrot.lane.b32.xlu0 %v2225, 80
        %v2297 = vpop.permute.xlu0 %2296
        %2298 = vrot.lane.b32.xlu0 %v2226, 80
        %v2299 = vpop.permute.xlu0 %2298
        %2300 = vrot.lane.b32.xlu0 %v2227, 80
        %v2301 = vpop.permute.xlu0 %2300
        %2302 = vrot.lane.b32.xlu0 %v2228, 80
        %v2303 = vpop.permute.xlu0 %2302
        %2304 = vrot.lane.b32.xlu0 %v2229, 80
        %v2305 = vpop.permute.xlu0 %2304
        %2306 = vrot.lane.b32.xlu0 %v2230, 80
        %v2307 = vpop.permute.xlu0 %2306
        %2308 = vrot.lane.b32.xlu0 %v2231, 80
        %v2309 = vpop.permute.xlu0 %2308
        %2310 = vrot.lane.b32.xlu0 %v2232, 80
        %v2311 = vpop.permute.xlu0 %2310
        %2312 = vrot.lane.b32.xlu0 %v2233, 80
        %v2313 = vpop.permute.xlu0 %2312
        %2330 = vrot.lane.b32.xlu0 %v2234, 80
        %v2331 = vpop.permute.xlu0 %2330
        %2332 = vrot.lane.b32.xlu0 %v2235, 80
        %v2333 = vpop.permute.xlu0 %2332
        %2334 = vrot.lane.b32.xlu0 %v2236, 80
        %v2335 = vpop.permute.xlu0 %2334
        %2336 = vrot.lane.b32.xlu0 %v2237, 80
        %v2337 = vpop.permute.xlu0 %2336
        %2338 = vrot.lane.b32.xlu0 %v2238, 80
        %v2339 = vpop.permute.xlu0 %2338
        %2340 = vrot.lane.b32.xlu0 %v2239, 80
        %v2341 = vpop.permute.xlu0 %2340
        %2342 = vrot.lane.b32.xlu0 %v2240, 80
        %v2343 = vpop.permute.xlu0 %2342
        %2344 = vrot.lane.b32.xlu0 %v2241, 80
        %v2345 = vpop.permute.xlu0 %2344
        %2346 = vrot.lane.b32.xlu0 %v2242, 80
        %v2347 = vpop.permute.xlu0 %2346
        %2348 = vrot.lane.b32.xlu0 %v2243, 80
        %v2349 = vpop.permute.xlu0 %2348
        %2350 = vrot.lane.b32.xlu0 %v2244, 80
        %v2351 = vpop.permute.xlu0 %2350
        %2352 = vrot.lane.b32.xlu0 %v2245, 80
        %v2353 = vpop.permute.xlu0 %2352
        %2354 = vrot.lane.b32.xlu0 %v2246, 80
        %v2355 = vpop.permute.xlu0 %2354
        %2356 = vrot.lane.b32.xlu0 %v2247, 80
        %v2357 = vpop.permute.xlu0 %2356
        %2358 = vrot.lane.b32.xlu0 %v2248, 80
        %v2359 = vpop.permute.xlu0 %2358
        %2360 = vrot.lane.b32.xlu0 %v2249, 80
        %v2361 = vpop.permute.xlu0 %2360
        %v2362 = vsel %vm674, %v2283, 0
        %v2364 = vsel %vm674, %v2285, 0
        %v2366 = vsel %vm674, %v2287, 0
        %v2368 = vsel %vm674, %v2289, 0
        %v2370 = vsel %vm674, %v2291, 0
        %v2372 = vsel %vm674, %v2293, 0
        %v2374 = vsel %vm674, %v2295, 0
        %v2376 = vsel %vm674, %v2297, 0
        %v2378 = vsel %vm674, %v2299, 0
        %v2380 = vsel %vm674, %v2301, 0
        %v2382 = vsel %vm674, %v2303, 0
        %v2384 = vsel %vm674, %v2305, 0
        %v2386 = vsel %vm674, %v2307, 0
        %v2388 = vsel %vm674, %v2309, 0
        %v2390 = vsel %vm674, %v2311, 0
        %v2392 = vsel %vm674, %v2313, 0
        %v2394 = vsel %vm674, %v2331, 0
        %v2396 = vsel %vm674, %v2333, 0
        %v2398 = vsel %vm674, %v2335, 0
        %v2400 = vsel %vm674, %v2337, 0
        %v2402 = vsel %vm674, %v2339, 0
        %v2404 = vsel %vm674, %v2341, 0
        %v2406 = vsel %vm674, %v2343, 0
        %v2408 = vsel %vm674, %v2345, 0
        %v2410 = vsel %vm674, %v2347, 0
        %v2412 = vsel %vm674, %v2349, 0
        %v2414 = vsel %vm674, %v2351, 0
        %v2416 = vsel %vm674, %v2353, 0
        %v2418 = vsel %vm674, %v2355, 0
        %v2420 = vsel %vm674, %v2357, 0
        %v2422 = vsel %vm674, %v2359, 0
        %v2424 = vsel %vm674, %v2361, 0
        %2426 = vmatpush.xpose.msra.mxu0 %v2424
        %2427 = vmatpush.xpose.msra.mxu0 %v2422
        %2428 = vmatpush.xpose.msra.mxu0 %v2420
        %2429 = vmatpush.xpose.msra.mxu0 %v2418
        %2430 = vmatpush.xpose.msra.mxu0 %v2416
        %2431 = vmatpush.xpose.msra.mxu0 %v2414
        %2432 = vmatpush.xpose.msra.mxu0 %v2412
        %2433 = vmatpush.xpose.msra.mxu0 %v2410
        %2434 = vmatpush.xpose.msra.mxu0 %v2408
        %2435 = vmatpush.xpose.msra.mxu0 %v2406
        %2436 = vmatpush.xpose.msra.mxu0 %v2404
        %2437 = vmatpush.xpose.msra.mxu0 %v2402
        %2438 = vmatpush.xpose.msra.mxu0 %v2400
        %2439 = vmatpush.xpose.msra.mxu0 %v2398
        %2440 = vmatpush.xpose.msra.mxu0 %v2396
        %2441 = vmatpush.xpose.msra.mxu0 %v2394
        %2442 = vmatmul.f32.gmra.mxu0 %v2362
        %v2443 = vpop.f32.mrf.mxu0
        %v2444 = vadd.f32 0.0, %v2443
        %2445 = vmatmul.f32.gmra.mxu0 %v2364
        %v2446 = vpop.f32.mrf.mxu0
        %v2447 = vadd.f32 0.0, %v2446
        %2448 = vmatmul.f32.gmra.mxu0 %v2366
        %v2449 = vpop.f32.mrf.mxu0
        %v2450 = vadd.f32 0.0, %v2449
        %2451 = vmatmul.f32.gmra.mxu0 %v2368
        %v2452 = vpop.f32.mrf.mxu0
        %v2453 = vadd.f32 0.0, %v2452
        %2454 = vmatmul.f32.gmra.mxu0 %v2370
        %v2455 = vpop.f32.mrf.mxu0
        %v2456 = vadd.f32 0.0, %v2455
        %2457 = vmatmul.f32.gmra.mxu0 %v2372
        %v2458 = vpop.f32.mrf.mxu0
        %v2459 = vadd.f32 0.0, %v2458
        %2460 = vmatmul.f32.gmra.mxu0 %v2374
        %v2461 = vpop.f32.mrf.mxu0
        %v2462 = vadd.f32 0.0, %v2461
        %2463 = vmatmul.f32.gmra.mxu0 %v2376
        %v2464 = vpop.f32.mrf.mxu0
        %v2465 = vadd.f32 0.0, %v2464
        %2466 = vmatmul.f32.gmra.mxu0 %v2378
        %v2467 = vpop.f32.mrf.mxu0
        %v2468 = vadd.f32 0.0, %v2467
        %2469 = vmatmul.f32.gmra.mxu0 %v2380
        %v2470 = vpop.f32.mrf.mxu0
        %v2471 = vadd.f32 0.0, %v2470
        %2472 = vmatmul.f32.gmra.mxu0 %v2382
        %v2473 = vpop.f32.mrf.mxu0
        %v2474 = vadd.f32 0.0, %v2473
        %2475 = vmatmul.f32.gmra.mxu0 %v2384
        %v2476 = vpop.f32.mrf.mxu0
        %v2477 = vadd.f32 0.0, %v2476
        %2478 = vmatmul.f32.gmra.mxu0 %v2386
        %v2479 = vpop.f32.mrf.mxu0
        %v2480 = vadd.f32 0.0, %v2479
        %2481 = vmatmul.f32.gmra.mxu0 %v2388
        %v2482 = vpop.f32.mrf.mxu0
        %v2483 = vadd.f32 0.0, %v2482
        %2484 = vmatmul.f32.gmra.mxu0 %v2390
        %v2485 = vpop.f32.mrf.mxu0
        %v2486 = vadd.f32 0.0, %v2485
        %2487 = vmatmul.f32.gmra.mxu0 %v2392
        %v2488 = vpop.f32.mrf.mxu0
        %v2489 = vadd.f32 0.0, %v2488
        %2490 = vdwg.mxu0
        %2491 = vmax.xlane.f32.xlu0 %v2444
        %v2492 = vpop.xlane.xlu0 %2491
        %2493 = vmax.xlane.f32.xlu0 %v2447
        %v2494 = vpop.xlane.xlu0 %2493
        %2495 = vmax.xlane.f32.xlu0 %v2450
        %v2496 = vpop.xlane.xlu0 %2495
        %2497 = vmax.xlane.f32.xlu0 %v2453
        %v2498 = vpop.xlane.xlu0 %2497
        %2499 = vmax.xlane.f32.xlu0 %v2456
        %v2500 = vpop.xlane.xlu0 %2499
        %2501 = vmax.xlane.f32.xlu0 %v2459
        %v2502 = vpop.xlane.xlu0 %2501
        %2503 = vmax.xlane.f32.xlu0 %v2462
        %v2504 = vpop.xlane.xlu0 %2503
        %2505 = vmax.xlane.f32.xlu0 %v2465
        %v2506 = vpop.xlane.xlu0 %2505
        %2507 = vmax.xlane.f32.xlu0 %v2468
        %v2508 = vpop.xlane.xlu0 %2507
        %2509 = vmax.xlane.f32.xlu0 %v2471
        %v2510 = vpop.xlane.xlu0 %2509
        %2511 = vmax.xlane.f32.xlu0 %v2474
        %v2512 = vpop.xlane.xlu0 %2511
        %2513 = vmax.xlane.f32.xlu0 %v2477
        %v2514 = vpop.xlane.xlu0 %2513
        %2515 = vmax.xlane.f32.xlu0 %v2480
        %v2516 = vpop.xlane.xlu0 %2515
        %2517 = vmax.xlane.f32.xlu0 %v2483
        %v2518 = vpop.xlane.xlu0 %2517
        %2519 = vmax.xlane.f32.xlu0 %v2486
        %v2520 = vpop.xlane.xlu0 %2519
        %2521 = vmax.xlane.f32.xlu0 %v2489
        %v2522 = vpop.xlane.xlu0 %2521
        %v2523 = vsub.f32 %v2444, %v2492
        %v2524 = vsub.f32 %v2447, %v2494
        %v2525 = vsub.f32 %v2450, %v2496
        %v2526 = vsub.f32 %v2453, %v2498
        %v2527 = vsub.f32 %v2456, %v2500
        %v2528 = vsub.f32 %v2459, %v2502
        %v2529 = vsub.f32 %v2462, %v2504
        %v2530 = vsub.f32 %v2465, %v2506
        %v2531 = vsub.f32 %v2468, %v2508
        %v2532 = vsub.f32 %v2471, %v2510
        %v2533 = vsub.f32 %v2474, %v2512
        %v2534 = vsub.f32 %v2477, %v2514
        %v2535 = vsub.f32 %v2480, %v2516
        %v2536 = vsub.f32 %v2483, %v2518
        %v2537 = vsub.f32 %v2486, %v2520
        %v2538 = vsub.f32 %v2489, %v2522
        %v2539 = vmul.f32 %v2523, 1.442695
        %v2540 = vpow.pop %v2539
        %v2541 = vmul.f32 %v2524, 1.442695
        %v2542 = vpow.pop %v2541
        %v2543 = vmul.f32 %v2525, 1.442695
        %v2544 = vpow.pop %v2543
        %v2545 = vmul.f32 %v2526, 1.442695
        %v2546 = vpow.pop %v2545
        %v2547 = vmul.f32 %v2527, 1.442695
        %v2548 = vpow.pop %v2547
        %v2549 = vmul.f32 %v2528, 1.442695
        %v2550 = vpow.pop %v2549
        %v2551 = vmul.f32 %v2529, 1.442695
        %v2552 = vpow.pop %v2551
        %v2553 = vmul.f32 %v2530, 1.442695
        %v2554 = vpow.pop %v2553
        %v2555 = vmul.f32 %v2531, 1.442695
        %v2556 = vpow.pop %v2555
        %v2557 = vmul.f32 %v2532, 1.442695
        %v2558 = vpow.pop %v2557
        %v2559 = vmul.f32 %v2533, 1.442695
        %v2560 = vpow.pop %v2559
        %v2561 = vmul.f32 %v2534, 1.442695
        %v2562 = vpow.pop %v2561
        %v2563 = vmul.f32 %v2535, 1.442695
        %v2564 = vpow.pop %v2563
        %v2565 = vmul.f32 %v2536, 1.442695
        %v2566 = vpow.pop %v2565
        %v2567 = vmul.f32 %v2537, 1.442695
        %v2568 = vpow.pop %v2567
        %v2569 = vmul.f32 %v2538, 1.442695
        %v2570 = vpow.pop %v2569
        %2571 = vadd.xlane.f32.xlu0 %v2540
        %v2572 = vpop.xlane.xlu0 %2571
        %2573 = vadd.xlane.f32.xlu0 %v2542
        %v2574 = vpop.xlane.xlu0 %2573
        %2575 = vadd.xlane.f32.xlu0 %v2544
        %v2576 = vpop.xlane.xlu0 %2575
        %2577 = vadd.xlane.f32.xlu0 %v2546
        %v2578 = vpop.xlane.xlu0 %2577
        %2579 = vadd.xlane.f32.xlu0 %v2548
        %v2580 = vpop.xlane.xlu0 %2579
        %2581 = vadd.xlane.f32.xlu0 %v2550
        %v2582 = vpop.xlane.xlu0 %2581
        %2583 = vadd.xlane.f32.xlu0 %v2552
        %v2584 = vpop.xlane.xlu0 %2583
        %2585 = vadd.xlane.f32.xlu0 %v2554
        %v2586 = vpop.xlane.xlu0 %2585
        %2587 = vadd.xlane.f32.xlu0 %v2556
        %v2588 = vpop.xlane.xlu0 %2587
        %2589 = vadd.xlane.f32.xlu0 %v2558
        %v2590 = vpop.xlane.xlu0 %2589
        %2591 = vadd.xlane.f32.xlu0 %v2560
        %v2592 = vpop.xlane.xlu0 %2591
        %2593 = vadd.xlane.f32.xlu0 %v2562
        %v2594 = vpop.xlane.xlu0 %2593
        %2595 = vadd.xlane.f32.xlu0 %v2564
        %v2596 = vpop.xlane.xlu0 %2595
        %2597 = vadd.xlane.f32.xlu0 %v2566
        %v2598 = vpop.xlane.xlu0 %2597
        %2599 = vadd.xlane.f32.xlu0 %v2568
        %v2600 = vpop.xlane.xlu0 %2599
        %2601 = vadd.xlane.f32.xlu0 %v2570
        %v2602 = vpop.xlane.xlu0 %2601
        %v2603 = vrcp.pop %v2572
        %v2604 = vrcp.pop %v2574
        %v2605 = vrcp.pop %v2576
        %v2606 = vrcp.pop %v2578
        %v2607 = vrcp.pop %v2580
        %v2608 = vrcp.pop %v2582
        %v2609 = vrcp.pop %v2584
        %v2610 = vrcp.pop %v2586
        %v2611 = vrcp.pop %v2588
        %v2612 = vrcp.pop %v2590
        %v2613 = vrcp.pop %v2592
        %v2614 = vrcp.pop %v2594
        %v2615 = vrcp.pop %v2596
        %v2616 = vrcp.pop %v2598
        %v2617 = vrcp.pop %v2600
        %v2618 = vrcp.pop %v2602
        %v2619 = vmul.f32 %v2540, %v2603
        %v2620 = vmul.f32 %v2542, %v2604
        %v2621 = vmul.f32 %v2544, %v2605
        %v2622 = vmul.f32 %v2546, %v2606
        %v2623 = vmul.f32 %v2548, %v2607
        %v2624 = vmul.f32 %v2550, %v2608
        %v2625 = vmul.f32 %v2552, %v2609
        %v2626 = vmul.f32 %v2554, %v2610
        %v2627 = vmul.f32 %v2556, %v2611
        %v2628 = vmul.f32 %v2558, %v2612
        %v2629 = vmul.f32 %v2560, %v2613
        %v2630 = vmul.f32 %v2562, %v2614
        %v2631 = vmul.f32 %v2564, %v2615
        %v2632 = vmul.f32 %v2566, %v2616
        %v2633 = vmul.f32 %v2568, %v2617
        %v2634 = vmul.f32 %v2570, %v2618
        %s2635 = scalar_lea.vmem [#allocation3], 384
        %2636 = vst [vmem:[%s2635] sm:$0xff] %v2619
        %2637 = vst [vmem:[%s2635 + $0x8] sm:$0xff] %v2620
        %2638 = vst [vmem:[%s2635 + $0x10] sm:$0xff] %v2621
        %2639 = vst [vmem:[%s2635 + $0x18] sm:$0xff] %v2622
        %2640 = vst [vmem:[%s2635 + $0x20] sm:$0xff] %v2623
        %2641 = vst [vmem:[%s2635 + $0x28] sm:$0xff] %v2624
        %2642 = vst [vmem:[%s2635 + $0x30] sm:$0xff] %v2625
        %2643 = vst [vmem:[%s2635 + $0x38] sm:$0xff] %v2626
        %2644 = vst [vmem:[%s2635 + $0x40] sm:$0xff] %v2627
        %2645 = vst [vmem:[%s2635 + $0x48] sm:$0xff] %v2628
        %2646 = vst [vmem:[%s2635 + $0x50] sm:$0xff] %v2629
        %2647 = vst [vmem:[%s2635 + $0x58] sm:$0xff] %v2630
        %2648 = vst [vmem:[%s2635 + $0x60] sm:$0xff] %v2631
        %2649 = vst [vmem:[%s2635 + $0x68] sm:$0xff] %v2632
        %2650 = vst [vmem:[%s2635 + $0x70] sm:$0xff] %v2633
        %2651 = vst [vmem:[%s2635 + $0x78] sm:$0xff] %v2634
        %s2652 = sadd.s32 384, %s996
        %s2653 = scalar_lea.hbm %s6, %s2652
        %s2654 = scalar_lea.sflag [#allocation4], 3
        // Predicated region
        $region69: #{tpu_custom_call.1} parent=39 // pred_check
          _
        $region70: #{tpu_custom_call.1} parent=39 // pred_check_branch
          %2656 = sbr.rel target = $region72
        $region71: #{tpu_custom_call.1} parent=39 // pred_region
          %2657 = sst [smem:[#allocation16]] [#allocation23]
          %2658 = sst [smem:[#allocation17]] [#allocation22]
        $region72: #{tpu_custom_call.1} parent=39 // pred_fallthru
          _
        %2660 = shalt.err (0)
        %s2662 = sshll.u32 %s2635, 4
        %s2663 = int_to_ptr.vmem [resolvable:$true] %s2662
        %s2664 = sshll.u32 %s2653, 4
        %s2665 = int_to_ptr.hbm [resolvable:$true] %s2664
        %2667 = dma.vmem_to_hbm [thread:$0]  %s2663, 2048, %s2665, %s2654
        %v2668 = vpack.c.bf16 %v2620, %v2619
        %v2669 = vpack.c.bf16 %v2622, %v2621
        %v2670 = vpack.c.bf16 %v2624, %v2623
        %v2671 = vpack.c.bf16 %v2626, %v2625
        %v2672 = vpack.c.bf16 %v2628, %v2627
        %v2673 = vpack.c.bf16 %v2630, %v2629
        %v2674 = vpack.c.bf16 %v2632, %v2631
        %v2675 = vpack.c.bf16 %v2634, %v2633
        %v2676 = vpack.c.bf16 %v2251, %v2250
        %v2677 = vpack.c.bf16 %v2253, %v2252
        %v2678 = vpack.c.bf16 %v2255, %v2254
        %v2679 = vpack.c.bf16 %v2257, %v2256
        %v2680 = vpack.c.bf16 %v2259, %v2258
        %v2681 = vpack.c.bf16 %v2261, %v2260
        %v2682 = vpack.c.bf16 %v2263, %v2262
        %v2683 = vpack.c.bf16 %v2265, %v2264
        %2692 = vrot.lane.b32.xlu0 %v2676, 80
        %v2693 = vpop.permute.xlu0 %2692
        %2694 = vrot.lane.b32.xlu0 %v2677, 80
        %v2695 = vpop.permute.xlu0 %2694
        %2696 = vrot.lane.b32.xlu0 %v2678, 80
        %v2697 = vpop.permute.xlu0 %2696
        %2698 = vrot.lane.b32.xlu0 %v2679, 80
        %v2699 = vpop.permute.xlu0 %2698
        %2700 = vrot.lane.b32.xlu0 %v2680, 80
        %v2701 = vpop.permute.xlu0 %2700
        %2702 = vrot.lane.b32.xlu0 %v2681, 80
        %v2703 = vpop.permute.xlu0 %2702
        %2704 = vrot.lane.b32.xlu0 %v2682, 80
        %v2705 = vpop.permute.xlu0 %2704
        %2706 = vrot.lane.b32.xlu0 %v2683, 80
        %v2707 = vpop.permute.xlu0 %2706
        %2716 = vmatpush.bf16.msra.mxu0 %v2707
        %2717 = vmatpush.bf16.msra.mxu0 %v2705
        %2718 = vmatpush.bf16.msra.mxu0 %v2703
        %2719 = vmatpush.bf16.msra.mxu0 %v2701
        %2720 = vmatpush.bf16.msra.mxu0 %v2699
        %2721 = vmatpush.bf16.msra.mxu0 %v2697
        %2722 = vmatpush.bf16.msra.mxu0 %v2695
        %2723 = vmatpush.bf16.msra.mxu0 %v2693
        %2724 = vmatmul.bf16.gmra.mxu0 %v2668
        %v2725 = vpop.f32.mrf.mxu0
        %v2726 = vadd.f32 0.0, %v2725
        %v2727 = vpop.f32.mrf.mxu0
        %v2728 = vadd.f32 0.0, %v2727
        %2729 = vmatmul.bf16.gmra.mxu0 %v2669
        %v2730 = vpop.f32.mrf.mxu0
        %v2731 = vadd.f32 0.0, %v2730
        %v2732 = vpop.f32.mrf.mxu0
        %v2733 = vadd.f32 0.0, %v2732
        %2734 = vmatmul.bf16.gmra.mxu0 %v2670
        %v2735 = vpop.f32.mrf.mxu0
        %v2736 = vadd.f32 0.0, %v2735
        %v2737 = vpop.f32.mrf.mxu0
        %v2738 = vadd.f32 0.0, %v2737
        %2739 = vmatmul.bf16.gmra.mxu0 %v2671
        %v2740 = vpop.f32.mrf.mxu0
        %v2741 = vadd.f32 0.0, %v2740
        %v2742 = vpop.f32.mrf.mxu0
        %v2743 = vadd.f32 0.0, %v2742
        %2744 = vmatmul.bf16.gmra.mxu0 %v2672
        %v2745 = vpop.f32.mrf.mxu0
        %v2746 = vadd.f32 0.0, %v2745
        %v2747 = vpop.f32.mrf.mxu0
        %v2748 = vadd.f32 0.0, %v2747
        %2749 = vmatmul.bf16.gmra.mxu0 %v2673
        %v2750 = vpop.f32.mrf.mxu0
        %v2751 = vadd.f32 0.0, %v2750
        %v2752 = vpop.f32.mrf.mxu0
        %v2753 = vadd.f32 0.0, %v2752
        %2754 = vmatmul.bf16.gmra.mxu0 %v2674
        %v2755 = vpop.f32.mrf.mxu0
        %v2756 = vadd.f32 0.0, %v2755
        %v2757 = vpop.f32.mrf.mxu0
        %v2758 = vadd.f32 0.0, %v2757
        %2759 = vmatmul.bf16.gmra.mxu0 %v2675
        %v2760 = vpop.f32.mrf.mxu0
        %v2761 = vadd.f32 0.0, %v2760
        %v2762 = vpop.f32.mrf.mxu0
        %v2763 = vadd.f32 0.0, %v2762
        %2764 = vdwg.mxu0
        %v2765 = vld [vmem:[#allocation2] sm:$0xff]
        %v2766 = vld [vmem:[#allocation2 + $0x18] sm:$0xff]
        %v2767 = vld [vmem:[#allocation2 + $0x30] sm:$0xff]
        %v2768 = vld [vmem:[#allocation2 + $0x48] sm:$0xff]
        %v2769 = vld [vmem:[#allocation2 + $0x60] sm:$0xff]
        %v2770 = vld [vmem:[#allocation2 + $0x78] sm:$0xff]
        %v2771 = vld [vmem:[#allocation2 + $0x90] sm:$0xff]
        %v2772 = vld [vmem:[#allocation2 + $0xa8] sm:$0xff]
        %v2773 = vld [vmem:[#allocation2 + $0xc0] sm:$0xff]
        %v2774 = vld [vmem:[#allocation2 + $0xd8] sm:$0xff]
        %v2775 = vld [vmem:[#allocation2 + $0xf0] sm:$0xff]
        %v2776 = vld [vmem:[#allocation2 + $0x108] sm:$0xff]
        %v2777 = vld [vmem:[#allocation2 + $0x120] sm:$0xff]
        %v2778 = vld [vmem:[#allocation2 + $0x138] sm:$0xff]
        %v2779 = vld [vmem:[#allocation2 + $0x150] sm:$0xff]
        %v2780 = vld [vmem:[#allocation2 + $0x168] sm:$0xff]
        %v2781 = vmul.f32 %v2765, 0.25
        %v2782 = vmul.f32 %v2766, 0.25
        %v2783 = vmul.f32 %v2767, 0.25
        %v2784 = vmul.f32 %v2768, 0.25
        %v2785 = vmul.f32 %v2769, 0.25
        %v2786 = vmul.f32 %v2770, 0.25
        %v2787 = vmul.f32 %v2771, 0.25
        %v2788 = vmul.f32 %v2772, 0.25
        %v2789 = vmul.f32 %v2773, 0.25
        %v2790 = vmul.f32 %v2774, 0.25
        %v2791 = vmul.f32 %v2775, 0.25
        %v2792 = vmul.f32 %v2776, 0.25
        %v2793 = vmul.f32 %v2777, 0.25
        %v2794 = vmul.f32 %v2778, 0.25
        %v2795 = vmul.f32 %v2779, 0.25
        %v2796 = vmul.f32 %v2780, 0.25
        %v2797 = vld [vmem:[#allocation2 + $0x8] sm:$0xff]
        %v2798 = vld [vmem:[#allocation2 + $0x20] sm:$0xff]
        %v2799 = vld [vmem:[#allocation2 + $0x38] sm:$0xff]
        %v2800 = vld [vmem:[#allocation2 + $0x50] sm:$0xff]
        %v2801 = vld [vmem:[#allocation2 + $0x68] sm:$0xff]
        %v2802 = vld [vmem:[#allocation2 + $0x80] sm:$0xff]
        %v2803 = vld [vmem:[#allocation2 + $0x98] sm:$0xff]
        %v2804 = vld [vmem:[#allocation2 + $0xb0] sm:$0xff]
        %v2805 = vld [vmem:[#allocation2 + $0xc8] sm:$0xff]
        %v2806 = vld [vmem:[#allocation2 + $0xe0] sm:$0xff]
        %v2807 = vld [vmem:[#allocation2 + $0xf8] sm:$0xff]
        %v2808 = vld [vmem:[#allocation2 + $0x110] sm:$0xff]
        %v2809 = vld [vmem:[#allocation2 + $0x128] sm:$0xff]
        %v2810 = vld [vmem:[#allocation2 + $0x140] sm:$0xff]
        %v2811 = vld [vmem:[#allocation2 + $0x158] sm:$0xff]
        %v2812 = vld [vmem:[#allocation2 + $0x170] sm:$0xff]
        %v2813 = vld [vmem:[#allocation2 + $0x10] sm:$0xff]
        %v2814 = vld [vmem:[#allocation2 + $0x28] sm:$0xff]
        %v2815 = vld [vmem:[#allocation2 + $0x40] sm:$0xff]
        %v2816 = vld [vmem:[#allocation2 + $0x58] sm:$0xff]
        %v2817 = vld [vmem:[#allocation2 + $0x70] sm:$0xff]
        %v2818 = vld [vmem:[#allocation2 + $0x88] sm:$0xff]
        %v2819 = vld [vmem:[#allocation2 + $0xa0] sm:$0xff]
        %v2820 = vld [vmem:[#allocation2 + $0xb8] sm:$0xff]
        %v2821 = vld [vmem:[#allocation2 + $0xd0] sm:$0xff]
        %v2822 = vld [vmem:[#allocation2 + $0xe8] sm:$0xff]
        %v2823 = vld [vmem:[#allocation2 + $0x100] sm:$0xff]
        %v2824 = vld [vmem:[#allocation2 + $0x118] sm:$0xff]
        %v2825 = vld [vmem:[#allocation2 + $0x130] sm:$0xff]
        %v2826 = vld [vmem:[#allocation2 + $0x148] sm:$0xff]
        %v2827 = vld [vmem:[#allocation2 + $0x160] sm:$0xff]
        %v2828 = vld [vmem:[#allocation2 + $0x178] sm:$0xff]
        %2845 = vrot.lane.b32.xlu0 %v2781, 64
        %v2846 = vpop.permute.xlu0 %2845
        %2847 = vrot.lane.b32.xlu0 %v2782, 64
        %v2848 = vpop.permute.xlu0 %2847
        %2849 = vrot.lane.b32.xlu0 %v2783, 64
        %v2850 = vpop.permute.xlu0 %2849
        %2851 = vrot.lane.b32.xlu0 %v2784, 64
        %v2852 = vpop.permute.xlu0 %2851
        %2853 = vrot.lane.b32.xlu0 %v2785, 64
        %v2854 = vpop.permute.xlu0 %2853
        %2855 = vrot.lane.b32.xlu0 %v2786, 64
        %v2856 = vpop.permute.xlu0 %2855
        %2857 = vrot.lane.b32.xlu0 %v2787, 64
        %v2858 = vpop.permute.xlu0 %2857
        %2859 = vrot.lane.b32.xlu0 %v2788, 64
        %v2860 = vpop.permute.xlu0 %2859
        %2861 = vrot.lane.b32.xlu0 %v2789, 64
        %v2862 = vpop.permute.xlu0 %2861
        %2863 = vrot.lane.b32.xlu0 %v2790, 64
        %v2864 = vpop.permute.xlu0 %2863
        %2865 = vrot.lane.b32.xlu0 %v2791, 64
        %v2866 = vpop.permute.xlu0 %2865
        %2867 = vrot.lane.b32.xlu0 %v2792, 64
        %v2868 = vpop.permute.xlu0 %2867
        %2869 = vrot.lane.b32.xlu0 %v2793, 64
        %v2870 = vpop.permute.xlu0 %2869
        %2871 = vrot.lane.b32.xlu0 %v2794, 64
        %v2872 = vpop.permute.xlu0 %2871
        %2873 = vrot.lane.b32.xlu0 %v2795, 64
        %v2874 = vpop.permute.xlu0 %2873
        %2875 = vrot.lane.b32.xlu0 %v2796, 64
        %v2876 = vpop.permute.xlu0 %2875
        %2893 = vrot.lane.b32.xlu0 %v2797, 64
        %v2894 = vpop.permute.xlu0 %2893
        %2895 = vrot.lane.b32.xlu0 %v2798, 64
        %v2896 = vpop.permute.xlu0 %2895
        %2897 = vrot.lane.b32.xlu0 %v2799, 64
        %v2898 = vpop.permute.xlu0 %2897
        %2899 = vrot.lane.b32.xlu0 %v2800, 64
        %v2900 = vpop.permute.xlu0 %2899
        %2901 = vrot.lane.b32.xlu0 %v2801, 64
        %v2902 = vpop.permute.xlu0 %2901
        %2903 = vrot.lane.b32.xlu0 %v2802, 64
        %v2904 = vpop.permute.xlu0 %2903
        %2905 = vrot.lane.b32.xlu0 %v2803, 64
        %v2906 = vpop.permute.xlu0 %2905
        %2907 = vrot.lane.b32.xlu0 %v2804, 64
        %v2908 = vpop.permute.xlu0 %2907
        %2909 = vrot.lane.b32.xlu0 %v2805, 64
        %v2910 = vpop.permute.xlu0 %2909
        %2911 = vrot.lane.b32.xlu0 %v2806, 64
        %v2912 = vpop.permute.xlu0 %2911
        %2913 = vrot.lane.b32.xlu0 %v2807, 64
        %v2914 = vpop.permute.xlu0 %2913
        %2915 = vrot.lane.b32.xlu0 %v2808, 64
        %v2916 = vpop.permute.xlu0 %2915
        %2917 = vrot.lane.b32.xlu0 %v2809, 64
        %v2918 = vpop.permute.xlu0 %2917
        %2919 = vrot.lane.b32.xlu0 %v2810, 64
        %v2920 = vpop.permute.xlu0 %2919
        %2921 = vrot.lane.b32.xlu0 %v2811, 64
        %v2922 = vpop.permute.xlu0 %2921
        %2923 = vrot.lane.b32.xlu0 %v2812, 64
        %v2924 = vpop.permute.xlu0 %2923
        %v2925 = vsel %vm674, %v2846, 0
        %v2927 = vsel %vm674, %v2848, 0
        %v2929 = vsel %vm674, %v2850, 0
        %v2931 = vsel %vm674, %v2852, 0
        %v2933 = vsel %vm674, %v2854, 0
        %v2935 = vsel %vm674, %v2856, 0
        %v2937 = vsel %vm674, %v2858, 0
        %v2939 = vsel %vm674, %v2860, 0
        %v2941 = vsel %vm674, %v2862, 0
        %v2943 = vsel %vm674, %v2864, 0
        %v2945 = vsel %vm674, %v2866, 0
        %v2947 = vsel %vm674, %v2868, 0
        %v2949 = vsel %vm674, %v2870, 0
        %v2951 = vsel %vm674, %v2872, 0
        %v2953 = vsel %vm674, %v2874, 0
        %v2955 = vsel %vm674, %v2876, 0
        %v2957 = vsel %vm674, %v2894, 0
        %v2959 = vsel %vm674, %v2896, 0
        %v2961 = vsel %vm674, %v2898, 0
        %v2963 = vsel %vm674, %v2900, 0
        %v2965 = vsel %vm674, %v2902, 0
        %v2967 = vsel %vm674, %v2904, 0
        %v2969 = vsel %vm674, %v2906, 0
        %v2971 = vsel %vm674, %v2908, 0
        %v2973 = vsel %vm674, %v2910, 0
        %v2975 = vsel %vm674, %v2912, 0
        %v2977 = vsel %vm674, %v2914, 0
        %v2979 = vsel %vm674, %v2916, 0
        %v2981 = vsel %vm674, %v2918, 0
        %v2983 = vsel %vm674, %v2920, 0
        %v2985 = vsel %vm674, %v2922, 0
        %v2987 = vsel %vm674, %v2924, 0
        %2989 = vmatpush.xpose.msra.mxu0 %v2987
        %2990 = vmatpush.xpose.msra.mxu0 %v2985
        %2991 = vmatpush.xpose.msra.mxu0 %v2983
        %2992 = vmatpush.xpose.msra.mxu0 %v2981
        %2993 = vmatpush.xpose.msra.mxu0 %v2979
        %2994 = vmatpush.xpose.msra.mxu0 %v2977
        %2995 = vmatpush.xpose.msra.mxu0 %v2975
        %2996 = vmatpush.xpose.msra.mxu0 %v2973
        %2997 = vmatpush.xpose.msra.mxu0 %v2971
        %2998 = vmatpush.xpose.msra.mxu0 %v2969
        %2999 = vmatpush.xpose.msra.mxu0 %v2967
        %3000 = vmatpush.xpose.msra.mxu0 %v2965
        %3001 = vmatpush.xpose.msra.mxu0 %v2963
        %3002 = vmatpush.xpose.msra.mxu0 %v2961
        %3003 = vmatpush.xpose.msra.mxu0 %v2959
        %3004 = vmatpush.xpose.msra.mxu0 %v2957
        %3005 = vmatmul.f32.gmra.mxu0 %v2925
        %v3006 = vpop.f32.mrf.mxu0
        %v3007 = vadd.f32 0.0, %v3006
        %3008 = vmatmul.f32.gmra.mxu0 %v2927
        %v3009 = vpop.f32.mrf.mxu0
        %v3010 = vadd.f32 0.0, %v3009
        %3011 = vmatmul.f32.gmra.mxu0 %v2929
        %v3012 = vpop.f32.mrf.mxu0
        %v3013 = vadd.f32 0.0, %v3012
        %3014 = vmatmul.f32.gmra.mxu0 %v2931
        %v3015 = vpop.f32.mrf.mxu0
        %v3016 = vadd.f32 0.0, %v3015
        %3017 = vmatmul.f32.gmra.mxu0 %v2933
        %v3018 = vpop.f32.mrf.mxu0
        %v3019 = vadd.f32 0.0, %v3018
        %3020 = vmatmul.f32.gmra.mxu0 %v2935
        %v3021 = vpop.f32.mrf.mxu0
        %v3022 = vadd.f32 0.0, %v3021
        %3023 = vmatmul.f32.gmra.mxu0 %v2937
        %v3024 = vpop.f32.mrf.mxu0
        %v3025 = vadd.f32 0.0, %v3024
        %3026 = vmatmul.f32.gmra.mxu0 %v2939
        %v3027 = vpop.f32.mrf.mxu0
        %v3028 = vadd.f32 0.0, %v3027
        %3029 = vmatmul.f32.gmra.mxu0 %v2941
        %v3030 = vpop.f32.mrf.mxu0
        %v3031 = vadd.f32 0.0, %v3030
        %3032 = vmatmul.f32.gmra.mxu0 %v2943
        %v3033 = vpop.f32.mrf.mxu0
        %v3034 = vadd.f32 0.0, %v3033
        %3035 = vmatmul.f32.gmra.mxu0 %v2945
        %v3036 = vpop.f32.mrf.mxu0
        %v3037 = vadd.f32 0.0, %v3036
        %3038 = vmatmul.f32.gmra.mxu0 %v2947
        %v3039 = vpop.f32.mrf.mxu0
        %v3040 = vadd.f32 0.0, %v3039
        %3041 = vmatmul.f32.gmra.mxu0 %v2949
        %v3042 = vpop.f32.mrf.mxu0
        %v3043 = vadd.f32 0.0, %v3042
        %3044 = vmatmul.f32.gmra.mxu0 %v2951
        %v3045 = vpop.f32.mrf.mxu0
        %v3046 = vadd.f32 0.0, %v3045
        %3047 = vmatmul.f32.gmra.mxu0 %v2953
        %v3048 = vpop.f32.mrf.mxu0
        %v3049 = vadd.f32 0.0, %v3048
        %3050 = vmatmul.f32.gmra.mxu0 %v2955
        %v3051 = vpop.f32.mrf.mxu0
        %v3052 = vadd.f32 0.0, %v3051
        %3053 = vdwg.mxu0
        %3054 = vmax.xlane.f32.xlu0 %v3007
        %v3055 = vpop.xlane.xlu0 %3054
        %3056 = vmax.xlane.f32.xlu0 %v3010
        %v3057 = vpop.xlane.xlu0 %3056
        %3058 = vmax.xlane.f32.xlu0 %v3013
        %v3059 = vpop.xlane.xlu0 %3058
        %3060 = vmax.xlane.f32.xlu0 %v3016
        %v3061 = vpop.xlane.xlu0 %3060
        %3062 = vmax.xlane.f32.xlu0 %v3019
        %v3063 = vpop.xlane.xlu0 %3062
        %3064 = vmax.xlane.f32.xlu0 %v3022
        %v3065 = vpop.xlane.xlu0 %3064
        %3066 = vmax.xlane.f32.xlu0 %v3025
        %v3067 = vpop.xlane.xlu0 %3066
        %3068 = vmax.xlane.f32.xlu0 %v3028
        %v3069 = vpop.xlane.xlu0 %3068
        %3070 = vmax.xlane.f32.xlu0 %v3031
        %v3071 = vpop.xlane.xlu0 %3070
        %3072 = vmax.xlane.f32.xlu0 %v3034
        %v3073 = vpop.xlane.xlu0 %3072
        %3074 = vmax.xlane.f32.xlu0 %v3037
        %v3075 = vpop.xlane.xlu0 %3074
        %3076 = vmax.xlane.f32.xlu0 %v3040
        %v3077 = vpop.xlane.xlu0 %3076
        %3078 = vmax.xlane.f32.xlu0 %v3043
        %v3079 = vpop.xlane.xlu0 %3078
        %3080 = vmax.xlane.f32.xlu0 %v3046
        %v3081 = vpop.xlane.xlu0 %3080
        %3082 = vmax.xlane.f32.xlu0 %v3049
        %v3083 = vpop.xlane.xlu0 %3082
        %3084 = vmax.xlane.f32.xlu0 %v3052
        %v3085 = vpop.xlane.xlu0 %3084
        %v3086 = vsub.f32 %v3007, %v3055
        %v3087 = vsub.f32 %v3010, %v3057
        %v3088 = vsub.f32 %v3013, %v3059
        %v3089 = vsub.f32 %v3016, %v3061
        %v3090 = vsub.f32 %v3019, %v3063
        %v3091 = vsub.f32 %v3022, %v3065
        %v3092 = vsub.f32 %v3025, %v3067
        %v3093 = vsub.f32 %v3028, %v3069
        %v3094 = vsub.f32 %v3031, %v3071
        %v3095 = vsub.f32 %v3034, %v3073
        %v3096 = vsub.f32 %v3037, %v3075
        %v3097 = vsub.f32 %v3040, %v3077
        %v3098 = vsub.f32 %v3043, %v3079
        %v3099 = vsub.f32 %v3046, %v3081
        %v3100 = vsub.f32 %v3049, %v3083
        %v3101 = vsub.f32 %v3052, %v3085
        %v3102 = vmul.f32 %v3086, 1.442695
        %v3103 = vpow.pop %v3102
        %v3104 = vmul.f32 %v3087, 1.442695
        %v3105 = vpow.pop %v3104
        %v3106 = vmul.f32 %v3088, 1.442695
        %v3107 = vpow.pop %v3106
        %v3108 = vmul.f32 %v3089, 1.442695
        %v3109 = vpow.pop %v3108
        %v3110 = vmul.f32 %v3090, 1.442695
        %v3111 = vpow.pop %v3110
        %v3112 = vmul.f32 %v3091, 1.442695
        %v3113 = vpow.pop %v3112
        %v3114 = vmul.f32 %v3092, 1.442695
        %v3115 = vpow.pop %v3114
        %v3116 = vmul.f32 %v3093, 1.442695
        %v3117 = vpow.pop %v3116
        %v3118 = vmul.f32 %v3094, 1.442695
        %v3119 = vpow.pop %v3118
        %v3120 = vmul.f32 %v3095, 1.442695
        %v3121 = vpow.pop %v3120
        %v3122 = vmul.f32 %v3096, 1.442695
        %v3123 = vpow.pop %v3122
        %v3124 = vmul.f32 %v3097, 1.442695
        %v3125 = vpow.pop %v3124
        %v3126 = vmul.f32 %v3098, 1.442695
        %v3127 = vpow.pop %v3126
        %v3128 = vmul.f32 %v3099, 1.442695
        %v3129 = vpow.pop %v3128
        %v3130 = vmul.f32 %v3100, 1.442695
        %v3131 = vpow.pop %v3130
        %v3132 = vmul.f32 %v3101, 1.442695
        %v3133 = vpow.pop %v3132
        %3134 = vadd.xlane.f32.xlu0 %v3103
        %v3135 = vpop.xlane.xlu0 %3134
        %3136 = vadd.xlane.f32.xlu0 %v3105
        %v3137 = vpop.xlane.xlu0 %3136
        %3138 = vadd.xlane.f32.xlu0 %v3107
        %v3139 = vpop.xlane.xlu0 %3138
        %3140 = vadd.xlane.f32.xlu0 %v3109
        %v3141 = vpop.xlane.xlu0 %3140
        %3142 = vadd.xlane.f32.xlu0 %v3111
        %v3143 = vpop.xlane.xlu0 %3142
        %3144 = vadd.xlane.f32.xlu0 %v3113
        %v3145 = vpop.xlane.xlu0 %3144
        %3146 = vadd.xlane.f32.xlu0 %v3115
        %v3147 = vpop.xlane.xlu0 %3146
        %3148 = vadd.xlane.f32.xlu0 %v3117
        %v3149 = vpop.xlane.xlu0 %3148
        %3150 = vadd.xlane.f32.xlu0 %v3119
        %v3151 = vpop.xlane.xlu0 %3150
        %3152 = vadd.xlane.f32.xlu0 %v3121
        %v3153 = vpop.xlane.xlu0 %3152
        %3154 = vadd.xlane.f32.xlu0 %v3123
        %v3155 = vpop.xlane.xlu0 %3154
        %3156 = vadd.xlane.f32.xlu0 %v3125
        %v3157 = vpop.xlane.xlu0 %3156
        %3158 = vadd.xlane.f32.xlu0 %v3127
        %v3159 = vpop.xlane.xlu0 %3158
        %3160 = vadd.xlane.f32.xlu0 %v3129
        %v3161 = vpop.xlane.xlu0 %3160
        %3162 = vadd.xlane.f32.xlu0 %v3131
        %v3163 = vpop.xlane.xlu0 %3162
        %3164 = vadd.xlane.f32.xlu0 %v3133
        %v3165 = vpop.xlane.xlu0 %3164
        %v3166 = vrcp.pop %v3135
        %v3167 = vrcp.pop %v3137
        %v3168 = vrcp.pop %v3139
        %v3169 = vrcp.pop %v3141
        %v3170 = vrcp.pop %v3143
        %v3171 = vrcp.pop %v3145
        %v3172 = vrcp.pop %v3147
        %v3173 = vrcp.pop %v3149
        %v3174 = vrcp.pop %v3151
        %v3175 = vrcp.pop %v3153
        %v3176 = vrcp.pop %v3155
        %v3177 = vrcp.pop %v3157
        %v3178 = vrcp.pop %v3159
        %v3179 = vrcp.pop %v3161
        %v3180 = vrcp.pop %v3163
        %v3181 = vrcp.pop %v3165
        %v3182 = vmul.f32 %v3103, %v3166
        %v3183 = vmul.f32 %v3105, %v3167
        %v3184 = vmul.f32 %v3107, %v3168
        %v3185 = vmul.f32 %v3109, %v3169
        %v3186 = vmul.f32 %v3111, %v3170
        %v3187 = vmul.f32 %v3113, %v3171
        %v3188 = vmul.f32 %v3115, %v3172
        %v3189 = vmul.f32 %v3117, %v3173
        %v3190 = vmul.f32 %v3119, %v3174
        %v3191 = vmul.f32 %v3121, %v3175
        %v3192 = vmul.f32 %v3123, %v3176
        %v3193 = vmul.f32 %v3125, %v3177
        %v3194 = vmul.f32 %v3127, %v3178
        %v3195 = vmul.f32 %v3129, %v3179
        %v3196 = vmul.f32 %v3131, %v3180
        %v3197 = vmul.f32 %v3133, %v3181
        %s3198 = scalar_lea.vmem [#allocation3], 512
        %3199 = vst [vmem:[%s3198] sm:$0xff] %v3182
        %3200 = vst [vmem:[%s3198 + $0x8] sm:$0xff] %v3183
        %3201 = vst [vmem:[%s3198 + $0x10] sm:$0xff] %v3184
        %3202 = vst [vmem:[%s3198 + $0x18] sm:$0xff] %v3185
        %3203 = vst [vmem:[%s3198 + $0x20] sm:$0xff] %v3186
        %3204 = vst [vmem:[%s3198 + $0x28] sm:$0xff] %v3187
        %3205 = vst [vmem:[%s3198 + $0x30] sm:$0xff] %v3188
        %3206 = vst [vmem:[%s3198 + $0x38] sm:$0xff] %v3189
        %3207 = vst [vmem:[%s3198 + $0x40] sm:$0xff] %v3190
        %3208 = vst [vmem:[%s3198 + $0x48] sm:$0xff] %v3191
        %3209 = vst [vmem:[%s3198 + $0x50] sm:$0xff] %v3192
        %3210 = vst [vmem:[%s3198 + $0x58] sm:$0xff] %v3193
        %3211 = vst [vmem:[%s3198 + $0x60] sm:$0xff] %v3194
        %3212 = vst [vmem:[%s3198 + $0x68] sm:$0xff] %v3195
        %3213 = vst [vmem:[%s3198 + $0x70] sm:$0xff] %v3196
        %3214 = vst [vmem:[%s3198 + $0x78] sm:$0xff] %v3197
        %s3215 = sadd.s32 512, %s996
        %s3216 = scalar_lea.hbm %s6, %s3215
        %s3217 = scalar_lea.sflag [#allocation4], 4
        // Predicated region
        $region73: #{tpu_custom_call.1} parent=39 // pred_check
          _
        $region74: #{tpu_custom_call.1} parent=39 // pred_check_branch
          %3219 = sbr.rel target = $region76
        $region75: #{tpu_custom_call.1} parent=39 // pred_region
          %3220 = sst [smem:[#allocation16]] [#allocation25]
          %3221 = sst [smem:[#allocation17]] [#allocation24]
        $region76: #{tpu_custom_call.1} parent=39 // pred_fallthru
          _
        %3223 = shalt.err (0)
        %s3225 = sshll.u32 %s3198, 4
        %s3226 = int_to_ptr.vmem [resolvable:$true] %s3225
        %s3227 = sshll.u32 %s3216, 4
        %s3228 = int_to_ptr.hbm [resolvable:$true] %s3227
        %3230 = dma.vmem_to_hbm [thread:$0]  %s3226, 2048, %s3228, %s3217
        %v3231 = vpack.c.bf16 %v3183, %v3182
        %v3232 = vpack.c.bf16 %v3185, %v3184
        %v3233 = vpack.c.bf16 %v3187, %v3186
        %v3234 = vpack.c.bf16 %v3189, %v3188
        %v3235 = vpack.c.bf16 %v3191, %v3190
        %v3236 = vpack.c.bf16 %v3193, %v3192
        %v3237 = vpack.c.bf16 %v3195, %v3194
        %v3238 = vpack.c.bf16 %v3197, %v3196
        %v3239 = vpack.c.bf16 %v2814, %v2813
        %v3240 = vpack.c.bf16 %v2816, %v2815
        %v3241 = vpack.c.bf16 %v2818, %v2817
        %v3242 = vpack.c.bf16 %v2820, %v2819
        %v3243 = vpack.c.bf16 %v2822, %v2821
        %v3244 = vpack.c.bf16 %v2824, %v2823
        %v3245 = vpack.c.bf16 %v2826, %v2825
        %v3246 = vpack.c.bf16 %v2828, %v2827
        %3255 = vrot.lane.b32.xlu0 %v3239, 64
        %v3256 = vpop.permute.xlu0 %3255
        %3257 = vrot.lane.b32.xlu0 %v3240, 64
        %v3258 = vpop.permute.xlu0 %3257
        %3259 = vrot.lane.b32.xlu0 %v3241, 64
        %v3260 = vpop.permute.xlu0 %3259
        %3261 = vrot.lane.b32.xlu0 %v3242, 64
        %v3262 = vpop.permute.xlu0 %3261
        %3263 = vrot.lane.b32.xlu0 %v3243, 64
        %v3264 = vpop.permute.xlu0 %3263
        %3265 = vrot.lane.b32.xlu0 %v3244, 64
        %v3266 = vpop.permute.xlu0 %3265
        %3267 = vrot.lane.b32.xlu0 %v3245, 64
        %v3268 = vpop.permute.xlu0 %3267
        %3269 = vrot.lane.b32.xlu0 %v3246, 64
        %v3270 = vpop.permute.xlu0 %3269
        %3279 = vmatpush.bf16.msra.mxu0 %v3270
        %3280 = vmatpush.bf16.msra.mxu0 %v3268
        %3281 = vmatpush.bf16.msra.mxu0 %v3266
        %3282 = vmatpush.bf16.msra.mxu0 %v3264
        %3283 = vmatpush.bf16.msra.mxu0 %v3262
        %3284 = vmatpush.bf16.msra.mxu0 %v3260
        %3285 = vmatpush.bf16.msra.mxu0 %v3258
        %3286 = vmatpush.bf16.msra.mxu0 %v3256
        %3287 = vmatmul.bf16.gmra.mxu0 %v3231
        %v3288 = vpop.f32.mrf.mxu0
        %v3289 = vadd.f32 0.0, %v3288
        %v3290 = vpop.f32.mrf.mxu0
        %v3291 = vadd.f32 0.0, %v3290
        %3292 = vmatmul.bf16.gmra.mxu0 %v3232
        %v3293 = vpop.f32.mrf.mxu0
        %v3294 = vadd.f32 0.0, %v3293
        %v3295 = vpop.f32.mrf.mxu0
        %v3296 = vadd.f32 0.0, %v3295
        %3297 = vmatmul.bf16.gmra.mxu0 %v3233
        %v3298 = vpop.f32.mrf.mxu0
        %v3299 = vadd.f32 0.0, %v3298
        %v3300 = vpop.f32.mrf.mxu0
        %v3301 = vadd.f32 0.0, %v3300
        %3302 = vmatmul.bf16.gmra.mxu0 %v3234
        %v3303 = vpop.f32.mrf.mxu0
        %v3304 = vadd.f32 0.0, %v3303
        %v3305 = vpop.f32.mrf.mxu0
        %v3306 = vadd.f32 0.0, %v3305
        %3307 = vmatmul.bf16.gmra.mxu0 %v3235
        %v3308 = vpop.f32.mrf.mxu0
        %v3309 = vadd.f32 0.0, %v3308
        %v3310 = vpop.f32.mrf.mxu0
        %v3311 = vadd.f32 0.0, %v3310
        %3312 = vmatmul.bf16.gmra.mxu0 %v3236
        %v3313 = vpop.f32.mrf.mxu0
        %v3314 = vadd.f32 0.0, %v3313
        %v3315 = vpop.f32.mrf.mxu0
        %v3316 = vadd.f32 0.0, %v3315
        %3317 = vmatmul.bf16.gmra.mxu0 %v3237
        %v3318 = vpop.f32.mrf.mxu0
        %v3319 = vadd.f32 0.0, %v3318
        %v3320 = vpop.f32.mrf.mxu0
        %v3321 = vadd.f32 0.0, %v3320
        %3322 = vmatmul.bf16.gmra.mxu0 %v3238
        %v3323 = vpop.f32.mrf.mxu0
        %v3324 = vadd.f32 0.0, %v3323
        %v3325 = vpop.f32.mrf.mxu0
        %v3326 = vadd.f32 0.0, %v3325
        %3327 = vdwg.mxu0
        %v3328 = vld [vmem:[#allocation2] sm:$0xff]
        %v3329 = vld [vmem:[#allocation2 + $0x18] sm:$0xff]
        %v3330 = vld [vmem:[#allocation2 + $0x30] sm:$0xff]
        %v3331 = vld [vmem:[#allocation2 + $0x48] sm:$0xff]
        %v3332 = vld [vmem:[#allocation2 + $0x60] sm:$0xff]
        %v3333 = vld [vmem:[#allocation2 + $0x78] sm:$0xff]
        %v3334 = vld [vmem:[#allocation2 + $0x90] sm:$0xff]
        %v3335 = vld [vmem:[#allocation2 + $0xa8] sm:$0xff]
        %v3336 = vld [vmem:[#allocation2 + $0xc0] sm:$0xff]
        %v3337 = vld [vmem:[#allocation2 + $0xd8] sm:$0xff]
        %v3338 = vld [vmem:[#allocation2 + $0xf0] sm:$0xff]
        %v3339 = vld [vmem:[#allocation2 + $0x108] sm:$0xff]
        %v3340 = vld [vmem:[#allocation2 + $0x120] sm:$0xff]
        %v3341 = vld [vmem:[#allocation2 + $0x138] sm:$0xff]
        %v3342 = vld [vmem:[#allocation2 + $0x150] sm:$0xff]
        %v3343 = vld [vmem:[#allocation2 + $0x168] sm:$0xff]
        %v3344 = vmul.f32 %v3328, 0.25
        %v3345 = vmul.f32 %v3329, 0.25
        %v3346 = vmul.f32 %v3330, 0.25
        %v3347 = vmul.f32 %v3331, 0.25
        %v3348 = vmul.f32 %v3332, 0.25
        %v3349 = vmul.f32 %v3333, 0.25
        %v3350 = vmul.f32 %v3334, 0.25
        %v3351 = vmul.f32 %v3335, 0.25
        %v3352 = vmul.f32 %v3336, 0.25
        %v3353 = vmul.f32 %v3337, 0.25
        %v3354 = vmul.f32 %v3338, 0.25
        %v3355 = vmul.f32 %v3339, 0.25
        %v3356 = vmul.f32 %v3340, 0.25
        %v3357 = vmul.f32 %v3341, 0.25
        %v3358 = vmul.f32 %v3342, 0.25
        %v3359 = vmul.f32 %v3343, 0.25
        %v3360 = vld [vmem:[#allocation2 + $0x8] sm:$0xff]
        %v3361 = vld [vmem:[#allocation2 + $0x20] sm:$0xff]
        %v3362 = vld [vmem:[#allocation2 + $0x38] sm:$0xff]
        %v3363 = vld [vmem:[#allocation2 + $0x50] sm:$0xff]
        %v3364 = vld [vmem:[#allocation2 + $0x68] sm:$0xff]
        %v3365 = vld [vmem:[#allocation2 + $0x80] sm:$0xff]
        %v3366 = vld [vmem:[#allocation2 + $0x98] sm:$0xff]
        %v3367 = vld [vmem:[#allocation2 + $0xb0] sm:$0xff]
        %v3368 = vld [vmem:[#allocation2 + $0xc8] sm:$0xff]
        %v3369 = vld [vmem:[#allocation2 + $0xe0] sm:$0xff]
        %v3370 = vld [vmem:[#allocation2 + $0xf8] sm:$0xff]
        %v3371 = vld [vmem:[#allocation2 + $0x110] sm:$0xff]
        %v3372 = vld [vmem:[#allocation2 + $0x128] sm:$0xff]
        %v3373 = vld [vmem:[#allocation2 + $0x140] sm:$0xff]
        %v3374 = vld [vmem:[#allocation2 + $0x158] sm:$0xff]
        %v3375 = vld [vmem:[#allocation2 + $0x170] sm:$0xff]
        %v3376 = vld [vmem:[#allocation2 + $0x10] sm:$0xff]
        %v3377 = vld [vmem:[#allocation2 + $0x28] sm:$0xff]
        %v3378 = vld [vmem:[#allocation2 + $0x40] sm:$0xff]
        %v3379 = vld [vmem:[#allocation2 + $0x58] sm:$0xff]
        %v3380 = vld [vmem:[#allocation2 + $0x70] sm:$0xff]
        %v3381 = vld [vmem:[#allocation2 + $0x88] sm:$0xff]
        %v3382 = vld [vmem:[#allocation2 + $0xa0] sm:$0xff]
        %v3383 = vld [vmem:[#allocation2 + $0xb8] sm:$0xff]
        %v3384 = vld [vmem:[#allocation2 + $0xd0] sm:$0xff]
        %v3385 = vld [vmem:[#allocation2 + $0xe8] sm:$0xff]
        %v3386 = vld [vmem:[#allocation2 + $0x100] sm:$0xff]
        %v3387 = vld [vmem:[#allocation2 + $0x118] sm:$0xff]
        %v3388 = vld [vmem:[#allocation2 + $0x130] sm:$0xff]
        %v3389 = vld [vmem:[#allocation2 + $0x148] sm:$0xff]
        %v3390 = vld [vmem:[#allocation2 + $0x160] sm:$0xff]
        %v3391 = vld [vmem:[#allocation2 + $0x178] sm:$0xff]
        %3408 = vrot.lane.b32.xlu0 %v3344, 48
        %v3409 = vpop.permute.xlu0 %3408
        %3410 = vrot.lane.b32.xlu0 %v3345, 48
        %v3411 = vpop.permute.xlu0 %3410
        %3412 = vrot.lane.b32.xlu0 %v3346, 48
        %v3413 = vpop.permute.xlu0 %3412
        %3414 = vrot.lane.b32.xlu0 %v3347, 48
        %v3415 = vpop.permute.xlu0 %3414
        %3416 = vrot.lane.b32.xlu0 %v3348, 48
        %v3417 = vpop.permute.xlu0 %3416
        %3418 = vrot.lane.b32.xlu0 %v3349, 48
        %v3419 = vpop.permute.xlu0 %3418
        %3420 = vrot.lane.b32.xlu0 %v3350, 48
        %v3421 = vpop.permute.xlu0 %3420
        %3422 = vrot.lane.b32.xlu0 %v3351, 48
        %v3423 = vpop.permute.xlu0 %3422
        %3424 = vrot.lane.b32.xlu0 %v3352, 48
        %v3425 = vpop.permute.xlu0 %3424
        %3426 = vrot.lane.b32.xlu0 %v3353, 48
        %v3427 = vpop.permute.xlu0 %3426
        %3428 = vrot.lane.b32.xlu0 %v3354, 48
        %v3429 = vpop.permute.xlu0 %3428
        %3430 = vrot.lane.b32.xlu0 %v3355, 48
        %v3431 = vpop.permute.xlu0 %3430
        %3432 = vrot.lane.b32.xlu0 %v3356, 48
        %v3433 = vpop.permute.xlu0 %3432
        %3434 = vrot.lane.b32.xlu0 %v3357, 48
        %v3435 = vpop.permute.xlu0 %3434
        %3436 = vrot.lane.b32.xlu0 %v3358, 48
        %v3437 = vpop.permute.xlu0 %3436
        %3438 = vrot.lane.b32.xlu0 %v3359, 48
        %v3439 = vpop.permute.xlu0 %3438
        %3456 = vrot.lane.b32.xlu0 %v3360, 48
        %v3457 = vpop.permute.xlu0 %3456
        %3458 = vrot.lane.b32.xlu0 %v3361, 48
        %v3459 = vpop.permute.xlu0 %3458
        %3460 = vrot.lane.b32.xlu0 %v3362, 48
        %v3461 = vpop.permute.xlu0 %3460
        %3462 = vrot.lane.b32.xlu0 %v3363, 48
        %v3463 = vpop.permute.xlu0 %3462
        %3464 = vrot.lane.b32.xlu0 %v3364, 48
        %v3465 = vpop.permute.xlu0 %3464
        %3466 = vrot.lane.b32.xlu0 %v3365, 48
        %v3467 = vpop.permute.xlu0 %3466
        %3468 = vrot.lane.b32.xlu0 %v3366, 48
        %v3469 = vpop.permute.xlu0 %3468
        %3470 = vrot.lane.b32.xlu0 %v3367, 48
        %v3471 = vpop.permute.xlu0 %3470
        %3472 = vrot.lane.b32.xlu0 %v3368, 48
        %v3473 = vpop.permute.xlu0 %3472
        %3474 = vrot.lane.b32.xlu0 %v3369, 48
        %v3475 = vpop.permute.xlu0 %3474
        %3476 = vrot.lane.b32.xlu0 %v3370, 48
        %v3477 = vpop.permute.xlu0 %3476
        %3478 = vrot.lane.b32.xlu0 %v3371, 48
        %v3479 = vpop.permute.xlu0 %3478
        %3480 = vrot.lane.b32.xlu0 %v3372, 48
        %v3481 = vpop.permute.xlu0 %3480
        %3482 = vrot.lane.b32.xlu0 %v3373, 48
        %v3483 = vpop.permute.xlu0 %3482
        %3484 = vrot.lane.b32.xlu0 %v3374, 48
        %v3485 = vpop.permute.xlu0 %3484
        %3486 = vrot.lane.b32.xlu0 %v3375, 48
        %v3487 = vpop.permute.xlu0 %3486
        %v3488 = vsel %vm674, %v3409, 0
        %v3490 = vsel %vm674, %v3411, 0
        %v3492 = vsel %vm674, %v3413, 0
        %v3494 = vsel %vm674, %v3415, 0
        %v3496 = vsel %vm674, %v3417, 0
        %v3498 = vsel %vm674, %v3419, 0
        %v3500 = vsel %vm674, %v3421, 0
        %v3502 = vsel %vm674, %v3423, 0
        %v3504 = vsel %vm674, %v3425, 0
        %v3506 = vsel %vm674, %v3427, 0
        %v3508 = vsel %vm674, %v3429, 0
        %v3510 = vsel %vm674, %v3431, 0
        %v3512 = vsel %vm674, %v3433, 0
        %v3514 = vsel %vm674, %v3435, 0
        %v3516 = vsel %vm674, %v3437, 0
        %v3518 = vsel %vm674, %v3439, 0
        %v3520 = vsel %vm674, %v3457, 0
        %v3522 = vsel %vm674, %v3459, 0
        %v3524 = vsel %vm674, %v3461, 0
        %v3526 = vsel %vm674, %v3463, 0
        %v3528 = vsel %vm674, %v3465, 0
        %v3530 = vsel %vm674, %v3467, 0
        %v3532 = vsel %vm674, %v3469, 0
        %v3534 = vsel %vm674, %v3471, 0
        %v3536 = vsel %vm674, %v3473, 0
        %v3538 = vsel %vm674, %v3475, 0
        %v3540 = vsel %vm674, %v3477, 0
        %v3542 = vsel %vm674, %v3479, 0
        %v3544 = vsel %vm674, %v3481, 0
        %v3546 = vsel %vm674, %v3483, 0
        %v3548 = vsel %vm674, %v3485, 0
        %v3550 = vsel %vm674, %v3487, 0
        %3552 = vmatpush.xpose.msra.mxu0 %v3550
        %3553 = vmatpush.xpose.msra.mxu0 %v3548
        %3554 = vmatpush.xpose.msra.mxu0 %v3546
        %3555 = vmatpush.xpose.msra.mxu0 %v3544
        %3556 = vmatpush.xpose.msra.mxu0 %v3542
        %3557 = vmatpush.xpose.msra.mxu0 %v3540
        %3558 = vmatpush.xpose.msra.mxu0 %v3538
        %3559 = vmatpush.xpose.msra.mxu0 %v3536
        %3560 = vmatpush.xpose.msra.mxu0 %v3534
        %3561 = vmatpush.xpose.msra.mxu0 %v3532
        %3562 = vmatpush.xpose.msra.mxu0 %v3530
        %3563 = vmatpush.xpose.msra.mxu0 %v3528
        %3564 = vmatpush.xpose.msra.mxu0 %v3526
        %3565 = vmatpush.xpose.msra.mxu0 %v3524
        %3566 = vmatpush.xpose.msra.mxu0 %v3522
        %3567 = vmatpush.xpose.msra.mxu0 %v3520
        %3568 = vmatmul.f32.gmra.mxu0 %v3488
        %v3569 = vpop.f32.mrf.mxu0
        %v3570 = vadd.f32 0.0, %v3569
        %3571 = vmatmul.f32.gmra.mxu0 %v3490
        %v3572 = vpop.f32.mrf.mxu0
        %v3573 = vadd.f32 0.0, %v3572
        %3574 = vmatmul.f32.gmra.mxu0 %v3492
        %v3575 = vpop.f32.mrf.mxu0
        %v3576 = vadd.f32 0.0, %v3575
        %3577 = vmatmul.f32.gmra.mxu0 %v3494
        %v3578 = vpop.f32.mrf.mxu0
        %v3579 = vadd.f32 0.0, %v3578
        %3580 = vmatmul.f32.gmra.mxu0 %v3496
        %v3581 = vpop.f32.mrf.mxu0
        %v3582 = vadd.f32 0.0, %v3581
        %3583 = vmatmul.f32.gmra.mxu0 %v3498
        %v3584 = vpop.f32.mrf.mxu0
        %v3585 = vadd.f32 0.0, %v3584
        %3586 = vmatmul.f32.gmra.mxu0 %v3500
        %v3587 = vpop.f32.mrf.mxu0
        %v3588 = vadd.f32 0.0, %v3587
        %3589 = vmatmul.f32.gmra.mxu0 %v3502
        %v3590 = vpop.f32.mrf.mxu0
        %v3591 = vadd.f32 0.0, %v3590
        %3592 = vmatmul.f32.gmra.mxu0 %v3504
        %v3593 = vpop.f32.mrf.mxu0
        %v3594 = vadd.f32 0.0, %v3593
        %3595 = vmatmul.f32.gmra.mxu0 %v3506
        %v3596 = vpop.f32.mrf.mxu0
        %v3597 = vadd.f32 0.0, %v3596
        %3598 = vmatmul.f32.gmra.mxu0 %v3508
        %v3599 = vpop.f32.mrf.mxu0
        %v3600 = vadd.f32 0.0, %v3599
        %3601 = vmatmul.f32.gmra.mxu0 %v3510
        %v3602 = vpop.f32.mrf.mxu0
        %v3603 = vadd.f32 0.0, %v3602
        %3604 = vmatmul.f32.gmra.mxu0 %v3512
        %v3605 = vpop.f32.mrf.mxu0
        %v3606 = vadd.f32 0.0, %v3605
        %3607 = vmatmul.f32.gmra.mxu0 %v3514
        %v3608 = vpop.f32.mrf.mxu0
        %v3609 = vadd.f32 0.0, %v3608
        %3610 = vmatmul.f32.gmra.mxu0 %v3516
        %v3611 = vpop.f32.mrf.mxu0
        %v3612 = vadd.f32 0.0, %v3611
        %3613 = vmatmul.f32.gmra.mxu0 %v3518
        %v3614 = vpop.f32.mrf.mxu0
        %v3615 = vadd.f32 0.0, %v3614
        %3616 = vdwg.mxu0
        %3617 = vmax.xlane.f32.xlu0 %v3570
        %v3618 = vpop.xlane.xlu0 %3617
        %3619 = vmax.xlane.f32.xlu0 %v3573
        %v3620 = vpop.xlane.xlu0 %3619
        %3621 = vmax.xlane.f32.xlu0 %v3576
        %v3622 = vpop.xlane.xlu0 %3621
        %3623 = vmax.xlane.f32.xlu0 %v3579
        %v3624 = vpop.xlane.xlu0 %3623
        %3625 = vmax.xlane.f32.xlu0 %v3582
        %v3626 = vpop.xlane.xlu0 %3625
        %3627 = vmax.xlane.f32.xlu0 %v3585
        %v3628 = vpop.xlane.xlu0 %3627
        %3629 = vmax.xlane.f32.xlu0 %v3588
        %v3630 = vpop.xlane.xlu0 %3629
        %3631 = vmax.xlane.f32.xlu0 %v3591
        %v3632 = vpop.xlane.xlu0 %3631
        %3633 = vmax.xlane.f32.xlu0 %v3594
        %v3634 = vpop.xlane.xlu0 %3633
        %3635 = vmax.xlane.f32.xlu0 %v3597
        %v3636 = vpop.xlane.xlu0 %3635
        %3637 = vmax.xlane.f32.xlu0 %v3600
        %v3638 = vpop.xlane.xlu0 %3637
        %3639 = vmax.xlane.f32.xlu0 %v3603
        %v3640 = vpop.xlane.xlu0 %3639
        %3641 = vmax.xlane.f32.xlu0 %v3606
        %v3642 = vpop.xlane.xlu0 %3641
        %3643 = vmax.xlane.f32.xlu0 %v3609
        %v3644 = vpop.xlane.xlu0 %3643
        %3645 = vmax.xlane.f32.xlu0 %v3612
        %v3646 = vpop.xlane.xlu0 %3645
        %3647 = vmax.xlane.f32.xlu0 %v3615
        %v3648 = vpop.xlane.xlu0 %3647
        %v3649 = vsub.f32 %v3570, %v3618
        %v3650 = vsub.f32 %v3573, %v3620
        %v3651 = vsub.f32 %v3576, %v3622
        %v3652 = vsub.f32 %v3579, %v3624
        %v3653 = vsub.f32 %v3582, %v3626
        %v3654 = vsub.f32 %v3585, %v3628
        %v3655 = vsub.f32 %v3588, %v3630
        %v3656 = vsub.f32 %v3591, %v3632
        %v3657 = vsub.f32 %v3594, %v3634
        %v3658 = vsub.f32 %v3597, %v3636
        %v3659 = vsub.f32 %v3600, %v3638
        %v3660 = vsub.f32 %v3603, %v3640
        %v3661 = vsub.f32 %v3606, %v3642
        %v3662 = vsub.f32 %v3609, %v3644
        %v3663 = vsub.f32 %v3612, %v3646
        %v3664 = vsub.f32 %v3615, %v3648
        %v3665 = vmul.f32 %v3649, 1.442695
        %v3666 = vpow.pop %v3665
        %v3667 = vmul.f32 %v3650, 1.442695
        %v3668 = vpow.pop %v3667
        %v3669 = vmul.f32 %v3651, 1.442695
        %v3670 = vpow.pop %v3669
        %v3671 = vmul.f32 %v3652, 1.442695
        %v3672 = vpow.pop %v3671
        %v3673 = vmul.f32 %v3653, 1.442695
        %v3674 = vpow.pop %v3673
        %v3675 = vmul.f32 %v3654, 1.442695
        %v3676 = vpow.pop %v3675
        %v3677 = vmul.f32 %v3655, 1.442695
        %v3678 = vpow.pop %v3677
        %v3679 = vmul.f32 %v3656, 1.442695
        %v3680 = vpow.pop %v3679
        %v3681 = vmul.f32 %v3657, 1.442695
        %v3682 = vpow.pop %v3681
        %v3683 = vmul.f32 %v3658, 1.442695
        %v3684 = vpow.pop %v3683
        %v3685 = vmul.f32 %v3659, 1.442695
        %v3686 = vpow.pop %v3685
        %v3687 = vmul.f32 %v3660, 1.442695
        %v3688 = vpow.pop %v3687
        %v3689 = vmul.f32 %v3661, 1.442695
        %v3690 = vpow.pop %v3689
        %v3691 = vmul.f32 %v3662, 1.442695
        %v3692 = vpow.pop %v3691
        %v3693 = vmul.f32 %v3663, 1.442695
        %v3694 = vpow.pop %v3693
        %v3695 = vmul.f32 %v3664, 1.442695
        %v3696 = vpow.pop %v3695
        %3697 = vadd.xlane.f32.xlu0 %v3666
        %v3698 = vpop.xlane.xlu0 %3697
        %3699 = vadd.xlane.f32.xlu0 %v3668
        %v3700 = vpop.xlane.xlu0 %3699
        %3701 = vadd.xlane.f32.xlu0 %v3670
        %v3702 = vpop.xlane.xlu0 %3701
        %3703 = vadd.xlane.f32.xlu0 %v3672
        %v3704 = vpop.xlane.xlu0 %3703
        %3705 = vadd.xlane.f32.xlu0 %v3674
        %v3706 = vpop.xlane.xlu0 %3705
        %3707 = vadd.xlane.f32.xlu0 %v3676
        %v3708 = vpop.xlane.xlu0 %3707
        %3709 = vadd.xlane.f32.xlu0 %v3678
        %v3710 = vpop.xlane.xlu0 %3709
        %3711 = vadd.xlane.f32.xlu0 %v3680
        %v3712 = vpop.xlane.xlu0 %3711
        %3713 = vadd.xlane.f32.xlu0 %v3682
        %v3714 = vpop.xlane.xlu0 %3713
        %3715 = vadd.xlane.f32.xlu0 %v3684
        %v3716 = vpop.xlane.xlu0 %3715
        %3717 = vadd.xlane.f32.xlu0 %v3686
        %v3718 = vpop.xlane.xlu0 %3717
        %3719 = vadd.xlane.f32.xlu0 %v3688
        %v3720 = vpop.xlane.xlu0 %3719
        %3721 = vadd.xlane.f32.xlu0 %v3690
        %v3722 = vpop.xlane.xlu0 %3721
        %3723 = vadd.xlane.f32.xlu0 %v3692
        %v3724 = vpop.xlane.xlu0 %3723
        %3725 = vadd.xlane.f32.xlu0 %v3694
        %v3726 = vpop.xlane.xlu0 %3725
        %3727 = vadd.xlane.f32.xlu0 %v3696
        %v3728 = vpop.xlane.xlu0 %3727
        %v3729 = vrcp.pop %v3698
        %v3730 = vrcp.pop %v3700
        %v3731 = vrcp.pop %v3702
        %v3732 = vrcp.pop %v3704
        %v3733 = vrcp.pop %v3706
        %v3734 = vrcp.pop %v3708
        %v3735 = vrcp.pop %v3710
        %v3736 = vrcp.pop %v3712
        %v3737 = vrcp.pop %v3714
        %v3738 = vrcp.pop %v3716
        %v3739 = vrcp.pop %v3718
        %v3740 = vrcp.pop %v3720
        %v3741 = vrcp.pop %v3722
        %v3742 = vrcp.pop %v3724
        %v3743 = vrcp.pop %v3726
        %v3744 = vrcp.pop %v3728
        %v3745 = vmul.f32 %v3666, %v3729
        %v3746 = vmul.f32 %v3668, %v3730
        %v3747 = vmul.f32 %v3670, %v3731
        %v3748 = vmul.f32 %v3672, %v3732
        %v3749 = vmul.f32 %v3674, %v3733
        %v3750 = vmul.f32 %v3676, %v3734
        %v3751 = vmul.f32 %v3678, %v3735
        %v3752 = vmul.f32 %v3680, %v3736
        %v3753 = vmul.f32 %v3682, %v3737
        %v3754 = vmul.f32 %v3684, %v3738
        %v3755 = vmul.f32 %v3686, %v3739
        %v3756 = vmul.f32 %v3688, %v3740
        %v3757 = vmul.f32 %v3690, %v3741
        %v3758 = vmul.f32 %v3692, %v3742
        %v3759 = vmul.f32 %v3694, %v3743
        %v3760 = vmul.f32 %v3696, %v3744
        %s3761 = scalar_lea.vmem [#allocation3], 640
        %3762 = vst [vmem:[%s3761] sm:$0xff] %v3745
        %3763 = vst [vmem:[%s3761 + $0x8] sm:$0xff] %v3746
        %3764 = vst [vmem:[%s3761 + $0x10] sm:$0xff] %v3747
        %3765 = vst [vmem:[%s3761 + $0x18] sm:$0xff] %v3748
        %3766 = vst [vmem:[%s3761 + $0x20] sm:$0xff] %v3749
        %3767 = vst [vmem:[%s3761 + $0x28] sm:$0xff] %v3750
        %3768 = vst [vmem:[%s3761 + $0x30] sm:$0xff] %v3751
        %3769 = vst [vmem:[%s3761 + $0x38] sm:$0xff] %v3752
        %3770 = vst [vmem:[%s3761 + $0x40] sm:$0xff] %v3753
        %3771 = vst [vmem:[%s3761 + $0x48] sm:$0xff] %v3754
        %3772 = vst [vmem:[%s3761 + $0x50] sm:$0xff] %v3755
        %3773 = vst [vmem:[%s3761 + $0x58] sm:$0xff] %v3756
        %3774 = vst [vmem:[%s3761 + $0x60] sm:$0xff] %v3757
        %3775 = vst [vmem:[%s3761 + $0x68] sm:$0xff] %v3758
        %3776 = vst [vmem:[%s3761 + $0x70] sm:$0xff] %v3759
        %3777 = vst [vmem:[%s3761 + $0x78] sm:$0xff] %v3760
        %s3778 = sadd.s32 640, %s996
        %s3779 = scalar_lea.hbm %s6, %s3778
        %s3780 = scalar_lea.sflag [#allocation4], 5
        // Predicated region
        $region77: #{tpu_custom_call.1} parent=39 // pred_check
          _
        $region78: #{tpu_custom_call.1} parent=39 // pred_check_branch
          %3782 = sbr.rel target = $region80
        $region79: #{tpu_custom_call.1} parent=39 // pred_region
          %3783 = sst [smem:[#allocation16]] [#allocation27]
          %3784 = sst [smem:[#allocation17]] [#allocation26]
        $region80: #{tpu_custom_call.1} parent=39 // pred_fallthru
          _
        %3786 = shalt.err (0)
        %s3788 = sshll.u32 %s3761, 4
        %s3789 = int_to_ptr.vmem [resolvable:$true] %s3788
        %s3790 = sshll.u32 %s3779, 4
        %s3791 = int_to_ptr.hbm [resolvable:$true] %s3790
        %3793 = dma.vmem_to_hbm [thread:$0]  %s3789, 2048, %s3791, %s3780
        %v3794 = vpack.c.bf16 %v3746, %v3745
        %v3795 = vpack.c.bf16 %v3748, %v3747
        %v3796 = vpack.c.bf16 %v3750, %v3749
        %v3797 = vpack.c.bf16 %v3752, %v3751
        %v3798 = vpack.c.bf16 %v3754, %v3753
        %v3799 = vpack.c.bf16 %v3756, %v3755
        %v3800 = vpack.c.bf16 %v3758, %v3757
        %v3801 = vpack.c.bf16 %v3760, %v3759
        %v3802 = vpack.c.bf16 %v3377, %v3376
        %v3803 = vpack.c.bf16 %v3379, %v3378
        %v3804 = vpack.c.bf16 %v3381, %v3380
        %v3805 = vpack.c.bf16 %v3383, %v3382
        %v3806 = vpack.c.bf16 %v3385, %v3384
        %v3807 = vpack.c.bf16 %v3387, %v3386
        %v3808 = vpack.c.bf16 %v3389, %v3388
        %v3809 = vpack.c.bf16 %v3391, %v3390
        %3818 = vrot.lane.b32.xlu0 %v3802, 48
        %v3819 = vpop.permute.xlu0 %3818
        %3820 = vrot.lane.b32.xlu0 %v3803, 48
        %v3821 = vpop.permute.xlu0 %3820
        %3822 = vrot.lane.b32.xlu0 %v3804, 48
        %v3823 = vpop.permute.xlu0 %3822
        %3824 = vrot.lane.b32.xlu0 %v3805, 48
        %v3825 = vpop.permute.xlu0 %3824
        %3826 = vrot.lane.b32.xlu0 %v3806, 48
        %v3827 = vpop.permute.xlu0 %3826
        %3828 = vrot.lane.b32.xlu0 %v3807, 48
        %v3829 = vpop.permute.xlu0 %3828
        %3830 = vrot.lane.b32.xlu0 %v3808, 48
        %v3831 = vpop.permute.xlu0 %3830
        %3832 = vrot.lane.b32.xlu0 %v3809, 48
        %v3833 = vpop.permute.xlu0 %3832
        %3842 = vmatpush.bf16.msra.mxu0 %v3833
        %3843 = vmatpush.bf16.msra.mxu0 %v3831
        %3844 = vmatpush.bf16.msra.mxu0 %v3829
        %3845 = vmatpush.bf16.msra.mxu0 %v3827
        %3846 = vmatpush.bf16.msra.mxu0 %v3825
        %3847 = vmatpush.bf16.msra.mxu0 %v3823
        %3848 = vmatpush.bf16.msra.mxu0 %v3821
        %3849 = vmatpush.bf16.msra.mxu0 %v3819
        %3850 = vmatmul.bf16.gmra.mxu0 %v3794
        %v3851 = vpop.f32.mrf.mxu0
        %v3852 = vadd.f32 0.0, %v3851
        %v3853 = vpop.f32.mrf.mxu0
        %v3854 = vadd.f32 0.0, %v3853
        %3855 = vmatmul.bf16.gmra.mxu0 %v3795
        %v3856 = vpop.f32.mrf.mxu0
        %v3857 = vadd.f32 0.0, %v3856
        %v3858 = vpop.f32.mrf.mxu0
        %v3859 = vadd.f32 0.0, %v3858
        %3860 = vmatmul.bf16.gmra.mxu0 %v3796
        %v3861 = vpop.f32.mrf.mxu0
        %v3862 = vadd.f32 0.0, %v3861
        %v3863 = vpop.f32.mrf.mxu0
        %v3864 = vadd.f32 0.0, %v3863
        %3865 = vmatmul.bf16.gmra.mxu0 %v3797
        %v3866 = vpop.f32.mrf.mxu0
        %v3867 = vadd.f32 0.0, %v3866
        %v3868 = vpop.f32.mrf.mxu0
        %v3869 = vadd.f32 0.0, %v3868
        %3870 = vmatmul.bf16.gmra.mxu0 %v3798
        %v3871 = vpop.f32.mrf.mxu0
        %v3872 = vadd.f32 0.0, %v3871
        %v3873 = vpop.f32.mrf.mxu0
        %v3874 = vadd.f32 0.0, %v3873
        %3875 = vmatmul.bf16.gmra.mxu0 %v3799
        %v3876 = vpop.f32.mrf.mxu0
        %v3877 = vadd.f32 0.0, %v3876
        %v3878 = vpop.f32.mrf.mxu0
        %v3879 = vadd.f32 0.0, %v3878
        %3880 = vmatmul.bf16.gmra.mxu0 %v3800
        %v3881 = vpop.f32.mrf.mxu0
        %v3882 = vadd.f32 0.0, %v3881
        %v3883 = vpop.f32.mrf.mxu0
        %v3884 = vadd.f32 0.0, %v3883
        %3885 = vmatmul.bf16.gmra.mxu0 %v3801
        %v3886 = vpop.f32.mrf.mxu0
        %v3887 = vadd.f32 0.0, %v3886
        %v3888 = vpop.f32.mrf.mxu0
        %v3889 = vadd.f32 0.0, %v3888
        %3890 = vdwg.mxu0
        %v3891 = vld [vmem:[#allocation2] sm:$0xff]
        %v3892 = vld [vmem:[#allocation2 + $0x18] sm:$0xff]
        %v3893 = vld [vmem:[#allocation2 + $0x30] sm:$0xff]
        %v3894 = vld [vmem:[#allocation2 + $0x48] sm:$0xff]
        %v3895 = vld [vmem:[#allocation2 + $0x60] sm:$0xff]
        %v3896 = vld [vmem:[#allocation2 + $0x78] sm:$0xff]
        %v3897 = vld [vmem:[#allocation2 + $0x90] sm:$0xff]
        %v3898 = vld [vmem:[#allocation2 + $0xa8] sm:$0xff]
        %v3899 = vld [vmem:[#allocation2 + $0xc0] sm:$0xff]
        %v3900 = vld [vmem:[#allocation2 + $0xd8] sm:$0xff]
        %v3901 = vld [vmem:[#allocation2 + $0xf0] sm:$0xff]
        %v3902 = vld [vmem:[#allocation2 + $0x108] sm:$0xff]
        %v3903 = vld [vmem:[#allocation2 + $0x120] sm:$0xff]
        %v3904 = vld [vmem:[#allocation2 + $0x138] sm:$0xff]
        %v3905 = vld [vmem:[#allocation2 + $0x150] sm:$0xff]
        %v3906 = vld [vmem:[#allocation2 + $0x168] sm:$0xff]
        %v3907 = vmul.f32 %v3891, 0.25
        %v3908 = vmul.f32 %v3892, 0.25
        %v3909 = vmul.f32 %v3893, 0.25
        %v3910 = vmul.f32 %v3894, 0.25
        %v3911 = vmul.f32 %v3895, 0.25
        %v3912 = vmul.f32 %v3896, 0.25
        %v3913 = vmul.f32 %v3897, 0.25
        %v3914 = vmul.f32 %v3898, 0.25
        %v3915 = vmul.f32 %v3899, 0.25
        %v3916 = vmul.f32 %v3900, 0.25
        %v3917 = vmul.f32 %v3901, 0.25
        %v3918 = vmul.f32 %v3902, 0.25
        %v3919 = vmul.f32 %v3903, 0.25
        %v3920 = vmul.f32 %v3904, 0.25
        %v3921 = vmul.f32 %v3905, 0.25
        %v3922 = vmul.f32 %v3906, 0.25
        %v3923 = vld [vmem:[#allocation2 + $0x8] sm:$0xff]
        %v3924 = vld [vmem:[#allocation2 + $0x20] sm:$0xff]
        %v3925 = vld [vmem:[#allocation2 + $0x38] sm:$0xff]
        %v3926 = vld [vmem:[#allocation2 + $0x50] sm:$0xff]
        %v3927 = vld [vmem:[#allocation2 + $0x68] sm:$0xff]
        %v3928 = vld [vmem:[#allocation2 + $0x80] sm:$0xff]
        %v3929 = vld [vmem:[#allocation2 + $0x98] sm:$0xff]
        %v3930 = vld [vmem:[#allocation2 + $0xb0] sm:$0xff]
        %v3931 = vld [vmem:[#allocation2 + $0xc8] sm:$0xff]
        %v3932 = vld [vmem:[#allocation2 + $0xe0] sm:$0xff]
        %v3933 = vld [vmem:[#allocation2 + $0xf8] sm:$0xff]
        %v3934 = vld [vmem:[#allocation2 + $0x110] sm:$0xff]
        %v3935 = vld [vmem:[#allocation2 + $0x128] sm:$0xff]
        %v3936 = vld [vmem:[#allocation2 + $0x140] sm:$0xff]
        %v3937 = vld [vmem:[#allocation2 + $0x158] sm:$0xff]
        %v3938 = vld [vmem:[#allocation2 + $0x170] sm:$0xff]
        %v3939 = vld [vmem:[#allocation2 + $0x10] sm:$0xff]
        %v3940 = vld [vmem:[#allocation2 + $0x28] sm:$0xff]
        %v3941 = vld [vmem:[#allocation2 + $0x40] sm:$0xff]
        %v3942 = vld [vmem:[#allocation2 + $0x58] sm:$0xff]
        %v3943 = vld [vmem:[#allocation2 + $0x70] sm:$0xff]
        %v3944 = vld [vmem:[#allocation2 + $0x88] sm:$0xff]
        %v3945 = vld [vmem:[#allocation2 + $0xa0] sm:$0xff]
        %v3946 = vld [vmem:[#allocation2 + $0xb8] sm:$0xff]
        %v3947 = vld [vmem:[#allocation2 + $0xd0] sm:$0xff]
        %v3948 = vld [vmem:[#allocation2 + $0xe8] sm:$0xff]
        %v3949 = vld [vmem:[#allocation2 + $0x100] sm:$0xff]
        %v3950 = vld [vmem:[#allocation2 + $0x118] sm:$0xff]
        %v3951 = vld [vmem:[#allocation2 + $0x130] sm:$0xff]
        %v3952 = vld [vmem:[#allocation2 + $0x148] sm:$0xff]
        %v3953 = vld [vmem:[#allocation2 + $0x160] sm:$0xff]
        %v3954 = vld [vmem:[#allocation2 + $0x178] sm:$0xff]
        %3971 = vrot.lane.b32.xlu0 %v3907, 32
        %v3972 = vpop.permute.xlu0 %3971
        %3973 = vrot.lane.b32.xlu0 %v3908, 32
        %v3974 = vpop.permute.xlu0 %3973
        %3975 = vrot.lane.b32.xlu0 %v3909, 32
        %v3976 = vpop.permute.xlu0 %3975
        %3977 = vrot.lane.b32.xlu0 %v3910, 32
        %v3978 = vpop.permute.xlu0 %3977
        %3979 = vrot.lane.b32.xlu0 %v3911, 32
        %v3980 = vpop.permute.xlu0 %3979
        %3981 = vrot.lane.b32.xlu0 %v3912, 32
        %v3982 = vpop.permute.xlu0 %3981
        %3983 = vrot.lane.b32.xlu0 %v3913, 32
        %v3984 = vpop.permute.xlu0 %3983
        %3985 = vrot.lane.b32.xlu0 %v3914, 32
        %v3986 = vpop.permute.xlu0 %3985
        %3987 = vrot.lane.b32.xlu0 %v3915, 32
        %v3988 = vpop.permute.xlu0 %3987
        %3989 = vrot.lane.b32.xlu0 %v3916, 32
        %v3990 = vpop.permute.xlu0 %3989
        %3991 = vrot.lane.b32.xlu0 %v3917, 32
        %v3992 = vpop.permute.xlu0 %3991
        %3993 = vrot.lane.b32.xlu0 %v3918, 32
        %v3994 = vpop.permute.xlu0 %3993
        %3995 = vrot.lane.b32.xlu0 %v3919, 32
        %v3996 = vpop.permute.xlu0 %3995
        %3997 = vrot.lane.b32.xlu0 %v3920, 32
        %v3998 = vpop.permute.xlu0 %3997
        %3999 = vrot.lane.b32.xlu0 %v3921, 32
        %v4000 = vpop.permute.xlu0 %3999
        %4001 = vrot.lane.b32.xlu0 %v3922, 32
        %v4002 = vpop.permute.xlu0 %4001
        %4019 = vrot.lane.b32.xlu0 %v3923, 32
        %v4020 = vpop.permute.xlu0 %4019
        %4021 = vrot.lane.b32.xlu0 %v3924, 32
        %v4022 = vpop.permute.xlu0 %4021
        %4023 = vrot.lane.b32.xlu0 %v3925, 32
        %v4024 = vpop.permute.xlu0 %4023
        %4025 = vrot.lane.b32.xlu0 %v3926, 32
        %v4026 = vpop.permute.xlu0 %4025
        %4027 = vrot.lane.b32.xlu0 %v3927, 32
        %v4028 = vpop.permute.xlu0 %4027
        %4029 = vrot.lane.b32.xlu0 %v3928, 32
        %v4030 = vpop.permute.xlu0 %4029
        %4031 = vrot.lane.b32.xlu0 %v3929, 32
        %v4032 = vpop.permute.xlu0 %4031
        %4033 = vrot.lane.b32.xlu0 %v3930, 32
        %v4034 = vpop.permute.xlu0 %4033
        %4035 = vrot.lane.b32.xlu0 %v3931, 32
        %v4036 = vpop.permute.xlu0 %4035
        %4037 = vrot.lane.b32.xlu0 %v3932, 32
        %v4038 = vpop.permute.xlu0 %4037
        %4039 = vrot.lane.b32.xlu0 %v3933, 32
        %v4040 = vpop.permute.xlu0 %4039
        %4041 = vrot.lane.b32.xlu0 %v3934, 32
        %v4042 = vpop.permute.xlu0 %4041
        %4043 = vrot.lane.b32.xlu0 %v3935, 32
        %v4044 = vpop.permute.xlu0 %4043
        %4045 = vrot.lane.b32.xlu0 %v3936, 32
        %v4046 = vpop.permute.xlu0 %4045
        %4047 = vrot.lane.b32.xlu0 %v3937, 32
        %v4048 = vpop.permute.xlu0 %4047
        %4049 = vrot.lane.b32.xlu0 %v3938, 32
        %v4050 = vpop.permute.xlu0 %4049
        %v4051 = vsel %vm674, %v3972, 0
        %v4053 = vsel %vm674, %v3974, 0
        %v4055 = vsel %vm674, %v3976, 0
        %v4057 = vsel %vm674, %v3978, 0
        %v4059 = vsel %vm674, %v3980, 0
        %v4061 = vsel %vm674, %v3982, 0
        %v4063 = vsel %vm674, %v3984, 0
        %v4065 = vsel %vm674, %v3986, 0
        %v4067 = vsel %vm674, %v3988, 0
        %v4069 = vsel %vm674, %v3990, 0
        %v4071 = vsel %vm674, %v3992, 0
        %v4073 = vsel %vm674, %v3994, 0
        %v4075 = vsel %vm674, %v3996, 0
        %v4077 = vsel %vm674, %v3998, 0
        %v4079 = vsel %vm674, %v4000, 0
        %v4081 = vsel %vm674, %v4002, 0
        %v4083 = vsel %vm674, %v4020, 0
        %v4085 = vsel %vm674, %v4022, 0
        %v4087 = vsel %vm674, %v4024, 0
        %v4089 = vsel %vm674, %v4026, 0
        %v4091 = vsel %vm674, %v4028, 0
        %v4093 = vsel %vm674, %v4030, 0
        %v4095 = vsel %vm674, %v4032, 0
        %v4097 = vsel %vm674, %v4034, 0
        %v4099 = vsel %vm674, %v4036, 0
        %v4101 = vsel %vm674, %v4038, 0
        %v4103 = vsel %vm674, %v4040, 0
        %v4105 = vsel %vm674, %v4042, 0
        %v4107 = vsel %vm674, %v4044, 0
        %v4109 = vsel %vm674, %v4046, 0
        %v4111 = vsel %vm674, %v4048, 0
        %v4113 = vsel %vm674, %v4050, 0
        %4115 = vmatpush.xpose.msra.mxu0 %v4113
        %4116 = vmatpush.xpose.msra.mxu0 %v4111
        %4117 = vmatpush.xpose.msra.mxu0 %v4109
        %4118 = vmatpush.xpose.msra.mxu0 %v4107
        %4119 = vmatpush.xpose.msra.mxu0 %v4105
        %4120 = vmatpush.xpose.msra.mxu0 %v4103
        %4121 = vmatpush.xpose.msra.mxu0 %v4101
        %4122 = vmatpush.xpose.msra.mxu0 %v4099
        %4123 = vmatpush.xpose.msra.mxu0 %v4097
        %4124 = vmatpush.xpose.msra.mxu0 %v4095
        %4125 = vmatpush.xpose.msra.mxu0 %v4093
        %4126 = vmatpush.xpose.msra.mxu0 %v4091
        %4127 = vmatpush.xpose.msra.mxu0 %v4089
        %4128 = vmatpush.xpose.msra.mxu0 %v4087
        %4129 = vmatpush.xpose.msra.mxu0 %v4085
        %4130 = vmatpush.xpose.msra.mxu0 %v4083
        %4131 = vmatmul.f32.gmra.mxu0 %v4051
        %v4132 = vpop.f32.mrf.mxu0
        %v4133 = vadd.f32 0.0, %v4132
        %4134 = vmatmul.f32.gmra.mxu0 %v4053
        %v4135 = vpop.f32.mrf.mxu0
        %v4136 = vadd.f32 0.0, %v4135
        %4137 = vmatmul.f32.gmra.mxu0 %v4055
        %v4138 = vpop.f32.mrf.mxu0
        %v4139 = vadd.f32 0.0, %v4138
        %4140 = vmatmul.f32.gmra.mxu0 %v4057
        %v4141 = vpop.f32.mrf.mxu0
        %v4142 = vadd.f32 0.0, %v4141
        %4143 = vmatmul.f32.gmra.mxu0 %v4059
        %v4144 = vpop.f32.mrf.mxu0
        %v4145 = vadd.f32 0.0, %v4144
        %4146 = vmatmul.f32.gmra.mxu0 %v4061
        %v4147 = vpop.f32.mrf.mxu0
        %v4148 = vadd.f32 0.0, %v4147
        %4149 = vmatmul.f32.gmra.mxu0 %v4063
        %v4150 = vpop.f32.mrf.mxu0
        %v4151 = vadd.f32 0.0, %v4150
        %4152 = vmatmul.f32.gmra.mxu0 %v4065
        %v4153 = vpop.f32.mrf.mxu0
        %v4154 = vadd.f32 0.0, %v4153
        %4155 = vmatmul.f32.gmra.mxu0 %v4067
        %v4156 = vpop.f32.mrf.mxu0
        %v4157 = vadd.f32 0.0, %v4156
        %4158 = vmatmul.f32.gmra.mxu0 %v4069
        %v4159 = vpop.f32.mrf.mxu0
        %v4160 = vadd.f32 0.0, %v4159
        %4161 = vmatmul.f32.gmra.mxu0 %v4071
        %v4162 = vpop.f32.mrf.mxu0
        %v4163 = vadd.f32 0.0, %v4162
        %4164 = vmatmul.f32.gmra.mxu0 %v4073
        %v4165 = vpop.f32.mrf.mxu0
        %v4166 = vadd.f32 0.0, %v4165
        %4167 = vmatmul.f32.gmra.mxu0 %v4075
        %v4168 = vpop.f32.mrf.mxu0
        %v4169 = vadd.f32 0.0, %v4168
        %4170 = vmatmul.f32.gmra.mxu0 %v4077
        %v4171 = vpop.f32.mrf.mxu0
        %v4172 = vadd.f32 0.0, %v4171
        %4173 = vmatmul.f32.gmra.mxu0 %v4079
        %v4174 = vpop.f32.mrf.mxu0
        %v4175 = vadd.f32 0.0, %v4174
        %4176 = vmatmul.f32.gmra.mxu0 %v4081
        %v4177 = vpop.f32.mrf.mxu0
        %v4178 = vadd.f32 0.0, %v4177
        %4179 = vdwg.mxu0
        %4180 = vmax.xlane.f32.xlu0 %v4133
        %v4181 = vpop.xlane.xlu0 %4180
        %4182 = vmax.xlane.f32.xlu0 %v4136
        %v4183 = vpop.xlane.xlu0 %4182
        %4184 = vmax.xlane.f32.xlu0 %v4139
        %v4185 = vpop.xlane.xlu0 %4184
        %4186 = vmax.xlane.f32.xlu0 %v4142
        %v4187 = vpop.xlane.xlu0 %4186
        %4188 = vmax.xlane.f32.xlu0 %v4145
        %v4189 = vpop.xlane.xlu0 %4188
        %4190 = vmax.xlane.f32.xlu0 %v4148
        %v4191 = vpop.xlane.xlu0 %4190
        %4192 = vmax.xlane.f32.xlu0 %v4151
        %v4193 = vpop.xlane.xlu0 %4192
        %4194 = vmax.xlane.f32.xlu0 %v4154
        %v4195 = vpop.xlane.xlu0 %4194
        %4196 = vmax.xlane.f32.xlu0 %v4157
        %v4197 = vpop.xlane.xlu0 %4196
        %4198 = vmax.xlane.f32.xlu0 %v4160
        %v4199 = vpop.xlane.xlu0 %4198
        %4200 = vmax.xlane.f32.xlu0 %v4163
        %v4201 = vpop.xlane.xlu0 %4200
        %4202 = vmax.xlane.f32.xlu0 %v4166
        %v4203 = vpop.xlane.xlu0 %4202
        %4204 = vmax.xlane.f32.xlu0 %v4169
        %v4205 = vpop.xlane.xlu0 %4204
        %4206 = vmax.xlane.f32.xlu0 %v4172
        %v4207 = vpop.xlane.xlu0 %4206
        %4208 = vmax.xlane.f32.xlu0 %v4175
        %v4209 = vpop.xlane.xlu0 %4208
        %4210 = vmax.xlane.f32.xlu0 %v4178
        %v4211 = vpop.xlane.xlu0 %4210
        %v4212 = vsub.f32 %v4133, %v4181
        %v4213 = vsub.f32 %v4136, %v4183
        %v4214 = vsub.f32 %v4139, %v4185
        %v4215 = vsub.f32 %v4142, %v4187
        %v4216 = vsub.f32 %v4145, %v4189
        %v4217 = vsub.f32 %v4148, %v4191
        %v4218 = vsub.f32 %v4151, %v4193
        %v4219 = vsub.f32 %v4154, %v4195
        %v4220 = vsub.f32 %v4157, %v4197
        %v4221 = vsub.f32 %v4160, %v4199
        %v4222 = vsub.f32 %v4163, %v4201
        %v4223 = vsub.f32 %v4166, %v4203
        %v4224 = vsub.f32 %v4169, %v4205
        %v4225 = vsub.f32 %v4172, %v4207
        %v4226 = vsub.f32 %v4175, %v4209
        %v4227 = vsub.f32 %v4178, %v4211
        %v4228 = vmul.f32 %v4212, 1.442695
        %v4229 = vpow.pop %v4228
        %v4230 = vmul.f32 %v4213, 1.442695
        %v4231 = vpow.pop %v4230
        %v4232 = vmul.f32 %v4214, 1.442695
        %v4233 = vpow.pop %v4232
        %v4234 = vmul.f32 %v4215, 1.442695
        %v4235 = vpow.pop %v4234
        %v4236 = vmul.f32 %v4216, 1.442695
        %v4237 = vpow.pop %v4236
        %v4238 = vmul.f32 %v4217, 1.442695
        %v4239 = vpow.pop %v4238
        %v4240 = vmul.f32 %v4218, 1.442695
        %v4241 = vpow.pop %v4240
        %v4242 = vmul.f32 %v4219, 1.442695
        %v4243 = vpow.pop %v4242
        %v4244 = vmul.f32 %v4220, 1.442695
        %v4245 = vpow.pop %v4244
        %v4246 = vmul.f32 %v4221, 1.442695
        %v4247 = vpow.pop %v4246
        %v4248 = vmul.f32 %v4222, 1.442695
        %v4249 = vpow.pop %v4248
        %v4250 = vmul.f32 %v4223, 1.442695
        %v4251 = vpow.pop %v4250
        %v4252 = vmul.f32 %v4224, 1.442695
        %v4253 = vpow.pop %v4252
        %v4254 = vmul.f32 %v4225, 1.442695
        %v4255 = vpow.pop %v4254
        %v4256 = vmul.f32 %v4226, 1.442695
        %v4257 = vpow.pop %v4256
        %v4258 = vmul.f32 %v4227, 1.442695
        %v4259 = vpow.pop %v4258
        %4260 = vadd.xlane.f32.xlu0 %v4229
        %v4261 = vpop.xlane.xlu0 %4260
        %4262 = vadd.xlane.f32.xlu0 %v4231
        %v4263 = vpop.xlane.xlu0 %4262
        %4264 = vadd.xlane.f32.xlu0 %v4233
        %v4265 = vpop.xlane.xlu0 %4264
        %4266 = vadd.xlane.f32.xlu0 %v4235
        %v4267 = vpop.xlane.xlu0 %4266
        %4268 = vadd.xlane.f32.xlu0 %v4237
        %v4269 = vpop.xlane.xlu0 %4268
        %4270 = vadd.xlane.f32.xlu0 %v4239
        %v4271 = vpop.xlane.xlu0 %4270
        %4272 = vadd.xlane.f32.xlu0 %v4241
        %v4273 = vpop.xlane.xlu0 %4272
        %4274 = vadd.xlane.f32.xlu0 %v4243
        %v4275 = vpop.xlane.xlu0 %4274
        %4276 = vadd.xlane.f32.xlu0 %v4245
        %v4277 = vpop.xlane.xlu0 %4276
        %4278 = vadd.xlane.f32.xlu0 %v4247
        %v4279 = vpop.xlane.xlu0 %4278
        %4280 = vadd.xlane.f32.xlu0 %v4249
        %v4281 = vpop.xlane.xlu0 %4280
        %4282 = vadd.xlane.f32.xlu0 %v4251
        %v4283 = vpop.xlane.xlu0 %4282
        %4284 = vadd.xlane.f32.xlu0 %v4253
        %v4285 = vpop.xlane.xlu0 %4284
        %4286 = vadd.xlane.f32.xlu0 %v4255
        %v4287 = vpop.xlane.xlu0 %4286
        %4288 = vadd.xlane.f32.xlu0 %v4257
        %v4289 = vpop.xlane.xlu0 %4288
        %4290 = vadd.xlane.f32.xlu0 %v4259
        %v4291 = vpop.xlane.xlu0 %4290
        %v4292 = vrcp.pop %v4261
        %v4293 = vrcp.pop %v4263
        %v4294 = vrcp.pop %v4265
        %v4295 = vrcp.pop %v4267
        %v4296 = vrcp.pop %v4269
        %v4297 = vrcp.pop %v4271
        %v4298 = vrcp.pop %v4273
        %v4299 = vrcp.pop %v4275
        %v4300 = vrcp.pop %v4277
        %v4301 = vrcp.pop %v4279
        %v4302 = vrcp.pop %v4281
        %v4303 = vrcp.pop %v4283
        %v4304 = vrcp.pop %v4285
        %v4305 = vrcp.pop %v4287
        %v4306 = vrcp.pop %v4289
        %v4307 = vrcp.pop %v4291
        %v4308 = vmul.f32 %v4229, %v4292
        %v4309 = vmul.f32 %v4231, %v4293
        %v4310 = vmul.f32 %v4233, %v4294
        %v4311 = vmul.f32 %v4235, %v4295
        %v4312 = vmul.f32 %v4237, %v4296
        %v4313 = vmul.f32 %v4239, %v4297
        %v4314 = vmul.f32 %v4241, %v4298
        %v4315 = vmul.f32 %v4243, %v4299
        %v4316 = vmul.f32 %v4245, %v4300
        %v4317 = vmul.f32 %v4247, %v4301
        %v4318 = vmul.f32 %v4249, %v4302
        %v4319 = vmul.f32 %v4251, %v4303
        %v4320 = vmul.f32 %v4253, %v4304
        %v4321 = vmul.f32 %v4255, %v4305
        %v4322 = vmul.f32 %v4257, %v4306
        %v4323 = vmul.f32 %v4259, %v4307
        %s4324 = scalar_lea.vmem [#allocation3], 768
        %4325 = vst [vmem:[%s4324] sm:$0xff] %v4308
        %4326 = vst [vmem:[%s4324 + $0x8] sm:$0xff] %v4309
        %4327 = vst [vmem:[%s4324 + $0x10] sm:$0xff] %v4310
        %4328 = vst [vmem:[%s4324 + $0x18] sm:$0xff] %v4311
        %4329 = vst [vmem:[%s4324 + $0x20] sm:$0xff] %v4312
        %4330 = vst [vmem:[%s4324 + $0x28] sm:$0xff] %v4313
        %4331 = vst [vmem:[%s4324 + $0x30] sm:$0xff] %v4314
        %4332 = vst [vmem:[%s4324 + $0x38] sm:$0xff] %v4315
        %4333 = vst [vmem:[%s4324 + $0x40] sm:$0xff] %v4316
        %4334 = vst [vmem:[%s4324 + $0x48] sm:$0xff] %v4317
        %4335 = vst [vmem:[%s4324 + $0x50] sm:$0xff] %v4318
        %4336 = vst [vmem:[%s4324 + $0x58] sm:$0xff] %v4319
        %4337 = vst [vmem:[%s4324 + $0x60] sm:$0xff] %v4320
        %4338 = vst [vmem:[%s4324 + $0x68] sm:$0xff] %v4321
        %4339 = vst [vmem:[%s4324 + $0x70] sm:$0xff] %v4322
        %4340 = vst [vmem:[%s4324 + $0x78] sm:$0xff] %v4323
        %s4341 = sadd.s32 768, %s996
        %s4342 = scalar_lea.hbm %s6, %s4341
        %s4343 = scalar_lea.sflag [#allocation4], 6
        // Predicated region
        $region81: #{tpu_custom_call.1} parent=39 // pred_check
          _
        $region82: #{tpu_custom_call.1} parent=39 // pred_check_branch
          %4345 = sbr.rel target = $region84
        $region83: #{tpu_custom_call.1} parent=39 // pred_region
          %4346 = sst [smem:[#allocation16]] [#allocation29]
          %4347 = sst [smem:[#allocation17]] [#allocation28]
        $region84: #{tpu_custom_call.1} parent=39 // pred_fallthru
          _
        %4349 = shalt.err (0)
        %s4351 = sshll.u32 %s4324, 4
        %s4352 = int_to_ptr.vmem [resolvable:$true] %s4351
        %s4353 = sshll.u32 %s4342, 4
        %s4354 = int_to_ptr.hbm [resolvable:$true] %s4353
        %4356 = dma.vmem_to_hbm [thread:$0]  %s4352, 2048, %s4354, %s4343
        %v4357 = vpack.c.bf16 %v4309, %v4308
        %v4358 = vpack.c.bf16 %v4311, %v4310
        %v4359 = vpack.c.bf16 %v4313, %v4312
        %v4360 = vpack.c.bf16 %v4315, %v4314
        %v4361 = vpack.c.bf16 %v4317, %v4316
        %v4362 = vpack.c.bf16 %v4319, %v4318
        %v4363 = vpack.c.bf16 %v4321, %v4320
        %v4364 = vpack.c.bf16 %v4323, %v4322
        %v4365 = vpack.c.bf16 %v3940, %v3939
        %v4366 = vpack.c.bf16 %v3942, %v3941
        %v4367 = vpack.c.bf16 %v3944, %v3943
        %v4368 = vpack.c.bf16 %v3946, %v3945
        %v4369 = vpack.c.bf16 %v3948, %v3947
        %v4370 = vpack.c.bf16 %v3950, %v3949
        %v4371 = vpack.c.bf16 %v3952, %v3951
        %v4372 = vpack.c.bf16 %v3954, %v3953
        %4381 = vrot.lane.b32.xlu0 %v4365, 32
        %v4382 = vpop.permute.xlu0 %4381
        %4383 = vrot.lane.b32.xlu0 %v4366, 32
        %v4384 = vpop.permute.xlu0 %4383
        %4385 = vrot.lane.b32.xlu0 %v4367, 32
        %v4386 = vpop.permute.xlu0 %4385
        %4387 = vrot.lane.b32.xlu0 %v4368, 32
        %v4388 = vpop.permute.xlu0 %4387
        %4389 = vrot.lane.b32.xlu0 %v4369, 32
        %v4390 = vpop.permute.xlu0 %4389
        %4391 = vrot.lane.b32.xlu0 %v4370, 32
        %v4392 = vpop.permute.xlu0 %4391
        %4393 = vrot.lane.b32.xlu0 %v4371, 32
        %v4394 = vpop.permute.xlu0 %4393
        %4395 = vrot.lane.b32.xlu0 %v4372, 32
        %v4396 = vpop.permute.xlu0 %4395
        %4405 = vmatpush.bf16.msra.mxu0 %v4396
        %4406 = vmatpush.bf16.msra.mxu0 %v4394
        %4407 = vmatpush.bf16.msra.mxu0 %v4392
        %4408 = vmatpush.bf16.msra.mxu0 %v4390
        %4409 = vmatpush.bf16.msra.mxu0 %v4388
        %4410 = vmatpush.bf16.msra.mxu0 %v4386
        %4411 = vmatpush.bf16.msra.mxu0 %v4384
        %4412 = vmatpush.bf16.msra.mxu0 %v4382
        %4413 = vmatmul.bf16.gmra.mxu0 %v4357
        %v4414 = vpop.f32.mrf.mxu0
        %v4415 = vadd.f32 0.0, %v4414
        %v4416 = vpop.f32.mrf.mxu0
        %v4417 = vadd.f32 0.0, %v4416
        %4418 = vmatmul.bf16.gmra.mxu0 %v4358
        %v4419 = vpop.f32.mrf.mxu0
        %v4420 = vadd.f32 0.0, %v4419
        %v4421 = vpop.f32.mrf.mxu0
        %v4422 = vadd.f32 0.0, %v4421
        %4423 = vmatmul.bf16.gmra.mxu0 %v4359
        %v4424 = vpop.f32.mrf.mxu0
        %v4425 = vadd.f32 0.0, %v4424
        %v4426 = vpop.f32.mrf.mxu0
        %v4427 = vadd.f32 0.0, %v4426
        %4428 = vmatmul.bf16.gmra.mxu0 %v4360
        %v4429 = vpop.f32.mrf.mxu0
        %v4430 = vadd.f32 0.0, %v4429
        %v4431 = vpop.f32.mrf.mxu0
        %v4432 = vadd.f32 0.0, %v4431
        %4433 = vmatmul.bf16.gmra.mxu0 %v4361
        %v4434 = vpop.f32.mrf.mxu0
        %v4435 = vadd.f32 0.0, %v4434
        %v4436 = vpop.f32.mrf.mxu0
        %v4437 = vadd.f32 0.0, %v4436
        %4438 = vmatmul.bf16.gmra.mxu0 %v4362
        %v4439 = vpop.f32.mrf.mxu0
        %v4440 = vadd.f32 0.0, %v4439
        %v4441 = vpop.f32.mrf.mxu0
        %v4442 = vadd.f32 0.0, %v4441
        %4443 = vmatmul.bf16.gmra.mxu0 %v4363
        %v4444 = vpop.f32.mrf.mxu0
        %v4445 = vadd.f32 0.0, %v4444
        %v4446 = vpop.f32.mrf.mxu0
        %v4447 = vadd.f32 0.0, %v4446
        %4448 = vmatmul.bf16.gmra.mxu0 %v4364
        %v4449 = vpop.f32.mrf.mxu0
        %v4450 = vadd.f32 0.0, %v4449
        %v4451 = vpop.f32.mrf.mxu0
        %v4452 = vadd.f32 0.0, %v4451
        %4453 = vdwg.mxu0
        %v4454 = vld [vmem:[#allocation2] sm:$0xff]
        %v4455 = vld [vmem:[#allocation2 + $0x18] sm:$0xff]
        %v4456 = vld [vmem:[#allocation2 + $0x30] sm:$0xff]
        %v4457 = vld [vmem:[#allocation2 + $0x48] sm:$0xff]
        %v4458 = vld [vmem:[#allocation2 + $0x60] sm:$0xff]
        %v4459 = vld [vmem:[#allocation2 + $0x78] sm:$0xff]
        %v4460 = vld [vmem:[#allocation2 + $0x90] sm:$0xff]
        %v4461 = vld [vmem:[#allocation2 + $0xa8] sm:$0xff]
        %v4462 = vld [vmem:[#allocation2 + $0xc0] sm:$0xff]
        %v4463 = vld [vmem:[#allocation2 + $0xd8] sm:$0xff]
        %v4464 = vld [vmem:[#allocation2 + $0xf0] sm:$0xff]
        %v4465 = vld [vmem:[#allocation2 + $0x108] sm:$0xff]
        %v4466 = vld [vmem:[#allocation2 + $0x120] sm:$0xff]
        %v4467 = vld [vmem:[#allocation2 + $0x138] sm:$0xff]
        %v4468 = vld [vmem:[#allocation2 + $0x150] sm:$0xff]
        %v4469 = vld [vmem:[#allocation2 + $0x168] sm:$0xff]
        %v4470 = vmul.f32 %v4454, 0.25
        %v4471 = vmul.f32 %v4455, 0.25
        %v4472 = vmul.f32 %v4456, 0.25
        %v4473 = vmul.f32 %v4457, 0.25
        %v4474 = vmul.f32 %v4458, 0.25
        %v4475 = vmul.f32 %v4459, 0.25
        %v4476 = vmul.f32 %v4460, 0.25
        %v4477 = vmul.f32 %v4461, 0.25
        %v4478 = vmul.f32 %v4462, 0.25
        %v4479 = vmul.f32 %v4463, 0.25
        %v4480 = vmul.f32 %v4464, 0.25
        %v4481 = vmul.f32 %v4465, 0.25
        %v4482 = vmul.f32 %v4466, 0.25
        %v4483 = vmul.f32 %v4467, 0.25
        %v4484 = vmul.f32 %v4468, 0.25
        %v4485 = vmul.f32 %v4469, 0.25
        %v4486 = vld [vmem:[#allocation2 + $0x8] sm:$0xff]
        %v4487 = vld [vmem:[#allocation2 + $0x20] sm:$0xff]
        %v4488 = vld [vmem:[#allocation2 + $0x38] sm:$0xff]
        %v4489 = vld [vmem:[#allocation2 + $0x50] sm:$0xff]
        %v4490 = vld [vmem:[#allocation2 + $0x68] sm:$0xff]
        %v4491 = vld [vmem:[#allocation2 + $0x80] sm:$0xff]
        %v4492 = vld [vmem:[#allocation2 + $0x98] sm:$0xff]
        %v4493 = vld [vmem:[#allocation2 + $0xb0] sm:$0xff]
        %v4494 = vld [vmem:[#allocation2 + $0xc8] sm:$0xff]
        %v4495 = vld [vmem:[#allocation2 + $0xe0] sm:$0xff]
        %v4496 = vld [vmem:[#allocation2 + $0xf8] sm:$0xff]
        %v4497 = vld [vmem:[#allocation2 + $0x110] sm:$0xff]
        %v4498 = vld [vmem:[#allocation2 + $0x128] sm:$0xff]
        %v4499 = vld [vmem:[#allocation2 + $0x140] sm:$0xff]
        %v4500 = vld [vmem:[#allocation2 + $0x158] sm:$0xff]
        %v4501 = vld [vmem:[#allocation2 + $0x170] sm:$0xff]
        %v4502 = vld [vmem:[#allocation2 + $0x10] sm:$0xff]
        %v4503 = vld [vmem:[#allocation2 + $0x28] sm:$0xff]
        %v4504 = vld [vmem:[#allocation2 + $0x40] sm:$0xff]
        %v4505 = vld [vmem:[#allocation2 + $0x58] sm:$0xff]
        %v4506 = vld [vmem:[#allocation2 + $0x70] sm:$0xff]
        %v4507 = vld [vmem:[#allocation2 + $0x88] sm:$0xff]
        %v4508 = vld [vmem:[#allocation2 + $0xa0] sm:$0xff]
        %v4509 = vld [vmem:[#allocation2 + $0xb8] sm:$0xff]
        %v4510 = vld [vmem:[#allocation2 + $0xd0] sm:$0xff]
        %v4511 = vld [vmem:[#allocation2 + $0xe8] sm:$0xff]
        %v4512 = vld [vmem:[#allocation2 + $0x100] sm:$0xff]
        %v4513 = vld [vmem:[#allocation2 + $0x118] sm:$0xff]
        %v4514 = vld [vmem:[#allocation2 + $0x130] sm:$0xff]
        %v4515 = vld [vmem:[#allocation2 + $0x148] sm:$0xff]
        %v4516 = vld [vmem:[#allocation2 + $0x160] sm:$0xff]
        %v4517 = vld [vmem:[#allocation2 + $0x178] sm:$0xff]
        %4534 = vrot.lane.b32.xlu0 %v4470, 16
        %v4535 = vpop.permute.xlu0 %4534
        %4536 = vrot.lane.b32.xlu0 %v4471, 16
        %v4537 = vpop.permute.xlu0 %4536
        %4538 = vrot.lane.b32.xlu0 %v4472, 16
        %v4539 = vpop.permute.xlu0 %4538
        %4540 = vrot.lane.b32.xlu0 %v4473, 16
        %v4541 = vpop.permute.xlu0 %4540
        %4542 = vrot.lane.b32.xlu0 %v4474, 16
        %v4543 = vpop.permute.xlu0 %4542
        %4544 = vrot.lane.b32.xlu0 %v4475, 16
        %v4545 = vpop.permute.xlu0 %4544
        %4546 = vrot.lane.b32.xlu0 %v4476, 16
        %v4547 = vpop.permute.xlu0 %4546
        %4548 = vrot.lane.b32.xlu0 %v4477, 16
        %v4549 = vpop.permute.xlu0 %4548
        %4550 = vrot.lane.b32.xlu0 %v4478, 16
        %v4551 = vpop.permute.xlu0 %4550
        %4552 = vrot.lane.b32.xlu0 %v4479, 16
        %v4553 = vpop.permute.xlu0 %4552
        %4554 = vrot.lane.b32.xlu0 %v4480, 16
        %v4555 = vpop.permute.xlu0 %4554
        %4556 = vrot.lane.b32.xlu0 %v4481, 16
        %v4557 = vpop.permute.xlu0 %4556
        %4558 = vrot.lane.b32.xlu0 %v4482, 16
        %v4559 = vpop.permute.xlu0 %4558
        %4560 = vrot.lane.b32.xlu0 %v4483, 16
        %v4561 = vpop.permute.xlu0 %4560
        %4562 = vrot.lane.b32.xlu0 %v4484, 16
        %v4563 = vpop.permute.xlu0 %4562
        %4564 = vrot.lane.b32.xlu0 %v4485, 16
        %v4565 = vpop.permute.xlu0 %4564
        %4582 = vrot.lane.b32.xlu0 %v4486, 16
        %v4583 = vpop.permute.xlu0 %4582
        %4584 = vrot.lane.b32.xlu0 %v4487, 16
        %v4585 = vpop.permute.xlu0 %4584
        %4586 = vrot.lane.b32.xlu0 %v4488, 16
        %v4587 = vpop.permute.xlu0 %4586
        %4588 = vrot.lane.b32.xlu0 %v4489, 16
        %v4589 = vpop.permute.xlu0 %4588
        %4590 = vrot.lane.b32.xlu0 %v4490, 16
        %v4591 = vpop.permute.xlu0 %4590
        %4592 = vrot.lane.b32.xlu0 %v4491, 16
        %v4593 = vpop.permute.xlu0 %4592
        %4594 = vrot.lane.b32.xlu0 %v4492, 16
        %v4595 = vpop.permute.xlu0 %4594
        %4596 = vrot.lane.b32.xlu0 %v4493, 16
        %v4597 = vpop.permute.xlu0 %4596
        %4598 = vrot.lane.b32.xlu0 %v4494, 16
        %v4599 = vpop.permute.xlu0 %4598
        %4600 = vrot.lane.b32.xlu0 %v4495, 16
        %v4601 = vpop.permute.xlu0 %4600
        %4602 = vrot.lane.b32.xlu0 %v4496, 16
        %v4603 = vpop.permute.xlu0 %4602
        %4604 = vrot.lane.b32.xlu0 %v4497, 16
        %v4605 = vpop.permute.xlu0 %4604
        %4606 = vrot.lane.b32.xlu0 %v4498, 16
        %v4607 = vpop.permute.xlu0 %4606
        %4608 = vrot.lane.b32.xlu0 %v4499, 16
        %v4609 = vpop.permute.xlu0 %4608
        %4610 = vrot.lane.b32.xlu0 %v4500, 16
        %v4611 = vpop.permute.xlu0 %4610
        %4612 = vrot.lane.b32.xlu0 %v4501, 16
        %v4613 = vpop.permute.xlu0 %4612
        %v4614 = vsel %vm674, %v4535, 0
        %v4616 = vsel %vm674, %v4537, 0
        %v4618 = vsel %vm674, %v4539, 0
        %v4620 = vsel %vm674, %v4541, 0
        %v4622 = vsel %vm674, %v4543, 0
        %v4624 = vsel %vm674, %v4545, 0
        %v4626 = vsel %vm674, %v4547, 0
        %v4628 = vsel %vm674, %v4549, 0
        %v4630 = vsel %vm674, %v4551, 0
        %v4632 = vsel %vm674, %v4553, 0
        %v4634 = vsel %vm674, %v4555, 0
        %v4636 = vsel %vm674, %v4557, 0
        %v4638 = vsel %vm674, %v4559, 0
        %v4640 = vsel %vm674, %v4561, 0
        %v4642 = vsel %vm674, %v4563, 0
        %v4644 = vsel %vm674, %v4565, 0
        %v4646 = vsel %vm674, %v4583, 0
        %v4648 = vsel %vm674, %v4585, 0
        %v4650 = vsel %vm674, %v4587, 0
        %v4652 = vsel %vm674, %v4589, 0
        %v4654 = vsel %vm674, %v4591, 0
        %v4656 = vsel %vm674, %v4593, 0
        %v4658 = vsel %vm674, %v4595, 0
        %v4660 = vsel %vm674, %v4597, 0
        %v4662 = vsel %vm674, %v4599, 0
        %v4664 = vsel %vm674, %v4601, 0
        %v4666 = vsel %vm674, %v4603, 0
        %v4668 = vsel %vm674, %v4605, 0
        %v4670 = vsel %vm674, %v4607, 0
        %v4672 = vsel %vm674, %v4609, 0
        %v4674 = vsel %vm674, %v4611, 0
        %v4676 = vsel %vm674, %v4613, 0
        %4678 = vmatpush.xpose.msra.mxu0 %v4676
        %4679 = vmatpush.xpose.msra.mxu0 %v4674
        %4680 = vmatpush.xpose.msra.mxu0 %v4672
        %4681 = vmatpush.xpose.msra.mxu0 %v4670
        %4682 = vmatpush.xpose.msra.mxu0 %v4668
        %4683 = vmatpush.xpose.msra.mxu0 %v4666
        %4684 = vmatpush.xpose.msra.mxu0 %v4664
        %4685 = vmatpush.xpose.msra.mxu0 %v4662
        %4686 = vmatpush.xpose.msra.mxu0 %v4660
        %4687 = vmatpush.xpose.msra.mxu0 %v4658
        %4688 = vmatpush.xpose.msra.mxu0 %v4656
        %4689 = vmatpush.xpose.msra.mxu0 %v4654
        %4690 = vmatpush.xpose.msra.mxu0 %v4652
        %4691 = vmatpush.xpose.msra.mxu0 %v4650
        %4692 = vmatpush.xpose.msra.mxu0 %v4648
        %4693 = vmatpush.xpose.msra.mxu0 %v4646
        %4694 = vmatmul.f32.gmra.mxu0 %v4614
        %v4695 = vpop.f32.mrf.mxu0
        %v4696 = vadd.f32 0.0, %v4695
        %4697 = vmatmul.f32.gmra.mxu0 %v4616
        %v4698 = vpop.f32.mrf.mxu0
        %v4699 = vadd.f32 0.0, %v4698
        %4700 = vmatmul.f32.gmra.mxu0 %v4618
        %v4701 = vpop.f32.mrf.mxu0
        %v4702 = vadd.f32 0.0, %v4701
        %4703 = vmatmul.f32.gmra.mxu0 %v4620
        %v4704 = vpop.f32.mrf.mxu0
        %v4705 = vadd.f32 0.0, %v4704
        %4706 = vmatmul.f32.gmra.mxu0 %v4622
        %v4707 = vpop.f32.mrf.mxu0
        %v4708 = vadd.f32 0.0, %v4707
        %4709 = vmatmul.f32.gmra.mxu0 %v4624
        %v4710 = vpop.f32.mrf.mxu0
        %v4711 = vadd.f32 0.0, %v4710
        %4712 = vmatmul.f32.gmra.mxu0 %v4626
        %v4713 = vpop.f32.mrf.mxu0
        %v4714 = vadd.f32 0.0, %v4713
        %4715 = vmatmul.f32.gmra.mxu0 %v4628
        %v4716 = vpop.f32.mrf.mxu0
        %v4717 = vadd.f32 0.0, %v4716
        %4718 = vmatmul.f32.gmra.mxu0 %v4630
        %v4719 = vpop.f32.mrf.mxu0
        %v4720 = vadd.f32 0.0, %v4719
        %4721 = vmatmul.f32.gmra.mxu0 %v4632
        %v4722 = vpop.f32.mrf.mxu0
        %v4723 = vadd.f32 0.0, %v4722
        %4724 = vmatmul.f32.gmra.mxu0 %v4634
        %v4725 = vpop.f32.mrf.mxu0
        %v4726 = vadd.f32 0.0, %v4725
        %4727 = vmatmul.f32.gmra.mxu0 %v4636
        %v4728 = vpop.f32.mrf.mxu0
        %v4729 = vadd.f32 0.0, %v4728
        %4730 = vmatmul.f32.gmra.mxu0 %v4638
        %v4731 = vpop.f32.mrf.mxu0
        %v4732 = vadd.f32 0.0, %v4731
        %4733 = vmatmul.f32.gmra.mxu0 %v4640
        %v4734 = vpop.f32.mrf.mxu0
        %v4735 = vadd.f32 0.0, %v4734
        %4736 = vmatmul.f32.gmra.mxu0 %v4642
        %v4737 = vpop.f32.mrf.mxu0
        %v4738 = vadd.f32 0.0, %v4737
        %4739 = vmatmul.f32.gmra.mxu0 %v4644
        %v4740 = vpop.f32.mrf.mxu0
        %v4741 = vadd.f32 0.0, %v4740
        %4742 = vdwg.mxu0
        %4743 = vmax.xlane.f32.xlu0 %v4696
        %v4744 = vpop.xlane.xlu0 %4743
        %4745 = vmax.xlane.f32.xlu0 %v4699
        %v4746 = vpop.xlane.xlu0 %4745
        %4747 = vmax.xlane.f32.xlu0 %v4702
        %v4748 = vpop.xlane.xlu0 %4747
        %4749 = vmax.xlane.f32.xlu0 %v4705
        %v4750 = vpop.xlane.xlu0 %4749
        %4751 = vmax.xlane.f32.xlu0 %v4708
        %v4752 = vpop.xlane.xlu0 %4751
        %4753 = vmax.xlane.f32.xlu0 %v4711
        %v4754 = vpop.xlane.xlu0 %4753
        %4755 = vmax.xlane.f32.xlu0 %v4714
        %v4756 = vpop.xlane.xlu0 %4755
        %4757 = vmax.xlane.f32.xlu0 %v4717
        %v4758 = vpop.xlane.xlu0 %4757
        %4759 = vmax.xlane.f32.xlu0 %v4720
        %v4760 = vpop.xlane.xlu0 %4759
        %4761 = vmax.xlane.f32.xlu0 %v4723
        %v4762 = vpop.xlane.xlu0 %4761
        %4763 = vmax.xlane.f32.xlu0 %v4726
        %v4764 = vpop.xlane.xlu0 %4763
        %4765 = vmax.xlane.f32.xlu0 %v4729
        %v4766 = vpop.xlane.xlu0 %4765
        %4767 = vmax.xlane.f32.xlu0 %v4732
        %v4768 = vpop.xlane.xlu0 %4767
        %4769 = vmax.xlane.f32.xlu0 %v4735
        %v4770 = vpop.xlane.xlu0 %4769
        %4771 = vmax.xlane.f32.xlu0 %v4738
        %v4772 = vpop.xlane.xlu0 %4771
        %4773 = vmax.xlane.f32.xlu0 %v4741
        %v4774 = vpop.xlane.xlu0 %4773
        %v4775 = vsub.f32 %v4696, %v4744
        %v4776 = vsub.f32 %v4699, %v4746
        %v4777 = vsub.f32 %v4702, %v4748
        %v4778 = vsub.f32 %v4705, %v4750
        %v4779 = vsub.f32 %v4708, %v4752
        %v4780 = vsub.f32 %v4711, %v4754
        %v4781 = vsub.f32 %v4714, %v4756
        %v4782 = vsub.f32 %v4717, %v4758
        %v4783 = vsub.f32 %v4720, %v4760
        %v4784 = vsub.f32 %v4723, %v4762
        %v4785 = vsub.f32 %v4726, %v4764
        %v4786 = vsub.f32 %v4729, %v4766
        %v4787 = vsub.f32 %v4732, %v4768
        %v4788 = vsub.f32 %v4735, %v4770
        %v4789 = vsub.f32 %v4738, %v4772
        %v4790 = vsub.f32 %v4741, %v4774
        %v4791 = vmul.f32 %v4775, 1.442695
        %v4792 = vpow.pop %v4791
        %v4793 = vmul.f32 %v4776, 1.442695
        %v4794 = vpow.pop %v4793
        %v4795 = vmul.f32 %v4777, 1.442695
        %v4796 = vpow.pop %v4795
        %v4797 = vmul.f32 %v4778, 1.442695
        %v4798 = vpow.pop %v4797
        %v4799 = vmul.f32 %v4779, 1.442695
        %v4800 = vpow.pop %v4799
        %v4801 = vmul.f32 %v4780, 1.442695
        %v4802 = vpow.pop %v4801
        %v4803 = vmul.f32 %v4781, 1.442695
        %v4804 = vpow.pop %v4803
        %v4805 = vmul.f32 %v4782, 1.442695
        %v4806 = vpow.pop %v4805
        %v4807 = vmul.f32 %v4783, 1.442695
        %v4808 = vpow.pop %v4807
        %v4809 = vmul.f32 %v4784, 1.442695
        %v4810 = vpow.pop %v4809
        %v4811 = vmul.f32 %v4785, 1.442695
        %v4812 = vpow.pop %v4811
        %v4813 = vmul.f32 %v4786, 1.442695
        %v4814 = vpow.pop %v4813
        %v4815 = vmul.f32 %v4787, 1.442695
        %v4816 = vpow.pop %v4815
        %v4817 = vmul.f32 %v4788, 1.442695
        %v4818 = vpow.pop %v4817
        %v4819 = vmul.f32 %v4789, 1.442695
        %v4820 = vpow.pop %v4819
        %v4821 = vmul.f32 %v4790, 1.442695
        %v4822 = vpow.pop %v4821
        %4823 = vadd.xlane.f32.xlu0 %v4792
        %v4824 = vpop.xlane.xlu0 %4823
        %4825 = vadd.xlane.f32.xlu0 %v4794
        %v4826 = vpop.xlane.xlu0 %4825
        %4827 = vadd.xlane.f32.xlu0 %v4796
        %v4828 = vpop.xlane.xlu0 %4827
        %4829 = vadd.xlane.f32.xlu0 %v4798
        %v4830 = vpop.xlane.xlu0 %4829
        %4831 = vadd.xlane.f32.xlu0 %v4800
        %v4832 = vpop.xlane.xlu0 %4831
        %4833 = vadd.xlane.f32.xlu0 %v4802
        %v4834 = vpop.xlane.xlu0 %4833
        %4835 = vadd.xlane.f32.xlu0 %v4804
        %v4836 = vpop.xlane.xlu0 %4835
        %4837 = vadd.xlane.f32.xlu0 %v4806
        %v4838 = vpop.xlane.xlu0 %4837
        %4839 = vadd.xlane.f32.xlu0 %v4808
        %v4840 = vpop.xlane.xlu0 %4839
        %4841 = vadd.xlane.f32.xlu0 %v4810
        %v4842 = vpop.xlane.xlu0 %4841
        %4843 = vadd.xlane.f32.xlu0 %v4812
        %v4844 = vpop.xlane.xlu0 %4843
        %4845 = vadd.xlane.f32.xlu0 %v4814
        %v4846 = vpop.xlane.xlu0 %4845
        %4847 = vadd.xlane.f32.xlu0 %v4816
        %v4848 = vpop.xlane.xlu0 %4847
        %4849 = vadd.xlane.f32.xlu0 %v4818
        %v4850 = vpop.xlane.xlu0 %4849
        %4851 = vadd.xlane.f32.xlu0 %v4820
        %v4852 = vpop.xlane.xlu0 %4851
        %4853 = vadd.xlane.f32.xlu0 %v4822
        %v4854 = vpop.xlane.xlu0 %4853
        %v4855 = vrcp.pop %v4824
        %v4856 = vrcp.pop %v4826
        %v4857 = vrcp.pop %v4828
        %v4858 = vrcp.pop %v4830
        %v4859 = vrcp.pop %v4832
        %v4860 = vrcp.pop %v4834
        %v4861 = vrcp.pop %v4836
        %v4862 = vrcp.pop %v4838
        %v4863 = vrcp.pop %v4840
        %v4864 = vrcp.pop %v4842
        %v4865 = vrcp.pop %v4844
        %v4866 = vrcp.pop %v4846
        %v4867 = vrcp.pop %v4848
        %v4868 = vrcp.pop %v4850
        %v4869 = vrcp.pop %v4852
        %v4870 = vrcp.pop %v4854
        %v4871 = vmul.f32 %v4792, %v4855
        %v4872 = vmul.f32 %v4794, %v4856
        %v4873 = vmul.f32 %v4796, %v4857
        %v4874 = vmul.f32 %v4798, %v4858
        %v4875 = vmul.f32 %v4800, %v4859
        %v4876 = vmul.f32 %v4802, %v4860
        %v4877 = vmul.f32 %v4804, %v4861
        %v4878 = vmul.f32 %v4806, %v4862
        %v4879 = vmul.f32 %v4808, %v4863
        %v4880 = vmul.f32 %v4810, %v4864
        %v4881 = vmul.f32 %v4812, %v4865
        %v4882 = vmul.f32 %v4814, %v4866
        %v4883 = vmul.f32 %v4816, %v4867
        %v4884 = vmul.f32 %v4818, %v4868
        %v4885 = vmul.f32 %v4820, %v4869
        %v4886 = vmul.f32 %v4822, %v4870
        %s4887 = scalar_lea.vmem [#allocation3], 896
        %4888 = vst [vmem:[%s4887] sm:$0xff] %v4871
        %4889 = vst [vmem:[%s4887 + $0x8] sm:$0xff] %v4872
        %4890 = vst [vmem:[%s4887 + $0x10] sm:$0xff] %v4873
        %4891 = vst [vmem:[%s4887 + $0x18] sm:$0xff] %v4874
        %4892 = vst [vmem:[%s4887 + $0x20] sm:$0xff] %v4875
        %4893 = vst [vmem:[%s4887 + $0x28] sm:$0xff] %v4876
        %4894 = vst [vmem:[%s4887 + $0x30] sm:$0xff] %v4877
        %4895 = vst [vmem:[%s4887 + $0x38] sm:$0xff] %v4878
        %4896 = vst [vmem:[%s4887 + $0x40] sm:$0xff] %v4879
        %4897 = vst [vmem:[%s4887 + $0x48] sm:$0xff] %v4880
        %4898 = vst [vmem:[%s4887 + $0x50] sm:$0xff] %v4881
        %4899 = vst [vmem:[%s4887 + $0x58] sm:$0xff] %v4882
        %4900 = vst [vmem:[%s4887 + $0x60] sm:$0xff] %v4883
        %4901 = vst [vmem:[%s4887 + $0x68] sm:$0xff] %v4884
        %4902 = vst [vmem:[%s4887 + $0x70] sm:$0xff] %v4885
        %4903 = vst [vmem:[%s4887 + $0x78] sm:$0xff] %v4886
        %s4904 = sadd.s32 896, %s996
        %s4905 = scalar_lea.hbm %s6, %s4904
        %s4906 = scalar_lea.sflag [#allocation4], 7
        // Predicated region
        $region85: #{tpu_custom_call.1} parent=39 // pred_check
          _
        $region86: #{tpu_custom_call.1} parent=39 // pred_check_branch
          %4908 = sbr.rel target = $region88
        $region87: #{tpu_custom_call.1} parent=39 // pred_region
          %4909 = sst [smem:[#allocation16]] [#allocation31]
          %4910 = sst [smem:[#allocation17]] [#allocation30]
        $region88: #{tpu_custom_call.1} parent=39 // pred_fallthru
          _
        %4912 = shalt.err (0)
        %s4914 = sshll.u32 %s4887, 4
        %s4915 = int_to_ptr.vmem [resolvable:$true] %s4914
        %s4916 = sshll.u32 %s4905, 4
        %s4917 = int_to_ptr.hbm [resolvable:$true] %s4916
        %4919 = dma.vmem_to_hbm [thread:$0]  %s4915, 2048, %s4917, %s4906
        %v4920 = vpack.c.bf16 %v4872, %v4871
        %v4921 = vpack.c.bf16 %v4874, %v4873
        %v4922 = vpack.c.bf16 %v4876, %v4875
        %v4923 = vpack.c.bf16 %v4878, %v4877
        %v4924 = vpack.c.bf16 %v4880, %v4879
        %v4925 = vpack.c.bf16 %v4882, %v4881
        %v4926 = vpack.c.bf16 %v4884, %v4883
        %v4927 = vpack.c.bf16 %v4886, %v4885
        %v4928 = vpack.c.bf16 %v4503, %v4502
        %v4929 = vpack.c.bf16 %v4505, %v4504
        %v4930 = vpack.c.bf16 %v4507, %v4506
        %v4931 = vpack.c.bf16 %v4509, %v4508
        %v4932 = vpack.c.bf16 %v4511, %v4510
        %v4933 = vpack.c.bf16 %v4513, %v4512
        %v4934 = vpack.c.bf16 %v4515, %v4514
        %v4935 = vpack.c.bf16 %v4517, %v4516
        %4944 = vrot.lane.b32.xlu0 %v4928, 16
        %v4945 = vpop.permute.xlu0 %4944
        %4946 = vrot.lane.b32.xlu0 %v4929, 16
        %v4947 = vpop.permute.xlu0 %4946
        %4948 = vrot.lane.b32.xlu0 %v4930, 16
        %v4949 = vpop.permute.xlu0 %4948
        %4950 = vrot.lane.b32.xlu0 %v4931, 16
        %v4951 = vpop.permute.xlu0 %4950
        %4952 = vrot.lane.b32.xlu0 %v4932, 16
        %v4953 = vpop.permute.xlu0 %4952
        %4954 = vrot.lane.b32.xlu0 %v4933, 16
        %v4955 = vpop.permute.xlu0 %4954
        %4956 = vrot.lane.b32.xlu0 %v4934, 16
        %v4957 = vpop.permute.xlu0 %4956
        %4958 = vrot.lane.b32.xlu0 %v4935, 16
        %v4959 = vpop.permute.xlu0 %4958
        %4968 = vmatpush.bf16.msra.mxu0 %v4959
        %4969 = vmatpush.bf16.msra.mxu0 %v4957
        %4970 = vmatpush.bf16.msra.mxu0 %v4955
        %4971 = vmatpush.bf16.msra.mxu0 %v4953
        %4972 = vmatpush.bf16.msra.mxu0 %v4951
        %4973 = vmatpush.bf16.msra.mxu0 %v4949
        %4974 = vmatpush.bf16.msra.mxu0 %v4947
        %4975 = vmatpush.bf16.msra.mxu0 %v4945
        %4976 = vmatmul.bf16.gmra.mxu0 %v4920
        %v4977 = vpop.f32.mrf.mxu0
        %v4978 = vadd.f32 0.0, %v4977
        %v4979 = vpop.f32.mrf.mxu0
        %v4980 = vadd.f32 0.0, %v4979
        %4981 = vmatmul.bf16.gmra.mxu0 %v4921
        %v4982 = vpop.f32.mrf.mxu0
        %v4983 = vadd.f32 0.0, %v4982
        %v4984 = vpop.f32.mrf.mxu0
        %v4985 = vadd.f32 0.0, %v4984
        %4986 = vmatmul.bf16.gmra.mxu0 %v4922
        %v4987 = vpop.f32.mrf.mxu0
        %v4988 = vadd.f32 0.0, %v4987
        %v4989 = vpop.f32.mrf.mxu0
        %v4990 = vadd.f32 0.0, %v4989
        %4991 = vmatmul.bf16.gmra.mxu0 %v4923
        %v4992 = vpop.f32.mrf.mxu0
        %v4993 = vadd.f32 0.0, %v4992
        %v4994 = vpop.f32.mrf.mxu0
        %v4995 = vadd.f32 0.0, %v4994
        %4996 = vmatmul.bf16.gmra.mxu0 %v4924
        %v4997 = vpop.f32.mrf.mxu0
        %v4998 = vadd.f32 0.0, %v4997
        %v4999 = vpop.f32.mrf.mxu0
        %v5000 = vadd.f32 0.0, %v4999
        %5001 = vmatmul.bf16.gmra.mxu0 %v4925
        %v5002 = vpop.f32.mrf.mxu0
        %v5003 = vadd.f32 0.0, %v5002
        %v5004 = vpop.f32.mrf.mxu0
        %v5005 = vadd.f32 0.0, %v5004
        %5006 = vmatmul.bf16.gmra.mxu0 %v4926
        %v5007 = vpop.f32.mrf.mxu0
        %v5008 = vadd.f32 0.0, %v5007
        %v5009 = vpop.f32.mrf.mxu0
        %v5010 = vadd.f32 0.0, %v5009
        %5011 = vmatmul.bf16.gmra.mxu0 %v4927
        %v5012 = vpop.f32.mrf.mxu0
        %v5013 = vadd.f32 0.0, %v5012
        %v5014 = vpop.f32.mrf.mxu0
        %v5015 = vadd.f32 0.0, %v5014
        %5016 = vdwg.mxu0
        %5033 = vrot.lane.b32.xlu0 %v1600, 16
        %v5034 = vpop.permute.xlu0 %5033
        %5035 = vrot.lane.b32.xlu0 %v1602, 16
        %v5036 = vpop.permute.xlu0 %5035
        %5037 = vrot.lane.b32.xlu0 %v1605, 16
        %v5038 = vpop.permute.xlu0 %5037
        %5039 = vrot.lane.b32.xlu0 %v1607, 16
        %v5040 = vpop.permute.xlu0 %5039
        %5041 = vrot.lane.b32.xlu0 %v1610, 16
        %v5042 = vpop.permute.xlu0 %5041
        %5043 = vrot.lane.b32.xlu0 %v1612, 16
        %v5044 = vpop.permute.xlu0 %5043
        %5045 = vrot.lane.b32.xlu0 %v1615, 16
        %v5046 = vpop.permute.xlu0 %5045
        %5047 = vrot.lane.b32.xlu0 %v1617, 16
        %v5048 = vpop.permute.xlu0 %5047
        %5049 = vrot.lane.b32.xlu0 %v1620, 16
        %v5050 = vpop.permute.xlu0 %5049
        %5051 = vrot.lane.b32.xlu0 %v1622, 16
        %v5052 = vpop.permute.xlu0 %5051
        %5053 = vrot.lane.b32.xlu0 %v1625, 16
        %v5054 = vpop.permute.xlu0 %5053
        %5055 = vrot.lane.b32.xlu0 %v1627, 16
        %v5056 = vpop.permute.xlu0 %5055
        %5057 = vrot.lane.b32.xlu0 %v1630, 16
        %v5058 = vpop.permute.xlu0 %5057
        %5059 = vrot.lane.b32.xlu0 %v1632, 16
        %v5060 = vpop.permute.xlu0 %5059
        %5061 = vrot.lane.b32.xlu0 %v1635, 16
        %v5062 = vpop.permute.xlu0 %5061
        %5063 = vrot.lane.b32.xlu0 %v1637, 16
        %v5064 = vpop.permute.xlu0 %5063
        %5097 = vrot.lane.b32.xlu0 %v2163, 32
        %v5098 = vpop.permute.xlu0 %5097
        %5099 = vrot.lane.b32.xlu0 %v2165, 32
        %v5100 = vpop.permute.xlu0 %5099
        %5101 = vrot.lane.b32.xlu0 %v2168, 32
        %v5102 = vpop.permute.xlu0 %5101
        %5103 = vrot.lane.b32.xlu0 %v2170, 32
        %v5104 = vpop.permute.xlu0 %5103
        %5105 = vrot.lane.b32.xlu0 %v2173, 32
        %v5106 = vpop.permute.xlu0 %5105
        %5107 = vrot.lane.b32.xlu0 %v2175, 32
        %v5108 = vpop.permute.xlu0 %5107
        %5109 = vrot.lane.b32.xlu0 %v2178, 32
        %v5110 = vpop.permute.xlu0 %5109
        %5111 = vrot.lane.b32.xlu0 %v2180, 32
        %v5112 = vpop.permute.xlu0 %5111
        %5113 = vrot.lane.b32.xlu0 %v2183, 32
        %v5114 = vpop.permute.xlu0 %5113
        %5115 = vrot.lane.b32.xlu0 %v2185, 32
        %v5116 = vpop.permute.xlu0 %5115
        %5117 = vrot.lane.b32.xlu0 %v2188, 32
        %v5118 = vpop.permute.xlu0 %5117
        %5119 = vrot.lane.b32.xlu0 %v2190, 32
        %v5120 = vpop.permute.xlu0 %5119
        %5121 = vrot.lane.b32.xlu0 %v2193, 32
        %v5122 = vpop.permute.xlu0 %5121
        %5123 = vrot.lane.b32.xlu0 %v2195, 32
        %v5124 = vpop.permute.xlu0 %5123
        %5125 = vrot.lane.b32.xlu0 %v2198, 32
        %v5126 = vpop.permute.xlu0 %5125
        %5127 = vrot.lane.b32.xlu0 %v2200, 32
        %v5128 = vpop.permute.xlu0 %5127
        %5161 = vrot.lane.b32.xlu0 %v2726, 48
        %v5162 = vpop.permute.xlu0 %5161
        %5163 = vrot.lane.b32.xlu0 %v2728, 48
        %v5164 = vpop.permute.xlu0 %5163
        %5165 = vrot.lane.b32.xlu0 %v2731, 48
        %v5166 = vpop.permute.xlu0 %5165
        %5167 = vrot.lane.b32.xlu0 %v2733, 48
        %v5168 = vpop.permute.xlu0 %5167
        %5169 = vrot.lane.b32.xlu0 %v2736, 48
        %v5170 = vpop.permute.xlu0 %5169
        %5171 = vrot.lane.b32.xlu0 %v2738, 48
        %v5172 = vpop.permute.xlu0 %5171
        %5173 = vrot.lane.b32.xlu0 %v2741, 48
        %v5174 = vpop.permute.xlu0 %5173
        %5175 = vrot.lane.b32.xlu0 %v2743, 48
        %v5176 = vpop.permute.xlu0 %5175
        %5177 = vrot.lane.b32.xlu0 %v2746, 48
        %v5178 = vpop.permute.xlu0 %5177
        %5179 = vrot.lane.b32.xlu0 %v2748, 48
        %v5180 = vpop.permute.xlu0 %5179
        %5181 = vrot.lane.b32.xlu0 %v2751, 48
        %v5182 = vpop.permute.xlu0 %5181
        %5183 = vrot.lane.b32.xlu0 %v2753, 48
        %v5184 = vpop.permute.xlu0 %5183
        %5185 = vrot.lane.b32.xlu0 %v2756, 48
        %v5186 = vpop.permute.xlu0 %5185
        %5187 = vrot.lane.b32.xlu0 %v2758, 48
        %v5188 = vpop.permute.xlu0 %5187
        %5189 = vrot.lane.b32.xlu0 %v2761, 48
        %v5190 = vpop.permute.xlu0 %5189
        %5191 = vrot.lane.b32.xlu0 %v2763, 48
        %v5192 = vpop.permute.xlu0 %5191
        %5225 = vrot.lane.b32.xlu0 %v3289, 64
        %v5226 = vpop.permute.xlu0 %5225
        %5227 = vrot.lane.b32.xlu0 %v3291, 64
        %v5228 = vpop.permute.xlu0 %5227
        %5229 = vrot.lane.b32.xlu0 %v3294, 64
        %v5230 = vpop.permute.xlu0 %5229
        %5231 = vrot.lane.b32.xlu0 %v3296, 64
        %v5232 = vpop.permute.xlu0 %5231
        %5233 = vrot.lane.b32.xlu0 %v3299, 64
        %v5234 = vpop.permute.xlu0 %5233
        %5235 = vrot.lane.b32.xlu0 %v3301, 64
        %v5236 = vpop.permute.xlu0 %5235
        %5237 = vrot.lane.b32.xlu0 %v3304, 64
        %v5238 = vpop.permute.xlu0 %5237
        %5239 = vrot.lane.b32.xlu0 %v3306, 64
        %v5240 = vpop.permute.xlu0 %5239
        %5241 = vrot.lane.b32.xlu0 %v3309, 64
        %v5242 = vpop.permute.xlu0 %5241
        %5243 = vrot.lane.b32.xlu0 %v3311, 64
        %v5244 = vpop.permute.xlu0 %5243
        %5245 = vrot.lane.b32.xlu0 %v3314, 64
        %v5246 = vpop.permute.xlu0 %5245
        %5247 = vrot.lane.b32.xlu0 %v3316, 64
        %v5248 = vpop.permute.xlu0 %5247
        %5249 = vrot.lane.b32.xlu0 %v3319, 64
        %v5250 = vpop.permute.xlu0 %5249
        %5251 = vrot.lane.b32.xlu0 %v3321, 64
        %v5252 = vpop.permute.xlu0 %5251
        %5253 = vrot.lane.b32.xlu0 %v3324, 64
        %v5254 = vpop.permute.xlu0 %5253
        %5255 = vrot.lane.b32.xlu0 %v3326, 64
        %v5256 = vpop.permute.xlu0 %5255
        %5289 = vrot.lane.b32.xlu0 %v3852, 80
        %v5290 = vpop.permute.xlu0 %5289
        %5291 = vrot.lane.b32.xlu0 %v3854, 80
        %v5292 = vpop.permute.xlu0 %5291
        %5293 = vrot.lane.b32.xlu0 %v3857, 80
        %v5294 = vpop.permute.xlu0 %5293
        %5295 = vrot.lane.b32.xlu0 %v3859, 80
        %v5296 = vpop.permute.xlu0 %5295
        %5297 = vrot.lane.b32.xlu0 %v3862, 80
        %v5298 = vpop.permute.xlu0 %5297
        %5299 = vrot.lane.b32.xlu0 %v3864, 80
        %v5300 = vpop.permute.xlu0 %5299
        %5301 = vrot.lane.b32.xlu0 %v3867, 80
        %v5302 = vpop.permute.xlu0 %5301
        %5303 = vrot.lane.b32.xlu0 %v3869, 80
        %v5304 = vpop.permute.xlu0 %5303
        %5305 = vrot.lane.b32.xlu0 %v3872, 80
        %v5306 = vpop.permute.xlu0 %5305
        %5307 = vrot.lane.b32.xlu0 %v3874, 80
        %v5308 = vpop.permute.xlu0 %5307
        %5309 = vrot.lane.b32.xlu0 %v3877, 80
        %v5310 = vpop.permute.xlu0 %5309
        %5311 = vrot.lane.b32.xlu0 %v3879, 80
        %v5312 = vpop.permute.xlu0 %5311
        %5313 = vrot.lane.b32.xlu0 %v3882, 80
        %v5314 = vpop.permute.xlu0 %5313
        %5315 = vrot.lane.b32.xlu0 %v3884, 80
        %v5316 = vpop.permute.xlu0 %5315
        %5317 = vrot.lane.b32.xlu0 %v3887, 80
        %v5318 = vpop.permute.xlu0 %5317
        %5319 = vrot.lane.b32.xlu0 %v3889, 80
        %v5320 = vpop.permute.xlu0 %5319
        %5353 = vrot.lane.b32.xlu0 %v4415, 96
        %v5354 = vpop.permute.xlu0 %5353
        %5355 = vrot.lane.b32.xlu0 %v4417, 96
        %v5356 = vpop.permute.xlu0 %5355
        %5357 = vrot.lane.b32.xlu0 %v4420, 96
        %v5358 = vpop.permute.xlu0 %5357
        %5359 = vrot.lane.b32.xlu0 %v4422, 96
        %v5360 = vpop.permute.xlu0 %5359
        %5361 = vrot.lane.b32.xlu0 %v4425, 96
        %v5362 = vpop.permute.xlu0 %5361
        %5363 = vrot.lane.b32.xlu0 %v4427, 96
        %v5364 = vpop.permute.xlu0 %5363
        %5365 = vrot.lane.b32.xlu0 %v4430, 96
        %v5366 = vpop.permute.xlu0 %5365
        %5367 = vrot.lane.b32.xlu0 %v4432, 96
        %v5368 = vpop.permute.xlu0 %5367
        %5369 = vrot.lane.b32.xlu0 %v4435, 96
        %v5370 = vpop.permute.xlu0 %5369
        %5371 = vrot.lane.b32.xlu0 %v4437, 96
        %v5372 = vpop.permute.xlu0 %5371
        %5373 = vrot.lane.b32.xlu0 %v4440, 96
        %v5374 = vpop.permute.xlu0 %5373
        %5375 = vrot.lane.b32.xlu0 %v4442, 96
        %v5376 = vpop.permute.xlu0 %5375
        %5377 = vrot.lane.b32.xlu0 %v4445, 96
        %v5378 = vpop.permute.xlu0 %5377
        %5379 = vrot.lane.b32.xlu0 %v4447, 96
        %v5380 = vpop.permute.xlu0 %5379
        %5381 = vrot.lane.b32.xlu0 %v4450, 96
        %v5382 = vpop.permute.xlu0 %5381
        %5383 = vrot.lane.b32.xlu0 %v4452, 96
        %v5384 = vpop.permute.xlu0 %5383
        %5417 = vrot.lane.b32.xlu0 %v4978, 112
        %v5418 = vpop.permute.xlu0 %5417
        %5419 = vrot.lane.b32.xlu0 %v4980, 112
        %v5420 = vpop.permute.xlu0 %5419
        %5421 = vrot.lane.b32.xlu0 %v4983, 112
        %v5422 = vpop.permute.xlu0 %5421
        %5423 = vrot.lane.b32.xlu0 %v4985, 112
        %v5424 = vpop.permute.xlu0 %5423
        %5425 = vrot.lane.b32.xlu0 %v4988, 112
        %v5426 = vpop.permute.xlu0 %5425
        %5427 = vrot.lane.b32.xlu0 %v4990, 112
        %v5428 = vpop.permute.xlu0 %5427
        %5429 = vrot.lane.b32.xlu0 %v4993, 112
        %v5430 = vpop.permute.xlu0 %5429
        %5431 = vrot.lane.b32.xlu0 %v4995, 112
        %v5432 = vpop.permute.xlu0 %5431
        %5433 = vrot.lane.b32.xlu0 %v4998, 112
        %v5434 = vpop.permute.xlu0 %5433
        %5435 = vrot.lane.b32.xlu0 %v5000, 112
        %v5436 = vpop.permute.xlu0 %5435
        %5437 = vrot.lane.b32.xlu0 %v5003, 112
        %v5438 = vpop.permute.xlu0 %5437
        %5439 = vrot.lane.b32.xlu0 %v5005, 112
        %v5440 = vpop.permute.xlu0 %5439
        %5441 = vrot.lane.b32.xlu0 %v5008, 112
        %v5442 = vpop.permute.xlu0 %5441
        %5443 = vrot.lane.b32.xlu0 %v5010, 112
        %v5444 = vpop.permute.xlu0 %5443
        %5445 = vrot.lane.b32.xlu0 %v5013, 112
        %v5446 = vpop.permute.xlu0 %5445
        %5447 = vrot.lane.b32.xlu0 %v5015, 112
        %v5448 = vpop.permute.xlu0 %5447
        %v5465 = vsel %vm674, %v1037, %v5034
        %v5466 = vsel %vm674, %v1039, %v5036
        %v5467 = vsel %vm674, %v1042, %v5038
        %v5468 = vsel %vm674, %v1044, %v5040
        %v5469 = vsel %vm674, %v1047, %v5042
        %v5470 = vsel %vm674, %v1049, %v5044
        %v5471 = vsel %vm674, %v1052, %v5046
        %v5472 = vsel %vm674, %v1054, %v5048
        %v5473 = vsel %vm674, %v1057, %v5050
        %v5474 = vsel %vm674, %v1059, %v5052
        %v5475 = vsel %vm674, %v1062, %v5054
        %v5476 = vsel %vm674, %v1064, %v5056
        %v5477 = vsel %vm674, %v1067, %v5058
        %v5478 = vsel %vm674, %v1069, %v5060
        %v5479 = vsel %vm674, %v1072, %v5062
        %v5480 = vsel %vm674, %v1074, %v5064
        %vm5481 = vcmask 261120
        %v5482 = vsel %vm5481, %v5465, %v5098
        %v5483 = vsel %vm5481, %v5466, %v5100
        %v5484 = vsel %vm5481, %v5467, %v5102
        %v5485 = vsel %vm5481, %v5468, %v5104
        %v5486 = vsel %vm5481, %v5469, %v5106
        %v5487 = vsel %vm5481, %v5470, %v5108
        %v5488 = vsel %vm5481, %v5471, %v5110
        %v5489 = vsel %vm5481, %v5472, %v5112
        %v5490 = vsel %vm5481, %v5473, %v5114
        %v5491 = vsel %vm5481, %v5474, %v5116
        %v5492 = vsel %vm5481, %v5475, %v5118
        %v5493 = vsel %vm5481, %v5476, %v5120
        %v5494 = vsel %vm5481, %v5477, %v5122
        %v5495 = vsel %vm5481, %v5478, %v5124
        %v5496 = vsel %vm5481, %v5479, %v5126
        %v5497 = vsel %vm5481, %v5480, %v5128
        %vm5498 = vcmask 392192
        %v5499 = vsel %vm5498, %v5482, %v5162
        %v5500 = vsel %vm5498, %v5483, %v5164
        %v5501 = vsel %vm5498, %v5484, %v5166
        %v5502 = vsel %vm5498, %v5485, %v5168
        %v5503 = vsel %vm5498, %v5486, %v5170
        %v5504 = vsel %vm5498, %v5487, %v5172
        %v5505 = vsel %vm5498, %v5488, %v5174
        %v5506 = vsel %vm5498, %v5489, %v5176
        %v5507 = vsel %vm5498, %v5490, %v5178
        %v5508 = vsel %vm5498, %v5491, %v5180
        %v5509 = vsel %vm5498, %v5492, %v5182
        %v5510 = vsel %vm5498, %v5493, %v5184
        %v5511 = vsel %vm5498, %v5494, %v5186
        %v5512 = vsel %vm5498, %v5495, %v5188
        %v5513 = vsel %vm5498, %v5496, %v5190
        %v5514 = vsel %vm5498, %v5497, %v5192
        %vm5515 = vcmask 523264
        %v5516 = vsel %vm5515, %v5499, %v5226
        %v5517 = vsel %vm5515, %v5500, %v5228
        %v5518 = vsel %vm5515, %v5501, %v5230
        %v5519 = vsel %vm5515, %v5502, %v5232
        %v5520 = vsel %vm5515, %v5503, %v5234
        %v5521 = vsel %vm5515, %v5504, %v5236
        %v5522 = vsel %vm5515, %v5505, %v5238
        %v5523 = vsel %vm5515, %v5506, %v5240
        %v5524 = vsel %vm5515, %v5507, %v5242
        %v5525 = vsel %vm5515, %v5508, %v5244
        %v5526 = vsel %vm5515, %v5509, %v5246
        %v5527 = vsel %vm5515, %v5510, %v5248
        %v5528 = vsel %vm5515, %v5511, %v5250
        %v5529 = vsel %vm5515, %v5512, %v5252
        %v5530 = vsel %vm5515, %v5513, %v5254
        %v5531 = vsel %vm5515, %v5514, %v5256
        %vm5532 = vcmask 654336
        %v5533 = vsel %vm5532, %v5516, %v5290
        %v5534 = vsel %vm5532, %v5517, %v5292
        %v5535 = vsel %vm5532, %v5518, %v5294
        %v5536 = vsel %vm5532, %v5519, %v5296
        %v5537 = vsel %vm5532, %v5520, %v5298
        %v5538 = vsel %vm5532, %v5521, %v5300
        %v5539 = vsel %vm5532, %v5522, %v5302
        %v5540 = vsel %vm5532, %v5523, %v5304
        %v5541 = vsel %vm5532, %v5524, %v5306
        %v5542 = vsel %vm5532, %v5525, %v5308
        %v5543 = vsel %vm5532, %v5526, %v5310
        %v5544 = vsel %vm5532, %v5527, %v5312
        %v5545 = vsel %vm5532, %v5528, %v5314
        %v5546 = vsel %vm5532, %v5529, %v5316
        %v5547 = vsel %vm5532, %v5530, %v5318
        %v5548 = vsel %vm5532, %v5531, %v5320
        %vm5549 = vcmask 785408
        %v5550 = vsel %vm5549, %v5533, %v5354
        %v5551 = vsel %vm5549, %v5534, %v5356
        %v5552 = vsel %vm5549, %v5535, %v5358
        %v5553 = vsel %vm5549, %v5536, %v5360
        %v5554 = vsel %vm5549, %v5537, %v5362
        %v5555 = vsel %vm5549, %v5538, %v5364
        %v5556 = vsel %vm5549, %v5539, %v5366
        %v5557 = vsel %vm5549, %v5540, %v5368
        %v5558 = vsel %vm5549, %v5541, %v5370
        %v5559 = vsel %vm5549, %v5542, %v5372
        %v5560 = vsel %vm5549, %v5543, %v5374
        %v5561 = vsel %vm5549, %v5544, %v5376
        %v5562 = vsel %vm5549, %v5545, %v5378
        %v5563 = vsel %vm5549, %v5546, %v5380
        %v5564 = vsel %vm5549, %v5547, %v5382
        %v5565 = vsel %vm5549, %v5548, %v5384
        %vm5566 = vcmask 916480
        %v5567 = vsel %vm5566, %v5550, %v5418
        %v5568 = vsel %vm5566, %v5551, %v5420
        %v5569 = vsel %vm5566, %v5552, %v5422
        %v5570 = vsel %vm5566, %v5553, %v5424
        %v5571 = vsel %vm5566, %v5554, %v5426
        %v5572 = vsel %vm5566, %v5555, %v5428
        %v5573 = vsel %vm5566, %v5556, %v5430
        %v5574 = vsel %vm5566, %v5557, %v5432
        %v5575 = vsel %vm5566, %v5558, %v5434
        %v5576 = vsel %vm5566, %v5559, %v5436
        %v5577 = vsel %vm5566, %v5560, %v5438
        %v5578 = vsel %vm5566, %v5561, %v5440
        %v5579 = vsel %vm5566, %v5562, %v5442
        %v5580 = vsel %vm5566, %v5563, %v5444
        %v5581 = vsel %vm5566, %v5564, %v5446
        %v5582 = vsel %vm5566, %v5565, %v5448
        %v5583 = vpack.c.bf16 %v5568, %v5567
        %v5584 = vpack.c.bf16 %v5570, %v5569
        %v5585 = vpack.c.bf16 %v5572, %v5571
        %v5586 = vpack.c.bf16 %v5574, %v5573
        %v5587 = vpack.c.bf16 %v5576, %v5575
        %v5588 = vpack.c.bf16 %v5578, %v5577
        %v5589 = vpack.c.bf16 %v5580, %v5579
        %v5590 = vpack.c.bf16 %v5582, %v5581
        %v5591 = vld [vmem:[#allocation11] sm:$0xff]
        %v5592 = vld [vmem:[#allocation11 + $0x8] sm:$0xff]
        %v5593 = vld [vmem:[#allocation11 + $0x10] sm:$0xff]
        %v5594 = vld [vmem:[#allocation11 + $0x18] sm:$0xff]
        %v5595 = vld [vmem:[#allocation11 + $0x20] sm:$0xff]
        %v5596 = vld [vmem:[#allocation11 + $0x28] sm:$0xff]
        %v5597 = vld [vmem:[#allocation11 + $0x30] sm:$0xff]
        %v5598 = vld [vmem:[#allocation11 + $0x38] sm:$0xff]
        %v5599 = vld [vmem:[#allocation11 + $0x40] sm:$0xff]
        %v5600 = vld [vmem:[#allocation11 + $0x48] sm:$0xff]
        %v5601 = vld [vmem:[#allocation11 + $0x50] sm:$0xff]
        %v5602 = vld [vmem:[#allocation11 + $0x58] sm:$0xff]
        %v5603 = vld [vmem:[#allocation11 + $0x60] sm:$0xff]
        %v5604 = vld [vmem:[#allocation11 + $0x68] sm:$0xff]
        %v5605 = vld [vmem:[#allocation11 + $0x70] sm:$0xff]
        %v5606 = vld [vmem:[#allocation11 + $0x78] sm:$0xff]
        %v5607 = vpack.c.bf16 %v5592, %v5591
        %v5608 = vpack.c.bf16 %v5594, %v5593
        %v5609 = vpack.c.bf16 %v5596, %v5595
        %v5610 = vpack.c.bf16 %v5598, %v5597
        %v5611 = vpack.c.bf16 %v5600, %v5599
        %v5612 = vpack.c.bf16 %v5602, %v5601
        %v5613 = vpack.c.bf16 %v5604, %v5603
        %v5614 = vpack.c.bf16 %v5606, %v5605
        %v5615 = vld [vmem:[%s4] sm:$0x1]
        %v5617 = vperm.slane %v5615, 0
        %5619 = vmatpush.bf16.msra.mxu0 %v5614
        %5620 = vmatpush.bf16.msra.mxu0 %v5613
        %5621 = vmatpush.bf16.msra.mxu0 %v5612
        %5622 = vmatpush.bf16.msra.mxu0 %v5611
        %5623 = vmatpush.bf16.msra.mxu0 %v5610
        %5624 = vmatpush.bf16.msra.mxu0 %v5609
        %5625 = vmatpush.bf16.msra.mxu0 %v5608
        %5626 = vmatpush.bf16.msra.mxu0 %v5607
        %5627 = vmatmul.bf16.gmra.mxu0 %v5583
        %v5628 = vpop.f32.mrf.mxu0
        %v5629 = vadd.f32 %v5617, %v5628
        %v5630 = vpop.f32.mrf.mxu0
        %v5631 = vadd.f32 %v5617, %v5630
        %5632 = vmatmul.bf16.gmra.mxu0 %v5584
        %v5633 = vpop.f32.mrf.mxu0
        %v5634 = vadd.f32 %v5617, %v5633
        %v5635 = vpop.f32.mrf.mxu0
        %v5636 = vadd.f32 %v5617, %v5635
        %5637 = vmatmul.bf16.gmra.mxu0 %v5585
        %v5638 = vpop.f32.mrf.mxu0
        %v5639 = vadd.f32 %v5617, %v5638
        %v5640 = vpop.f32.mrf.mxu0
        %v5641 = vadd.f32 %v5617, %v5640
        %5642 = vmatmul.bf16.gmra.mxu0 %v5586
        %v5643 = vpop.f32.mrf.mxu0
        %v5644 = vadd.f32 %v5617, %v5643
        %v5645 = vpop.f32.mrf.mxu0
        %v5646 = vadd.f32 %v5617, %v5645
        %5647 = vmatmul.bf16.gmra.mxu0 %v5587
        %v5648 = vpop.f32.mrf.mxu0
        %v5649 = vadd.f32 %v5617, %v5648
        %v5650 = vpop.f32.mrf.mxu0
        %v5651 = vadd.f32 %v5617, %v5650
        %5652 = vmatmul.bf16.gmra.mxu0 %v5588
        %v5653 = vpop.f32.mrf.mxu0
        %v5654 = vadd.f32 %v5617, %v5653
        %v5655 = vpop.f32.mrf.mxu0
        %v5656 = vadd.f32 %v5617, %v5655
        %5657 = vmatmul.bf16.gmra.mxu0 %v5589
        %v5658 = vpop.f32.mrf.mxu0
        %v5659 = vadd.f32 %v5617, %v5658
        %v5660 = vpop.f32.mrf.mxu0
        %v5661 = vadd.f32 %v5617, %v5660
        %5662 = vmatmul.bf16.gmra.mxu0 %v5590
        %v5663 = vpop.f32.mrf.mxu0
        %v5664 = vadd.f32 %v5617, %v5663
        %v5665 = vpop.f32.mrf.mxu0
        %v5666 = vadd.f32 %v5617, %v5665
        %5667 = vdwg.mxu0
        %5668 = vst [vmem:[%s294] sm:$0xff] %v5629
        %5669 = vst [vmem:[%s294 + $0x8] sm:$0xff] %v5631
        %5670 = vst [vmem:[%s294 + $0x10] sm:$0xff] %v5634
        %5671 = vst [vmem:[%s294 + $0x18] sm:$0xff] %v5636
        %5672 = vst [vmem:[%s294 + $0x20] sm:$0xff] %v5639
        %5673 = vst [vmem:[%s294 + $0x28] sm:$0xff] %v5641
        %5674 = vst [vmem:[%s294 + $0x30] sm:$0xff] %v5644
        %5675 = vst [vmem:[%s294 + $0x38] sm:$0xff] %v5646
        %5676 = vst [vmem:[%s294 + $0x40] sm:$0xff] %v5649
        %5677 = vst [vmem:[%s294 + $0x48] sm:$0xff] %v5651
        %5678 = vst [vmem:[%s294 + $0x50] sm:$0xff] %v5654
        %5679 = vst [vmem:[%s294 + $0x58] sm:$0xff] %v5656
        %5680 = vst [vmem:[%s294 + $0x60] sm:$0xff] %v5659
        %5681 = vst [vmem:[%s294 + $0x68] sm:$0xff] %v5661
        %5682 = vst [vmem:[%s294 + $0x70] sm:$0xff] %v5664
        %5683 = vst [vmem:[%s294 + $0x78] sm:$0xff] %v5666
        %s5684 = smul.u32 128, 1
        %s5685 = sshll.u32 %s5684, 4
        %5686 = dma.done [#allocation4], %s5685
        %s5687 = sshll.u32 %s5684, 4
        %5688 = dma.done %s1528, %s5687
        %s5689 = sshll.u32 %s5684, 4
        %5690 = dma.done %s2091, %s5689
        %s5691 = sshll.u32 %s5684, 4
        %5692 = dma.done %s2654, %s5691
        %s5693 = sshll.u32 %s5684, 4
        %5694 = dma.done %s3217, %s5693
        %s5695 = sshll.u32 %s5684, 4
        %5696 = dma.done %s3780, %s5695
        %s5697 = sshll.u32 %s5684, 4
        %5698 = dma.done %s4343, %s5697
        %s5699 = sshll.u32 %s5684, 4
        %5700 = dma.done %s4906, %s5699
        %s5701 = sand.u32 %s144, 1
        %s5702 = scalar_lea.sflag [#allocation7], %s5701
        %s5703 = sand.u32 %s144, 1
        %s5704 = smul.addr %s5703, 128
        %s5705 = scalar_lea.vmem [#allocation13], %s5704
        // Predicated region
        $region89: #{tpu_custom_call.1} parent=39 // pred_check
          %p5706 = pneg %p154
        $region90: #{tpu_custom_call.1} parent=39 // pred_check_branch
          %5708 = sbr.rel (%p5706) target = $region92
        $region91: #{tpu_custom_call.1} parent=39 // pred_region
          %5710 = vsyncadd %s5702, 0
          %s5711 = smul.addr %s26, 16
          %s5712 = smul.addr %s5711, 8
          %s5713 = scalar_lea.hbm %s5, %s5712
          %s5714 = sshll.u32 %s5705, 4
          %s5715 = int_to_ptr.vmem [resolvable:$true] %s5714
          %s5716 = sshll.u32 %s5713, 4
          %s5717 = int_to_ptr.hbm [resolvable:$true] %s5716
          %5722 = dma.vmem_to_hbm [thread:$0]  %s5715, 2048, %s5717, %s5702, 128, 128, 8
        $region92: #{tpu_custom_call.1} parent=39 // pred_fallthru
          _
      $region40: #{tpu_custom_call.1} parent=5 // pred_fallthru
        _
      %p5723 = scmp.le.s32.totalorder 2, %s21
      // Predicated region
      $region93: #{tpu_custom_call.1} parent=5 // pred_check
        %p5724 = pneg %p5723
      $region94: #{tpu_custom_call.1} parent=5 // pred_check_branch
        %5726 = sbr.rel (%p5724) target = $region96
      $region95: #{tpu_custom_call.1} parent=5 // pred_region
        %s5727 = ssub.s32 %s21, 2
        // Predicated region
        $region97: #{tpu_custom_call.1} parent=95 // pred_check
          %p5728 = pneg %p160
        $region98: #{tpu_custom_call.1} parent=95 // pred_check_branch
          %5730 = sbr.rel (%p5728) target = $region100
        $region99: #{tpu_custom_call.1} parent=95 // pred_region
          %s5731 = sand.u32 %s145, 1
          %s5732 = scalar_lea.sflag [#allocation7], %s5731
          %s5733 = sand.u32 %s145, 1
          %s5734 = smul.addr %s5733, 128
          %s5735 = scalar_lea.vmem [#allocation13], %s5734
          %5737 = dma.done %s5732, 2048
        $region100: #{tpu_custom_call.1} parent=95 // pred_fallthru
          _
      $region96: #{tpu_custom_call.1} parent=5 // pred_fallthru
        _
    $region6: #{tpu_custom_call.1} parent=1 // loop_footer
      %s25 = sadd.s32 1, %s21
    $region7: #{tpu_custom_call.1} parent=1 // loop_footer_branch
      %20 = sbr.rel target = $region3
    $region8: #{tpu_custom_call.1} parent=1 // loop_exit
      _
    %5738 = vsyncpa [#allocation6], 1
    %s5739 = scalar_lea.sflag [#allocation6], 1
    %5740 = vsyncpa %s5739, 1
    %5741 = vsyncpa [#allocation9], 1
    %5742 = vsyncpa [#allocation12], 1
    %5743 = vsyncpa [#allocation7], 1
    %s5744 = scalar_lea.sflag [#allocation7], 1
    %5745 = vsyncpa %s5744, 1
  %5746 = vsyncmov [#allocation4]
  %s5747 = vpop.sfrf %5746
  %p5748 = scmp.eq.s32.totalorder %s5747, 0
  %p5749 = pneg %p5748
  %5751 = shalt.err (%p5749)
  %s5752 = scalar_lea.sflag [#allocation4], 1
  %5753 = vsyncmov %s5752
  %s5754 = vpop.sfrf %5753
  %p5755 = scmp.eq.s32.totalorder %s5754, 0
  %p5756 = pneg %p5755
  %5758 = shalt.err (%p5756)
  %s5759 = scalar_lea.sflag [#allocation4], 2
  %5760 = vsyncmov %s5759
  %s5761 = vpop.sfrf %5760
  %p5762 = scmp.eq.s32.totalorder %s5761, 0
  %p5763 = pneg %p5762
  %5765 = shalt.err (%p5763)
  %s5766 = scalar_lea.sflag [#allocation4], 3
  %5767 = vsyncmov %s5766
  %s5768 = vpop.sfrf %5767
  %p5769 = scmp.eq.s32.totalorder %s5768, 0
  %p5770 = pneg %p5769
  %5772 = shalt.err (%p5770)
  %s5773 = scalar_lea.sflag [#allocation4], 4
  %5774 = vsyncmov %s5773
  %s5775 = vpop.sfrf %5774
  %p5776 = scmp.eq.s32.totalorder %s5775, 0
  %p5777 = pneg %p5776
  %5779 = shalt.err (%p5777)
  %s5780 = scalar_lea.sflag [#allocation4], 5
  %5781 = vsyncmov %s5780
  %s5782 = vpop.sfrf %5781
  %p5783 = scmp.eq.s32.totalorder %s5782, 0
  %p5784 = pneg %p5783
  %5786 = shalt.err (%p5784)
  %s5787 = scalar_lea.sflag [#allocation4], 6
  %5788 = vsyncmov %s5787
  %s5789 = vpop.sfrf %5788
  %p5790 = scmp.eq.s32.totalorder %s5789, 0
  %p5791 = pneg %p5790
  %5793 = shalt.err (%p5791)
  %s5794 = scalar_lea.sflag [#allocation4], 7
  %5795 = vsyncmov %s5794
  %s5796 = vpop.sfrf %5795
  %p5797 = scmp.eq.s32.totalorder %s5796, 0
  %p5798 = pneg %p5797
  %5800 = shalt.err (%p5798)

</llo_original>
